<compile_context>
chip_gen: v5e
topology: v5e:2x2
jax: 0.10.0
libtpu: 0.0.40
codegen_flags: <defaults>
</compile_context>

<pallas_src>
import functools
import math

import jax
import jax.numpy as jnp
from jax import lax
from jax.experimental import pallas as pl
from jax.experimental.pallas import tpu as pltpu

_SUBLANE_BF16 = 16   # bf16 packs 16 rows per (16, 128) vreg tile
_LANES = 128


def _round_up(v, m):
    return ((v + m - 1) // m) * m


def _attention_residual_kernel(x_ref, wqkv_ref, bqkv_ref, fw_ref, fb_ref, o_ref,
                               qkv_scratch, *, num_heads, hc_pad, hw_actual,
                               q_block, n_q_blocks, use_bf16_exp):
    """One batch element per grid step, channel-first (C on sublanes, HW on lanes).

    x_ref       : (1, C, HWp)            f32 input block (HWp = HW padded to 128)
    wqkv_ref    : (3*hidden_p, C)        bf16, repacked [Q|K|V], scale folded into Q
    bqkv_ref    : (3*hidden_p, 1)        f32 bias (Q part pre-scaled)
    fw_ref      : (C, hidden_p)          bf16 final 1x1 conv weight (head-padded cols)
    fb_ref      : (C, 1)                 f32
    o_ref       : (1, C, HWp)            f32 output block
    qkv_scratch : (3*hidden_p, HWp)      bf16 VMEM scratch for the projected Q/K/V
    """
    nh = num_heads
    hcp = hc_pad
    hidden_p = nh * hcp
    hw_p = x_ref.shape[-1]
    tj = q_block

    x = x_ref[0]                                   # (C, HWp) f32 (kept f32 for residual)
    x_b = x.astype(jnp.bfloat16)

    # Fused QKV 1x1 conv == channel matmul; bf16 operands, f32 accumulation.
    qkv = jnp.dot(wqkv_ref[...], x_b,
                  preferred_element_type=jnp.float32) + bqkv_ref[...]   # (3*hidden_p, HWp)
    qkv_scratch[...] = qkv.astype(jnp.bfloat16)

    # Full K for all heads.  hcp is a multiple of the bf16 sublane tile, so the
    # (hidden_p, HWp) -> (nh, hcp, HWp) reshape is tile-aligned (no relayout).
    k_all = qkv[hidden_p:2 * hidden_p].reshape(nh, hcp, hw_p).astype(jnp.bfloat16)

    pad_cols = hw_p != hw_actual
    if pad_cols:
        col_ids = lax.broadcasted_iota(jnp.int32, (1, 1, hw_p), 2)
        col_mask = col_ids < hw_actual            # valid key / output columns
    else:
        col_mask = None

    def body(t, o_acc):
        start = pl.multiple_of(t * tj, _LANES)
        q_t = qkv_scratch[pl.ds(0, hidden_p), pl.ds(start, tj)].reshape(nh, hcp, tj)
        v_t = qkv_scratch[pl.ds(2 * hidden_p, hidden_p), pl.ds(start, tj)].reshape(nh, hcp, tj)

        # S[h, q, i] = sum_c Q[h,c,q] * K[h,c,i]   (1/sqrt(hc) folded into Q rows)
        s_t = jnp.einsum('hcq,hci->hqi', q_t, k_all,
                         preferred_element_type=jnp.float32)             # (nh, tj, HWp)
        if pad_cols:
            s_t = jnp.where(col_mask, s_t, -1e30)                        # mask padded keys

        # Softmax over the key/output axis i (f32 stats, EUP reciprocal).
        m = jnp.max(s_t, axis=-1, keepdims=True)
        z = s_t - m
        if use_bf16_exp:                 # bf16 EUP path on v6e/v7x only
            z = z.astype(jnp.bfloat16)
        p = jnp.exp(z)
        l = jnp.sum(p, axis=-1, keepdims=True, dtype=jnp.float32)
        a = (p * pl.reciprocal(l, approx=True)).astype(jnp.bfloat16)     # (nh, tj, HWp)

        if pad_cols:
            # Padded query rows must not contribute to the j-accumulation.
            q_ids = start + lax.broadcasted_iota(jnp.int32, (1, 1, tj), 2)
            v_t = v_t * (q_ids < hw_actual).astype(v_t.dtype)

        # torch: O = V.bmm(A)  ->  O[h, c, i] += sum_q V[h,c,q] * A[h,q,i]
        return o_acc + jnp.einsum('hcq,hqi->hci', v_t, a,
                                  preferred_element_type=jnp.float32)

    o_init = jnp.zeros((nh, hcp, hw_p), jnp.float32)
    o_heads = lax.fori_loop(0, n_q_blocks, body, o_init)                 # (nh, hcp, HWp)

    # Fused final 1x1 conv over all heads, then residual + relu (f32 residual).
    y = jnp.dot(fw_ref[...], o_heads.reshape(hidden_p, hw_p).astype(jnp.bfloat16),
                preferred_element_type=jnp.float32) + fb_ref[...]        # (C, HWp)
    o_ref[0] = jnp.maximum(y + x, 0.0).astype(o_ref.dtype)


def attention_residual(x_nchw, wqkv_weight, wqkv_bias, final_weight, final_bias,
                       num_heads, head_channel, q_block=None):
    """x_nchw: (B, C, H, W); conv weights in PyTorch (out_ch, in_ch[,1,1]) 1x1 form."""
    B, C, H, W = x_nchw.shape
    hw = H * W
    hc = head_channel
    nh = num_heads
    hidden = nh * hc

    # ---- generation-aware hardware queries (VMEM budget, bf16 EUP) ----------
    try:
        phys_vmem = int(pltpu.get_tpu_info().vmem_capacity_bytes)
    except Exception:
        phys_vmem = 64 * 2 ** 20                   # conservative (v7x-sized) fallback
    vmem_cap = min(max(32 * 2 ** 20, (phys_vmem * 3) // 4), 112 * 2 ** 20)
    try:
        kind = jax.devices()[0].device_kind.lower()
    except Exception:
        kind = ""
    use_bf16_exp = ("v6" in kind) or ("v7" in kind)   # v5e/v4: no bf16 VPU/EUP

    # ---- pad logical dims to hardware tiles ----------------------------------
    hc_p = _round_up(max(hc, 1), _SUBLANE_BF16)       # head dim -> bf16 sublane tile
    hidden_p = nh * hc_p
    hw_p = _round_up(hw, _LANES)                      # lane-dense spatial dim

    # ---- query(-row) tile size derived from the VMEM budget ------------------
    blocks = hw_p // _LANES
    if q_block is None:
        budget = max(4 * 2 ** 20, vmem_cap // 3)
        tb = blocks
        while tb > 1 and 3 * nh * (tb * _LANES) * hw_p * 4 > budget:
            tb -= 1
            while blocks % tb:
                tb -= 1
        tj = tb * _LANES
    else:
        tj = min(hw_p, max(_LANES, (q_block // _LANES) * _LANES))
        while hw_p % tj:
            tj -= _LANES
    n_q_blocks = hw_p // tj

    # ---- inputs / weights: repack, fold scale, pad heads & HW, cast to bf16 --
    x_flat = x_nchw.reshape(B, C, hw).astype(jnp.float32)
    if hw_p != hw:
        x_flat = jnp.pad(x_flat, ((0, 0), (0, 0), (0, hw_p - hw)))

    scale = jnp.asarray([1.0 / math.sqrt(hc), 1.0, 1.0], jnp.float32)    # fold into Q

    w = wqkv_weight.reshape(nh, 3, hc, C).astype(jnp.float32) * scale[None, :, None, None]
    w = jnp.pad(w, ((0, 0), (0, 0), (0, hc_p - hc), (0, 0)))
    w_qkv = w.transpose(1, 0, 2, 3).reshape(3 * hidden_p, C).astype(jnp.bfloat16)

    b = wqkv_bias.reshape(nh, 3, hc).astype(jnp.float32) * scale[None, :, None]
    b = jnp.pad(b, ((0, 0), (0, 0), (0, hc_p - hc)))
    b_qkv = b.transpose(1, 0, 2).reshape(3 * hidden_p, 1)

    fw = final_weight.reshape(C, nh, hc).astype(jnp.float32)
    fw = jnp.pad(fw, ((0, 0), (0, 0), (0, hc_p - hc)))
    fw_p = fw.reshape(C, hidden_p).astype(jnp.bfloat16)
    fb = final_bias.astype(jnp.float32).reshape(C, 1)

    # ---- cost estimate (advisory, lets XLA schedule around the kernel) -------
    flops = 2 * B * (3 * hidden * C * hw + 2 * nh * hc * hw * hw + C * hidden * hw)
    trans = B * nh * hw * hw
    bytes_acc = 8 * B * C * hw + 2 * (int(w_qkv.size) + int(fw_p.size)) \
        + 4 * (int(b_qkv.size) + int(fb.size))
    try:
        cost = pl.CostEstimate(flops=int(flops), transcendentals=int(trans),
                               bytes_accessed=int(bytes_acc))
    except Exception:
        cost = None

    kernel = functools.partial(_attention_residual_kernel,
                               num_heads=nh, hc_pad=hc_p, hw_actual=hw,
                               q_block=tj, n_q_blocks=n_q_blocks,
                               use_bf16_exp=use_bf16_exp)

    out_flat = pl.pallas_call(
        kernel,
        out_shape=jax.ShapeDtypeStruct((B, C, hw_p), jnp.float32),
        grid_spec=pltpu.PrefetchScalarGridSpec(
            num_scalar_prefetch=0,
            grid=(B,),
            in_specs=[
                pl.BlockSpec((1, C, hw_p), lambda i: (i, 0, 0)),
                pl.BlockSpec((3 * hidden_p, C), lambda i: (0, 0)),
                pl.BlockSpec((3 * hidden_p, 1), lambda i: (0, 0)),
                pl.BlockSpec((C, hidden_p), lambda i: (0, 0)),
                pl.BlockSpec((C, 1), lambda i: (0, 0)),
            ],
            out_specs=pl.BlockSpec((1, C, hw_p), lambda i: (i, 0, 0)),
            scratch_shapes=[pltpu.VMEM((3 * hidden_p, hw_p), jnp.bfloat16)],
        ),
        compiler_params=pltpu.CompilerParams(
            dimension_semantics=("parallel",),
            vmem_limit_bytes=int(vmem_cap)),
        cost_estimate=cost,
    )(x_flat, w_qkv, b_qkv, fw_p, fb)

    # Drop HW padding (trailing-dim ops only, no transpose), mimic torch .squeeze().
    out = out_flat[:, :, :hw].reshape(B, C, H, W)
    return jnp.squeeze(out)


def reference_torch_style(x, wqkv_weight, wqkv_bias, final_weight, final_bias,
                          num_heads, head_channel):
    """Pure-JAX (f32) re-implementation following the PyTorch NCHW code path exactly."""
    hc = head_channel
    B, C, H, W = x.shape
    HW = H * W
    qkv = jnp.einsum('bchw,oc->bohw', x, wqkv_weight) + wqkv_bias[None, :, None, None]
    qkv = qkv.reshape(B, num_heads, 3 * hc, H, W).reshape(B * num_heads, 3 * hc, HW)
    Q, K, V = qkv[:, :hc], qkv[:, hc:2 * hc], qkv[:, 2 * hc:]
    S = jnp.einsum('bci,bcj->bij', Q, K) / (hc ** 0.5)
    A = jax.nn.softmax(S, axis=-1)
    O = jnp.einsum('bcj,bji->bci', V, A)                       # V.bmm(A)
    O = O.reshape(B, num_heads * hc, H, W)
    y = jnp.einsum('bchw,oc->bohw', O, final_weight) + final_bias[None, :, None, None]
    return jnp.squeeze(jnp.maximum(y + x, 0.0))


if __name__ == "__main__":
    # Shapes consistent with the module defaults (head_channel = C // num_heads).
    B, C, H, W = 2, 8, 16, 16
    num_heads = 4
    head_channel = C // num_heads
    hidden = num_heads * head_channel

    key = jax.random.PRNGKey(0)
    k_x, k_w1, k_b1, k_w2, k_b2, k_x2 = jax.random.split(key, 6)

    # nn.Conv2d(C, 3*hidden, 1) weight (out, in, 1, 1) -> stored as (out, in)
    wqkv_weight = 0.2 * jax.random.normal(k_w1, (3 * hidden, C), dtype=jnp.float32)
    wqkv_bias = 0.1 * jax.random.normal(k_b1, (3 * hidden,), dtype=jnp.float32)
    # nn.Conv2d(hidden, C, 1)
    final_weight = 0.2 * jax.random.normal(k_w2, (C, hidden), dtype=jnp.float32)
    final_bias = 0.1 * jax.random.normal(k_b2, (C,), dtype=jnp.float32)

    def check(x, q_block, tag):
        out = attention_residual(x, wqkv_weight, wqkv_bias, final_weight, final_bias,
                                 num_heads, head_channel, q_block=q_block)
        out = jax.block_until_ready(out)
        ref = reference_torch_style(x, wqkv_weight, wqkv_bias, final_weight, final_bias,
                                    num_heads, head_channel)
        assert out.shape == ref.shape, (tag, out.shape, ref.shape)
        err = float(jnp.max(jnp.abs(out - ref)))
        # Tolerance covers bf16 MXU operands, bf16 exp (v6e/v7x) and the EUP
        # approximate reciprocal in the softmax denominator.
        assert jnp.allclose(out, ref, atol=3e-2, rtol=3e-2), (tag, err)

    x1 = jax.random.normal(k_x, (B, C, H, W), dtype=jnp.float32)
    check(x1, None, "single-q-tile")      # HW=256, one q-tile (fori_loop trip count 1)
    check(x1, 128, "two-q-tiles")         # forces 2 q-tiles -> exercises accumulation
    x2 = jax.random.normal(k_x2, (B, C, 12, 12), dtype=jnp.float32)
    check(x2, 128, "padded-HW")           # HW=144 -> padded to 256 + key/query masking

    print("KERNEL_OK")
</pallas_src>

<mosaic_0001>
module attributes {stable_mosaic.version = 11 : i64} {
  func.func @_attention_residual_kernel(%arg0: i32, %arg1: memref<1x8x256xf32, #tpu.memory_space<vmem>>, %arg2: memref<192x8xbf16, #tpu.memory_space<vmem>>, %arg3: memref<192x1xf32, #tpu.memory_space<vmem>>, %arg4: memref<8x64xbf16, #tpu.memory_space<vmem>>, %arg5: memref<8x1xf32, #tpu.memory_space<vmem>>, %arg6: memref<1x8x256xf32, #tpu.memory_space<vmem>>, %arg7: memref<192x256xbf16, #tpu.memory_space<vmem>>) attributes {dimension_semantics = [#tpu.dimension_semantics<parallel>], iteration_bounds = array<i64: 2>, scalar_prefetch = 0 : i64, scratch_operands = 1 : i64, tpu.core_type = #tpu.core_type<tc>, window_params = [{transform_indices = @transform_0, window_bounds = array<i64: 1, 8, 256>}, {pipeline_mode = #tpu.pipeline_mode<synchronous>, transform_indices = @transform_1, window_bounds = array<i64: 192, 8>}, {pipeline_mode = #tpu.pipeline_mode<synchronous>, transform_indices = @transform_2, window_bounds = array<i64: 192, 1>}, {pipeline_mode = #tpu.pipeline_mode<synchronous>, transform_indices = @transform_3, window_bounds = array<i64: 8, 64>}, {pipeline_mode = #tpu.pipeline_mode<synchronous>, transform_indices = @transform_4, window_bounds = array<i64: 8, 1>}, {transform_indices = @transform_5, window_bounds = array<i64: 1, 8, 256>}]} {
    %c0 = arith.constant 0 : index
    %c0_0 = arith.constant 0 : index
    %c0_1 = arith.constant 0 : index
    %0 = vector.load %arg1[%c0, %c0_0, %c0_1] : memref<1x8x256xf32, #tpu.memory_space<vmem>>, vector<1x8x256xf32>
    %1 = vector.shape_cast %0 : vector<1x8x256xf32> to vector<8x256xf32>
    %2 = arith.truncf %1 : vector<8x256xf32> to vector<8x256xbf16>
    %c0_2 = arith.constant 0 : index
    %c0_3 = arith.constant 0 : index
    %3 = vector.load %arg2[%c0_2, %c0_3] : memref<192x8xbf16, #tpu.memory_space<vmem>>, vector<192x8xbf16>
    %cst = arith.constant dense<0.000000e+00> : vector<192x256xf32>
    %4 = tpu.matmul %3, %2, %cst {dimension_numbers = #tpu.dot_dimension_numbers<[1], [0], [0], [1], [0, 0, 1, 1], [], []>} : vector<192x8xbf16>, vector<8x256xbf16>, vector<192x256xf32> -> vector<192x256xf32>
    %c0_4 = arith.constant 0 : index
    %c0_5 = arith.constant 0 : index
    %5 = vector.load %arg3[%c0_4, %c0_5] : memref<192x1xf32, #tpu.memory_space<vmem>>, vector<192x1xf32>
    %6 = vector.broadcast %5 : vector<192x1xf32> to vector<192x256xf32>
    %7 = arith.addf %4, %6 : vector<192x256xf32>
    %8 = arith.truncf %7 : vector<192x256xf32> to vector<192x256xbf16>
    %c0_6 = arith.constant 0 : index
    %c0_7 = arith.constant 0 : index
    %9 = vector.load %arg7[%c0_6, %c0_7] : memref<192x256xbf16, #tpu.memory_space<vmem>>, vector<192x256xbf16>
    tpu.vector_store %arg7[%c0_6, %c0_7], %8 {strides = array<i32>} : memref<192x256xbf16, #tpu.memory_space<vmem>>, vector<192x256xbf16>,
    %10 = vector.extract_strided_slice %7 {offsets = [64, 0], sizes = [64, 256], strides = [1, 1]} : vector<192x256xf32> to vector<64x256xf32>
    %11 = vector.shape_cast %10 : vector<64x256xf32> to vector<4x16x256xf32>
    %12 = arith.truncf %11 : vector<4x16x256xf32> to vector<4x16x256xbf16>
    %cst_8 = arith.constant 0.000000e+00 : f32
    %13 = vector.broadcast %cst_8 : f32 to vector<4x16x256xf32>
    %c0_i32 = arith.constant 0 : i32
    %c256_i32 = arith.constant 256 : i32
    %14 = arith.muli %c0_i32, %c256_i32 : i32
    %15 = tpu.assume_multiple %14, 128 : i32
    %c0_9 = arith.constant 0 : index
    %16 = arith.index_cast %15 : i32 to index
    %17 = vector.load %arg7[%c0_9, %16] : memref<192x256xbf16, #tpu.memory_space<vmem>>, vector<64x256xbf16>
    %18 = vector.shape_cast %17 : vector<64x256xbf16> to vector<4x16x256xbf16>
    %c128 = arith.constant 128 : index
    %19 = arith.index_cast %15 : i32 to index
    %20 = vector.load %arg7[%c128, %19] : memref<192x256xbf16, #tpu.memory_space<vmem>>, vector<64x256xbf16>
    %21 = vector.shape_cast %20 : vector<64x256xbf16> to vector<4x16x256xbf16>
    "tpu.trace_start"() <{level = 10 : i32, message = "hcq,hci->hqi"}> : () -> ()
    %cst_10 = arith.constant dense<0.000000e+00> : vector<4x256x256xf32>
    %22 = tpu.matmul %18, %12, %cst_10 {dimension_numbers = #tpu.dot_dimension_numbers<[1], [1], [2], [2], [0, 0, 0, 2, 1, 2], [0], [0]>} : vector<4x16x256xbf16>, vector<4x16x256xbf16>, vector<4x256x256xf32> -> vector<4x256x256xf32>
    "tpu.trace_stop"() : () -> ()
    %cst_11 = arith.constant dense<0xFF800000> : vector<4x256xf32>
    %23 = vector.multi_reduction <maximumf>, %22, %cst_11 [2] : vector<4x256x256xf32> to vector<4x256xf32>
    %24 = vector.shape_cast %23 : vector<4x256xf32> to vector<4x256x1xf32>
    %25 = vector.broadcast %24 : vector<4x256x1xf32> to vector<4x256x256xf32>
    %26 = arith.subf %22, %25 : vector<4x256x256xf32>
    %27 = math.exp %26 : vector<4x256x256xf32>
    %cst_12 = arith.constant dense<0.000000e+00> : vector<4x256xf32>
    %28 = vector.multi_reduction <add>, %27, %cst_12 [2] : vector<4x256x256xf32> to vector<4x256xf32>
    %29 = vector.shape_cast %28 : vector<4x256xf32> to vector<4x256x1xf32>
    %30 = tpu.reciprocal %29 {approx = true} : vector<4x256x1xf32> -> vector<4x256x1xf32>
    %31 = vector.broadcast %30 : vector<4x256x1xf32> to vector<4x256x256xf32>
    %32 = arith.mulf %27, %31 : vector<4x256x256xf32>
    %33 = arith.truncf %32 : vector<4x256x256xf32> to vector<4x256x256xbf16>
    "tpu.trace_start"() <{level = 10 : i32, message = "hcq,hqi->hci"}> : () -> ()
    %cst_13 = arith.constant dense<0.000000e+00> : vector<4x16x256xf32>
    %34 = tpu.matmul %21, %33, %cst_13 {dimension_numbers = #tpu.dot_dimension_numbers<[2], [1], [1], [2], [0, 0, 0, 1, 1, 2], [0], [0]>} : vector<4x16x256xbf16>, vector<4x256x256xbf16>, vector<4x16x256xf32> -> vector<4x16x256xf32>
    "tpu.trace_stop"() : () -> ()
    %35 = arith.addf %13, %34 : vector<4x16x256xf32>
    %c1_i32 = arith.constant 1 : i32
    %c0_14 = arith.constant 0 : index
    %c0_15 = arith.constant 0 : index
    %36 = vector.load %arg4[%c0_14, %c0_15] : memref<8x64xbf16, #tpu.memory_space<vmem>>, vector<8x64xbf16>
    %37 = vector.shape_cast %35 : vector<4x16x256xf32> to vector<64x256xf32>
    %38 = arith.truncf %37 : vector<64x256xf32> to vector<64x256xbf16>
    %cst_16 = arith.constant dense<0.000000e+00> : vector<8x256xf32>
    %39 = tpu.matmul %36, %38, %cst_16 {dimension_numbers = #tpu.dot_dimension_numbers<[1], [0], [0], [1], [0, 0, 1, 1], [], []>} : vector<8x64xbf16>, vector<64x256xbf16>, vector<8x256xf32> -> vector<8x256xf32>
    %c0_17 = arith.constant 0 : index
    %c0_18 = arith.constant 0 : index
    %40 = vector.load %arg5[%c0_17, %c0_18] : memref<8x1xf32, #tpu.memory_space<vmem>>, vector<8x1xf32>
    %41 = vector.broadcast %40 : vector<8x1xf32> to vector<8x256xf32>
    %42 = arith.addf %39, %41 : vector<8x256xf32>
    %43 = arith.addf %42, %1 : vector<8x256xf32>
    %cst_19 = arith.constant 0.000000e+00 : f32
    %44 = vector.broadcast %cst_19 : f32 to vector<8x256xf32>
    %45 = arith.maximumf %43, %44 : vector<8x256xf32>
    %c0_20 = arith.constant 0 : index
    %c0_21 = arith.constant 0 : index
    %c0_22 = arith.constant 0 : index
    %46 = vector.load %arg6[%c0_20, %c0_21, %c0_22] : memref<1x8x256xf32, #tpu.memory_space<vmem>>, vector<1x8x256xf32>
    %47 = vector.shape_cast %46 : vector<1x8x256xf32> to vector<8x256xf32>
    %48 = vector.shape_cast %45 : vector<8x256xf32> to vector<1x8x256xf32>
    tpu.vector_store %arg6[%c0_20, %c0_21, %c0_22], %48 {strides = array<i32>} : memref<1x8x256xf32, #tpu.memory_space<vmem>>, vector<1x8x256xf32>,
    return
  }
  func.func @transform_0(%arg0: i32) -> (i32, i32, i32) {
    %c0_i32 = arith.constant 0 : i32
    %c0_i32_0 = arith.constant 0 : i32
    %c0_i32_1 = arith.constant 0 : i32
    return %arg0, %c0_i32, %c0_i32_0 : i32, i32, i32
  }
  func.func @transform_1(%arg0: i32) -> (i32, i32) {
    %c0_i32 = arith.constant 0 : i32
    %c0_i32_0 = arith.constant 0 : i32
    %c0_i32_1 = arith.constant 0 : i32
    return %c0_i32, %c0_i32_0 : i32, i32
  }
  func.func @transform_2(%arg0: i32) -> (i32, i32) {
    %c0_i32 = arith.constant 0 : i32
    %c0_i32_0 = arith.constant 0 : i32
    %c0_i32_1 = arith.constant 0 : i32
    return %c0_i32, %c0_i32_0 : i32, i32
  }
  func.func @transform_3(%arg0: i32) -> (i32, i32) {
    %c0_i32 = arith.constant 0 : i32
    %c0_i32_0 = arith.constant 0 : i32
    %c0_i32_1 = arith.constant 0 : i32
    return %c0_i32, %c0_i32_0 : i32, i32
  }
  func.func @transform_4(%arg0: i32) -> (i32, i32) {
    %c0_i32 = arith.constant 0 : i32
    %c0_i32_0 = arith.constant 0 : i32
    %c0_i32_1 = arith.constant 0 : i32
    return %c0_i32, %c0_i32_0 : i32, i32
  }
  func.func @transform_5(%arg0: i32) -> (i32, i32, i32) {
    %c0_i32 = arith.constant 0 : i32
    %c0_i32_0 = arith.constant 0 : i32
    %c0_i32_1 = arith.constant 0 : i32
    return %arg0, %c0_i32, %c0_i32_0 : i32, i32, i32
  }
}

</mosaic_0001>

<llo_original>
// kernel: tpu_custom_call.1
$region0: #{tpu_custom_call.1}
  #allocation0 [shape = 'u32[]', space=smem, size = 0x4, offset = 0x4, fixed_abs, tag = 'smem constant byte address 0x4 - core index']
  #allocation1 [shape = 'u32[72,128]{1,0:T(1,128)}', space=vmem, size = 0x9000, scoped, tag = 'internal scratch']
  #allocation2 [shape = 'bf16[192,256]{1,0:T(8,128)(2,1)}', space=vmem, size = 0x18000, scoped, tag = 'scratch operand']
  %s0 = inlined_call_operand.vmem [shape: f32[2,8,256], index: 0, kind: input, shape index: {}]
  %s1 = inlined_call_operand.vmem [shape: bf16[192,8], index: 1, kind: input, shape index: {}]
  %s2 = inlined_call_operand.vmem [shape: f32[192,1], index: 2, kind: input, shape index: {}]
  %s3 = inlined_call_operand.vmem [shape: bf16[8,64], index: 3, kind: input, shape index: {}]
  %s4 = inlined_call_operand.vmem [shape: f32[8,1], index: 4, kind: input, shape index: {}]
  %s5 = inlined_call_operand.hbm [shape: f32[2,8,256], index: 5, kind: output, shape index: {}]
  %s6 = sld [smem:[#allocation0]]
  $region53: #{tpu_custom_call.1} parent=0
    _
  %s8 = ssub.s32 1, %s6
  %s9 = scalar_select 0, %s8, %s6
  $region1: #{tpu_custom_call.1} parent=0
    #allocation3 [shape = 'u8[16384]{0}', space=vmem, size = 0x4000, scoped, tag = 'output window, operand 0']
    #allocation4 [shape = 's32[2]{0}', space=sflag, size = 0x8, scoped, tag = 'scoped memory for tpu_custom_call.1']
    %10 = vsyncpa [#allocation4], 0
    %s11 = scalar_lea.sflag [#allocation4], 1
    %12 = vsyncpa %s11, 0
    loop: start=0, step=1, limit=4
    $region2: #{tpu_custom_call.1} parent=1 // loop_pre_header
      _
    $region3: #{tpu_custom_call.1} parent=1 // loop_header
      %s14 = sphi 0, %s18
      %p15 = scmp.ge.s32.totalorder %s14, 4
      %s24 = sphi 0, %s26
      %s27 = sphi 0, %s24
      %s28 = sphi 0, %s27
      %s44 = sphi 0, %s28
      %s48 = sphi 0, %s48
      %s50 = sphi 0, %s48
      %s51 = sphi 0, %s50
      %s65 = sphi 0, %s51
      %s69 = sphi 0, %s69
      %s71 = sphi 0, %s69
      %s72 = sphi 0, %s71
      %s86 = sphi 0, %s72
      %s90 = sphi 0, %s90
      %s92 = sphi 0, %s90
      %s93 = sphi 0, %s92
      %s107 = sphi 0, %s93
      %s111 = sphi 0, %s111
      %s113 = sphi 0, %s111
      %s114 = sphi 0, %s113
      %s128 = sphi 0, %s114
      %s134 = sphi 0, %s136
      %s137 = sphi 0, %s134
      %s138 = sphi 0, %s137
      %s154 = sphi 0, %s138
    $region4: #{tpu_custom_call.1} parent=1 // loop_header_branch
      %17 = sbr.rel (%p15) target = $region8
    $region5: #{tpu_custom_call.1} parent=1 // loop_body
      %s19 = ssub.s32 %s14, 1
      %s20 = ssub.s32 %s14, 2
      %s21 = sadd.s32 %s14, 1
      %s22 = ssub.s32 %s14, %s21
      %p23 = scmp.eq.s32.totalorder %s22, 0
      %s25 = sadd.s32 %s24, 1
      %s26 = scalar_select %p23, %s24, %s25
      %p29 = pneg %p23
      %p30 = scmp.eq.s32.totalorder %s14, 1
      %p31 = por %p29, %p30
      %p32 = scmp.ne.s32.totalorder %s24, %s27
      %p33 = scmp.eq.s32.totalorder %s14, 0
      %p34 = por %p32, %p33
      %p35 = scmp.ne.s32.totalorder %s24, %s27
      %p36 = scmp.eq.s32.totalorder %s19, 1
      %p37 = por %p35, %p36
      %p38 = scmp.ne.s32.totalorder %s27, %s28
      %p39 = scmp.eq.s32.totalorder %s19, 0
      %p40 = por %p38, %p39
      %p41 = scmp.ne.s32.totalorder %s27, %s28
      %p42 = scmp.eq.s32.totalorder %s20, 1
      %p43 = por %p41, %p42
      %p45 = scmp.ne.s32.totalorder %s28, %s44
      %p46 = scmp.eq.s32.totalorder %s20, 0
      %p47 = por %p45, %p46
      %s49 = sadd.s32 %s48, 1
      %p52 = scmp.eq.s32.totalorder %s14, 1
      %p53 = scmp.ne.s32.totalorder %s48, %s50
      %p54 = scmp.eq.s32.totalorder %s14, 0
      %p55 = por %p53, %p54
      %p56 = scmp.ne.s32.totalorder %s48, %s50
      %p57 = scmp.eq.s32.totalorder %s19, 1
      %p58 = por %p56, %p57
      %p59 = scmp.ne.s32.totalorder %s50, %s51
      %p60 = scmp.eq.s32.totalorder %s19, 0
      %p61 = por %p59, %p60
      %p62 = scmp.ne.s32.totalorder %s50, %s51
      %p63 = scmp.eq.s32.totalorder %s20, 1
      %p64 = por %p62, %p63
      %p66 = scmp.ne.s32.totalorder %s51, %s65
      %p67 = scmp.eq.s32.totalorder %s20, 0
      %p68 = por %p66, %p67
      %s70 = sadd.s32 %s69, 1
      %p73 = scmp.eq.s32.totalorder %s14, 1
      %p74 = scmp.ne.s32.totalorder %s69, %s71
      %p75 = scmp.eq.s32.totalorder %s14, 0
      %p76 = por %p74, %p75
      %p77 = scmp.ne.s32.totalorder %s69, %s71
      %p78 = scmp.eq.s32.totalorder %s19, 1
      %p79 = por %p77, %p78
      %p80 = scmp.ne.s32.totalorder %s71, %s72
      %p81 = scmp.eq.s32.totalorder %s19, 0
      %p82 = por %p80, %p81
      %p83 = scmp.ne.s32.totalorder %s71, %s72
      %p84 = scmp.eq.s32.totalorder %s20, 1
      %p85 = por %p83, %p84
      %p87 = scmp.ne.s32.totalorder %s72, %s86
      %p88 = scmp.eq.s32.totalorder %s20, 0
      %p89 = por %p87, %p88
      %s91 = sadd.s32 %s90, 1
      %p94 = scmp.eq.s32.totalorder %s14, 1
      %p95 = scmp.ne.s32.totalorder %s90, %s92
      %p96 = scmp.eq.s32.totalorder %s14, 0
      %p97 = por %p95, %p96
      %p98 = scmp.ne.s32.totalorder %s90, %s92
      %p99 = scmp.eq.s32.totalorder %s19, 1
      %p100 = por %p98, %p99
      %p101 = scmp.ne.s32.totalorder %s92, %s93
      %p102 = scmp.eq.s32.totalorder %s19, 0
      %p103 = por %p101, %p102
      %p104 = scmp.ne.s32.totalorder %s92, %s93
      %p105 = scmp.eq.s32.totalorder %s20, 1
      %p106 = por %p104, %p105
      %p108 = scmp.ne.s32.totalorder %s93, %s107
      %p109 = scmp.eq.s32.totalorder %s20, 0
      %p110 = por %p108, %p109
      %s112 = sadd.s32 %s111, 1
      %p115 = scmp.eq.s32.totalorder %s14, 1
      %p116 = scmp.ne.s32.totalorder %s111, %s113
      %p117 = scmp.eq.s32.totalorder %s14, 0
      %p118 = por %p116, %p117
      %p119 = scmp.ne.s32.totalorder %s111, %s113
      %p120 = scmp.eq.s32.totalorder %s19, 1
      %p121 = por %p119, %p120
      %p122 = scmp.ne.s32.totalorder %s113, %s114
      %p123 = scmp.eq.s32.totalorder %s19, 0
      %p124 = por %p122, %p123
      %p125 = scmp.ne.s32.totalorder %s113, %s114
      %p126 = scmp.eq.s32.totalorder %s20, 1
      %p127 = por %p125, %p126
      %p129 = scmp.ne.s32.totalorder %s114, %s128
      %p130 = scmp.eq.s32.totalorder %s20, 0
      %p131 = por %p129, %p130
      %s132 = ssub.s32 %s14, %s21
      %p133 = scmp.eq.s32.totalorder %s132, 0
      %s135 = sadd.s32 %s134, 1
      %s136 = scalar_select %p133, %s134, %s135
      %p139 = pneg %p133
      %p140 = scmp.eq.s32.totalorder %s14, 1
      %p141 = por %p139, %p140
      %p142 = scmp.ne.s32.totalorder %s134, %s137
      %p143 = scmp.eq.s32.totalorder %s14, 0
      %p144 = por %p142, %p143
      %p145 = scmp.ne.s32.totalorder %s134, %s137
      %p146 = scmp.eq.s32.totalorder %s19, 1
      %p147 = por %p145, %p146
      %p148 = scmp.ne.s32.totalorder %s137, %s138
      %p149 = scmp.eq.s32.totalorder %s19, 0
      %p150 = por %p148, %p149
      %p151 = scmp.ne.s32.totalorder %s137, %s138
      %p152 = scmp.eq.s32.totalorder %s20, 1
      %p153 = por %p151, %p152
      %p155 = scmp.ne.s32.totalorder %s138, %s154
      %p156 = scmp.eq.s32.totalorder %s20, 0
      %p157 = por %p155, %p156
      %p158 = scmp.le.s32.totalorder 1, %s14
      %p159 = scmp.lt.s32.totalorder %s14, 3
      %p160 = pnand %p158, %p159
      %p161 = pneg %p160
      // Predicated region
      $region9: #{tpu_custom_call.1} parent=5 // pred_check
        _
      $region10: #{tpu_custom_call.1} parent=5 // pred_check_branch
        %163 = sbr.rel (%p160) target = $region12
      $region11: #{tpu_custom_call.1} parent=5 // pred_region
        %s164 = ssub.s32 %s14, 1
        // Predicated region
        $region13: #{tpu_custom_call.1} parent=11 // pred_check
          %p165 = pneg %p61
        $region14: #{tpu_custom_call.1} parent=11 // pred_check_branch
          %167 = sbr.rel (%p165) target = $region16
        $region15: #{tpu_custom_call.1} parent=11 // pred_region
          _
        $region16: #{tpu_custom_call.1} parent=11 // pred_fallthru
          _
        // Predicated region
        $region17: #{tpu_custom_call.1} parent=11 // pred_check
          %p168 = pneg %p82
        $region18: #{tpu_custom_call.1} parent=11 // pred_check_branch
          %170 = sbr.rel (%p168) target = $region20
        $region19: #{tpu_custom_call.1} parent=11 // pred_region
          _
        $region20: #{tpu_custom_call.1} parent=11 // pred_fallthru
          _
        // Predicated region
        $region21: #{tpu_custom_call.1} parent=11 // pred_check
          %p171 = pneg %p103
        $region22: #{tpu_custom_call.1} parent=11 // pred_check_branch
          %173 = sbr.rel (%p171) target = $region24
        $region23: #{tpu_custom_call.1} parent=11 // pred_region
          _
        $region24: #{tpu_custom_call.1} parent=11 // pred_fallthru
          _
        // Predicated region
        $region25: #{tpu_custom_call.1} parent=11 // pred_check
          %p174 = pneg %p124
        $region26: #{tpu_custom_call.1} parent=11 // pred_check_branch
          %176 = sbr.rel (%p174) target = $region28
        $region27: #{tpu_custom_call.1} parent=11 // pred_region
          _
        $region28: #{tpu_custom_call.1} parent=11 // pred_fallthru
          _
      $region12: #{tpu_custom_call.1} parent=5 // pred_fallthru
        _
      %p177 = scmp.lt.s32.totalorder %s14, 2
      // Predicated region
      $region29: #{tpu_custom_call.1} parent=5 // pred_check
        %p178 = pneg %p177
      $region30: #{tpu_custom_call.1} parent=5 // pred_check_branch
        %180 = sbr.rel (%p178) target = $region32
      $region31: #{tpu_custom_call.1} parent=5 // pred_region
        // Predicated region
        $region33: #{tpu_custom_call.1} parent=31 // pred_check
          %p181 = pneg %p34
        $region34: #{tpu_custom_call.1} parent=31 // pred_check_branch
          %183 = sbr.rel (%p181) target = $region36
        $region35: #{tpu_custom_call.1} parent=31 // pred_region
          %p184 = scmp.lt.s32.totalorder %s14, 1
          %s185 = scalar_select %p184, %s14, 1
          %s186 = smul.addr %s185, 2
          %s187 = smul.addr %s186, 8
          %s188 = scalar_lea.vmem %s0, %s187
        $region36: #{tpu_custom_call.1} parent=31 // pred_fallthru
          _
      $region32: #{tpu_custom_call.1} parent=5 // pred_fallthru
        _
      %p189 = scmp.le.s32.totalorder 1, %s14
      %p190 = scmp.lt.s32.totalorder %s14, 3
      %p191 = pnand %p189, %p190
      %p192 = pneg %p191
      // Predicated region
      $region37: #{tpu_custom_call.1} parent=5 // pred_check
        _
      $region38: #{tpu_custom_call.1} parent=5 // pred_check_branch
        %194 = sbr.rel (%p191) target = $region40
      $region39: #{tpu_custom_call.1} parent=5 // pred_region
        %s195 = ssub.s32 %s14, 1
        %p196 = scmp.lt.s32.totalorder %s19, 1
        %s197 = scalar_select %p196, %s19, 1
        %s198 = smul.addr %s197, 2
        %s199 = smul.addr %s198, 8
        %s200 = scalar_lea.vmem %s0, %s199
        %p201 = pneg %p40
        %p202 = pneg %p37
        %p203 = pneg %p61
        %p204 = pneg %p58
        %p205 = pneg %p82
        %p206 = pneg %p79
        %p207 = pneg %p103
        %p208 = pneg %p100
        %p209 = pneg %p124
        %p210 = pneg %p121
        %p211 = pneg %p150
        %p212 = pneg %p147
        %s213 = sand.u32 %s137, 1
        %s214 = scalar_lea.sflag [#allocation4], %s213
        %s215 = sand.u32 %s137, 1
        %s216 = smul.addr %s215, 16
        %s217 = scalar_lea.vmem [#allocation3], %s216
        %p218 = scmp.lt.s32.totalorder %s19, 1
        %s219 = scalar_select %p218, %s19, 1
        %s220 = smul.addr %s219, 2
        %s221 = smul.addr %s220, 8
        %s222 = scalar_lea.vmem %s0, %s221
        %v224 = vld [vmem:[%s222] sm:$0xff]
        %v225 = vld [vmem:[%s222 + $0x8] sm:$0xff]
        %v226 = vpack.c.bf16 %v224, %v224
        %v227 = vpack.c.bf16 %v225, %v225
        %v228 = vld [vmem:[%s1] sm:$0xf]
        %v229 = vld [vmem:[%s1 + $0x4] sm:$0xf]
        %v230 = vld [vmem:[%s1 + $0x8] sm:$0xf]
        %v231 = vld [vmem:[%s1 + $0xc] sm:$0xf]
        %v232 = vld [vmem:[%s1 + $0x10] sm:$0xf]
        %v233 = vld [vmem:[%s1 + $0x14] sm:$0xf]
        %v234 = vld [vmem:[%s1 + $0x18] sm:$0xf]
        %v235 = vld [vmem:[%s1 + $0x1c] sm:$0xf]
        %v236 = vld [vmem:[%s1 + $0x20] sm:$0xf]
        %v237 = vld [vmem:[%s1 + $0x24] sm:$0xf]
        %v238 = vld [vmem:[%s1 + $0x28] sm:$0xf]
        %v239 = vld [vmem:[%s1 + $0x2c] sm:$0xf]
        %v240 = vld [vmem:[%s1 + $0x30] sm:$0xf]
        %v241 = vld [vmem:[%s1 + $0x34] sm:$0xf]
        %v242 = vld [vmem:[%s1 + $0x38] sm:$0xf]
        %v243 = vld [vmem:[%s1 + $0x3c] sm:$0xf]
        %v244 = vld [vmem:[%s1 + $0x40] sm:$0xf]
        %v245 = vld [vmem:[%s1 + $0x44] sm:$0xf]
        %v246 = vld [vmem:[%s1 + $0x48] sm:$0xf]
        %v247 = vld [vmem:[%s1 + $0x4c] sm:$0xf]
        %v248 = vld [vmem:[%s1 + $0x50] sm:$0xf]
        %v249 = vld [vmem:[%s1 + $0x54] sm:$0xf]
        %v250 = vld [vmem:[%s1 + $0x58] sm:$0xf]
        %v251 = vld [vmem:[%s1 + $0x5c] sm:$0xf]
        %v252 = vld [vmem:[%s2] sm:$0xff]
        %v253 = vld [vmem:[%s2 + $0x8] sm:$0xff]
        %v254 = vld [vmem:[%s2 + $0x10] sm:$0xff]
        %v255 = vld [vmem:[%s2 + $0x18] sm:$0xff]
        %v256 = vld [vmem:[%s2 + $0x20] sm:$0xff]
        %v257 = vld [vmem:[%s2 + $0x28] sm:$0xff]
        %v258 = vld [vmem:[%s2 + $0x30] sm:$0xff]
        %v259 = vld [vmem:[%s2 + $0x38] sm:$0xff]
        %v260 = vld [vmem:[%s2 + $0x40] sm:$0xff]
        %v261 = vld [vmem:[%s2 + $0x48] sm:$0xff]
        %v262 = vld [vmem:[%s2 + $0x50] sm:$0xff]
        %v263 = vld [vmem:[%s2 + $0x58] sm:$0xff]
        %v264 = vld [vmem:[%s2 + $0x60] sm:$0xff]
        %v265 = vld [vmem:[%s2 + $0x68] sm:$0xff]
        %v266 = vld [vmem:[%s2 + $0x70] sm:$0xff]
        %v267 = vld [vmem:[%s2 + $0x78] sm:$0xff]
        %v268 = vld [vmem:[%s2 + $0x80] sm:$0xff]
        %v269 = vld [vmem:[%s2 + $0x88] sm:$0xff]
        %v270 = vld [vmem:[%s2 + $0x90] sm:$0xff]
        %v271 = vld [vmem:[%s2 + $0x98] sm:$0xff]
        %v272 = vld [vmem:[%s2 + $0xa0] sm:$0xff]
        %v273 = vld [vmem:[%s2 + $0xa8] sm:$0xff]
        %v274 = vld [vmem:[%s2 + $0xb0] sm:$0xff]
        %v275 = vld [vmem:[%s2 + $0xb8] sm:$0xff]
        %277 = vset.pattern.permute.xlu0 0
        %278 = vperm.xlu0 %277, %v252
        %v279 = vpop.permute.xlu0 %278
        %282 = vset.pattern.permute.xlu0 0
        %283 = vperm.xlu0 %282, %v253
        %v284 = vpop.permute.xlu0 %283
        %287 = vset.pattern.permute.xlu0 0
        %288 = vperm.xlu0 %287, %v254
        %v289 = vpop.permute.xlu0 %288
        %292 = vset.pattern.permute.xlu0 0
        %293 = vperm.xlu0 %292, %v255
        %v294 = vpop.permute.xlu0 %293
        %297 = vset.pattern.permute.xlu0 0
        %298 = vperm.xlu0 %297, %v256
        %v299 = vpop.permute.xlu0 %298
        %302 = vset.pattern.permute.xlu0 0
        %303 = vperm.xlu0 %302, %v257
        %v304 = vpop.permute.xlu0 %303
        %307 = vset.pattern.permute.xlu0 0
        %308 = vperm.xlu0 %307, %v258
        %v309 = vpop.permute.xlu0 %308
        %312 = vset.pattern.permute.xlu0 0
        %313 = vperm.xlu0 %312, %v259
        %v314 = vpop.permute.xlu0 %313
        %317 = vset.pattern.permute.xlu0 0
        %318 = vperm.xlu0 %317, %v260
        %v319 = vpop.permute.xlu0 %318
        %322 = vset.pattern.permute.xlu0 0
        %323 = vperm.xlu0 %322, %v261
        %v324 = vpop.permute.xlu0 %323
        %327 = vset.pattern.permute.xlu0 0
        %328 = vperm.xlu0 %327, %v262
        %v329 = vpop.permute.xlu0 %328
        %332 = vset.pattern.permute.xlu0 0
        %333 = vperm.xlu0 %332, %v263
        %v334 = vpop.permute.xlu0 %333
        %337 = vset.pattern.permute.xlu0 0
        %338 = vperm.xlu0 %337, %v264
        %v339 = vpop.permute.xlu0 %338
        %342 = vset.pattern.permute.xlu0 0
        %343 = vperm.xlu0 %342, %v265
        %v344 = vpop.permute.xlu0 %343
        %347 = vset.pattern.permute.xlu0 0
        %348 = vperm.xlu0 %347, %v266
        %v349 = vpop.permute.xlu0 %348
        %352 = vset.pattern.permute.xlu0 0
        %353 = vperm.xlu0 %352, %v267
        %v354 = vpop.permute.xlu0 %353
        %357 = vset.pattern.permute.xlu0 0
        %358 = vperm.xlu0 %357, %v268
        %v359 = vpop.permute.xlu0 %358
        %362 = vset.pattern.permute.xlu0 0
        %363 = vperm.xlu0 %362, %v269
        %v364 = vpop.permute.xlu0 %363
        %367 = vset.pattern.permute.xlu0 0
        %368 = vperm.xlu0 %367, %v270
        %v369 = vpop.permute.xlu0 %368
        %372 = vset.pattern.permute.xlu0 0
        %373 = vperm.xlu0 %372, %v271
        %v374 = vpop.permute.xlu0 %373
        %377 = vset.pattern.permute.xlu0 0
        %378 = vperm.xlu0 %377, %v272
        %v379 = vpop.permute.xlu0 %378
        %382 = vset.pattern.permute.xlu0 0
        %383 = vperm.xlu0 %382, %v273
        %v384 = vpop.permute.xlu0 %383
        %387 = vset.pattern.permute.xlu0 0
        %388 = vperm.xlu0 %387, %v274
        %v389 = vpop.permute.xlu0 %388
        %392 = vset.pattern.permute.xlu0 0
        %393 = vperm.xlu0 %392, %v275
        %v394 = vpop.permute.xlu0 %393
        %v420 = vunpack.c.l.b16 %v228
        %v421 = vunpack.c.l.b16 %v229
        %v422 = vunpack.c.l.b16 %v230
        %v423 = vunpack.c.l.b16 %v231
        %v424 = vunpack.c.l.b16 %v232
        %v425 = vunpack.c.l.b16 %v233
        %v426 = vunpack.c.l.b16 %v234
        %v427 = vunpack.c.l.b16 %v235
        %v428 = vunpack.c.l.b16 %v236
        %v429 = vunpack.c.l.b16 %v237
        %v430 = vunpack.c.l.b16 %v238
        %v431 = vunpack.c.l.b16 %v239
        %v432 = vunpack.c.l.b16 %v240
        %v433 = vunpack.c.l.b16 %v241
        %v434 = vunpack.c.l.b16 %v242
        %v435 = vunpack.c.l.b16 %v243
        %v436 = vunpack.c.l.b16 %v244
        %v437 = vunpack.c.l.b16 %v245
        %v438 = vunpack.c.l.b16 %v246
        %v439 = vunpack.c.l.b16 %v247
        %v440 = vunpack.c.l.b16 %v248
        %v441 = vunpack.c.l.b16 %v249
        %v442 = vunpack.c.l.b16 %v250
        %v443 = vunpack.c.l.b16 %v251
        %v444 = vpack.c.b16 %v421, %v420
        %v445 = vpack.c.b16 %v423, %v422
        %v446 = vpack.c.b16 %v425, %v424
        %v447 = vpack.c.b16 %v427, %v426
        %v448 = vpack.c.b16 %v429, %v428
        %v449 = vpack.c.b16 %v431, %v430
        %v450 = vpack.c.b16 %v433, %v432
        %v451 = vpack.c.b16 %v435, %v434
        %v452 = vpack.c.b16 %v437, %v436
        %v453 = vpack.c.b16 %v439, %v438
        %v454 = vpack.c.b16 %v441, %v440
        %v455 = vpack.c.b16 %v443, %v442
        %vm456 = vcmask 64512
        %v458 = vsel %vm456, %v444, 0
        %v461 = vsel %vm456, %v445, 0
        %v464 = vsel %vm456, %v446, 0
        %v467 = vsel %vm456, %v447, 0
        %v470 = vsel %vm456, %v448, 0
        %v473 = vsel %vm456, %v449, 0
        %v476 = vsel %vm456, %v450, 0
        %v479 = vsel %vm456, %v451, 0
        %v482 = vsel %vm456, %v452, 0
        %v485 = vsel %vm456, %v453, 0
        %v488 = vsel %vm456, %v454, 0
        %v491 = vsel %vm456, %v455, 0
        %vm493 = vcmask 1043456
        %v495 = vsel %vm493, %v226, 0
        %v498 = vsel %vm493, %v227, 0
        %500 = vmatpush.bf16.msra.mxu0 0
        %501 = vmatpush.bf16.msra.mxu0 0
        %502 = vmatpush.bf16.msra.mxu0 0
        %503 = vmatpush.bf16.msra.mxu0 0
        %504 = vmatpush.bf16.msra.mxu0 0
        %505 = vmatpush.bf16.msra.mxu0 0
        %506 = vmatpush.bf16.msra.mxu0 0
        %507 = vmatpush.bf16.msra.mxu0 %v495
        %508 = vmatmul.bf16.gmra.mxu0 %v458
        %v509 = vpop.f32.mrf.mxu0
        %v510 = vadd.f32 %v279, %v509
        %v511 = vpop.f32.mrf.mxu0
        %v512 = vadd.f32 %v284, %v511
        %513 = vmatmul.bf16.gmra.mxu0 %v461
        %v514 = vpop.f32.mrf.mxu0
        %v515 = vadd.f32 %v289, %v514
        %v516 = vpop.f32.mrf.mxu0
        %v517 = vadd.f32 %v294, %v516
        %518 = vmatmul.bf16.gmra.mxu0 %v464
        %v519 = vpop.f32.mrf.mxu0
        %v520 = vadd.f32 %v299, %v519
        %v521 = vpop.f32.mrf.mxu0
        %v522 = vadd.f32 %v304, %v521
        %523 = vmatmul.bf16.gmra.mxu0 %v467
        %v524 = vpop.f32.mrf.mxu0
        %v525 = vadd.f32 %v309, %v524
        %v526 = vpop.f32.mrf.mxu0
        %v527 = vadd.f32 %v314, %v526
        %528 = vmatmul.bf16.gmra.mxu0 %v470
        %v529 = vpop.f32.mrf.mxu0
        %v530 = vadd.f32 %v319, %v529
        %v531 = vpop.f32.mrf.mxu0
        %v532 = vadd.f32 %v324, %v531
        %533 = vmatmul.bf16.gmra.mxu0 %v473
        %v534 = vpop.f32.mrf.mxu0
        %v535 = vadd.f32 %v329, %v534
        %v536 = vpop.f32.mrf.mxu0
        %v537 = vadd.f32 %v334, %v536
        %538 = vmatmul.bf16.gmra.mxu0 %v476
        %v539 = vpop.f32.mrf.mxu0
        %v540 = vadd.f32 %v339, %v539
        %v541 = vpop.f32.mrf.mxu0
        %v542 = vadd.f32 %v344, %v541
        %543 = vmatmul.bf16.gmra.mxu0 %v479
        %v544 = vpop.f32.mrf.mxu0
        %v545 = vadd.f32 %v349, %v544
        %v546 = vpop.f32.mrf.mxu0
        %v547 = vadd.f32 %v354, %v546
        %548 = vmatmul.bf16.gmra.mxu0 %v482
        %v549 = vpop.f32.mrf.mxu0
        %v550 = vadd.f32 %v359, %v549
        %v551 = vpop.f32.mrf.mxu0
        %v552 = vadd.f32 %v364, %v551
        %553 = vmatmul.bf16.gmra.mxu0 %v485
        %v554 = vpop.f32.mrf.mxu0
        %v555 = vadd.f32 %v369, %v554
        %v556 = vpop.f32.mrf.mxu0
        %v557 = vadd.f32 %v374, %v556
        %558 = vmatmul.bf16.gmra.mxu0 %v488
        %v559 = vpop.f32.mrf.mxu0
        %v560 = vadd.f32 %v379, %v559
        %v561 = vpop.f32.mrf.mxu0
        %v562 = vadd.f32 %v384, %v561
        %563 = vmatmul.bf16.gmra.mxu0 %v491
        %v564 = vpop.f32.mrf.mxu0
        %v565 = vadd.f32 %v389, %v564
        %v566 = vpop.f32.mrf.mxu0
        %v567 = vadd.f32 %v394, %v566
        %568 = vdwg.mxu0
        %569 = vmatpush.bf16.msra.mxu0 0
        %570 = vmatpush.bf16.msra.mxu0 0
        %571 = vmatpush.bf16.msra.mxu0 0
        %572 = vmatpush.bf16.msra.mxu0 0
        %573 = vmatpush.bf16.msra.mxu0 0
        %574 = vmatpush.bf16.msra.mxu0 0
        %575 = vmatpush.bf16.msra.mxu0 0
        %576 = vmatpush.bf16.msra.mxu0 %v498
        %577 = vmatmul.bf16.gmra.mxu0 %v458
        %v578 = vpop.f32.mrf.mxu0
        %v579 = vadd.f32 %v279, %v578
        %v580 = vpop.f32.mrf.mxu0
        %v581 = vadd.f32 %v284, %v580
        %582 = vmatmul.bf16.gmra.mxu0 %v461
        %v583 = vpop.f32.mrf.mxu0
        %v584 = vadd.f32 %v289, %v583
        %v585 = vpop.f32.mrf.mxu0
        %v586 = vadd.f32 %v294, %v585
        %587 = vmatmul.bf16.gmra.mxu0 %v464
        %v588 = vpop.f32.mrf.mxu0
        %v589 = vadd.f32 %v299, %v588
        %v590 = vpop.f32.mrf.mxu0
        %v591 = vadd.f32 %v304, %v590
        %592 = vmatmul.bf16.gmra.mxu0 %v467
        %v593 = vpop.f32.mrf.mxu0
        %v594 = vadd.f32 %v309, %v593
        %v595 = vpop.f32.mrf.mxu0
        %v596 = vadd.f32 %v314, %v595
        %597 = vmatmul.bf16.gmra.mxu0 %v470
        %v598 = vpop.f32.mrf.mxu0
        %v599 = vadd.f32 %v319, %v598
        %v600 = vpop.f32.mrf.mxu0
        %v601 = vadd.f32 %v324, %v600
        %602 = vmatmul.bf16.gmra.mxu0 %v473
        %v603 = vpop.f32.mrf.mxu0
        %v604 = vadd.f32 %v329, %v603
        %v605 = vpop.f32.mrf.mxu0
        %v606 = vadd.f32 %v334, %v605
        %607 = vmatmul.bf16.gmra.mxu0 %v476
        %v608 = vpop.f32.mrf.mxu0
        %v609 = vadd.f32 %v339, %v608
        %v610 = vpop.f32.mrf.mxu0
        %v611 = vadd.f32 %v344, %v610
        %612 = vmatmul.bf16.gmra.mxu0 %v479
        %v613 = vpop.f32.mrf.mxu0
        %v614 = vadd.f32 %v349, %v613
        %v615 = vpop.f32.mrf.mxu0
        %v616 = vadd.f32 %v354, %v615
        %617 = vmatmul.bf16.gmra.mxu0 %v482
        %v618 = vpop.f32.mrf.mxu0
        %v619 = vadd.f32 %v359, %v618
        %v620 = vpop.f32.mrf.mxu0
        %v621 = vadd.f32 %v364, %v620
        %622 = vmatmul.bf16.gmra.mxu0 %v485
        %v623 = vpop.f32.mrf.mxu0
        %v624 = vadd.f32 %v369, %v623
        %v625 = vpop.f32.mrf.mxu0
        %v626 = vadd.f32 %v374, %v625
        %627 = vmatmul.bf16.gmra.mxu0 %v488
        %v628 = vpop.f32.mrf.mxu0
        %v629 = vadd.f32 %v379, %v628
        %v630 = vpop.f32.mrf.mxu0
        %v631 = vadd.f32 %v384, %v630
        %632 = vmatmul.bf16.gmra.mxu0 %v491
        %v633 = vpop.f32.mrf.mxu0
        %v634 = vadd.f32 %v389, %v633
        %v635 = vpop.f32.mrf.mxu0
        %v636 = vadd.f32 %v394, %v635
        %637 = vdwg.mxu0
        %v638 = vpack.c.bf16 %v579, %v510
        %v639 = vpack.c.bf16 %v581, %v512
        %v640 = vpack.c.bf16 %v584, %v515
        %v641 = vpack.c.bf16 %v586, %v517
        %v642 = vpack.c.bf16 %v589, %v520
        %v643 = vpack.c.bf16 %v591, %v522
        %v644 = vpack.c.bf16 %v594, %v525
        %v645 = vpack.c.bf16 %v596, %v527
        %v646 = vpack.c.bf16 %v599, %v530
        %v647 = vpack.c.bf16 %v601, %v532
        %v648 = vpack.c.bf16 %v604, %v535
        %v649 = vpack.c.bf16 %v606, %v537
        %v650 = vpack.c.bf16 %v609, %v540
        %v651 = vpack.c.bf16 %v611, %v542
        %v652 = vpack.c.bf16 %v614, %v545
        %v653 = vpack.c.bf16 %v616, %v547
        %v654 = vpack.c.bf16 %v619, %v550
        %v655 = vpack.c.bf16 %v621, %v552
        %v656 = vpack.c.bf16 %v624, %v555
        %v657 = vpack.c.bf16 %v626, %v557
        %v658 = vpack.c.bf16 %v629, %v560
        %v659 = vpack.c.bf16 %v631, %v562
        %v660 = vpack.c.bf16 %v634, %v565
        %v661 = vpack.c.bf16 %v636, %v567
        %662 = vst [vmem:[#allocation2] sm:$0xff] %v638
        %663 = vst [vmem:[#allocation2 + $0x8] sm:$0xff] %v639
        %664 = vst [vmem:[#allocation2 + $0x10] sm:$0xff] %v640
        %665 = vst [vmem:[#allocation2 + $0x18] sm:$0xff] %v641
        %666 = vst [vmem:[#allocation2 + $0x20] sm:$0xff] %v642
        %667 = vst [vmem:[#allocation2 + $0x28] sm:$0xff] %v643
        %668 = vst [vmem:[#allocation2 + $0x30] sm:$0xff] %v644
        %669 = vst [vmem:[#allocation2 + $0x38] sm:$0xff] %v645
        %670 = vst [vmem:[#allocation2 + $0x40] sm:$0xff] %v646
        %671 = vst [vmem:[#allocation2 + $0x48] sm:$0xff] %v647
        %672 = vst [vmem:[#allocation2 + $0x50] sm:$0xff] %v648
        %673 = vst [vmem:[#allocation2 + $0x58] sm:$0xff] %v649
        %674 = vst [vmem:[#allocation2 + $0x60] sm:$0xff] %v650
        %675 = vst [vmem:[#allocation2 + $0x68] sm:$0xff] %v651
        %676 = vst [vmem:[#allocation2 + $0x70] sm:$0xff] %v652
        %677 = vst [vmem:[#allocation2 + $0x78] sm:$0xff] %v653
        %678 = vst [vmem:[#allocation2 + $0x80] sm:$0xff] %v654
        %679 = vst [vmem:[#allocation2 + $0x88] sm:$0xff] %v655
        %680 = vst [vmem:[#allocation2 + $0x90] sm:$0xff] %v656
        %681 = vst [vmem:[#allocation2 + $0x98] sm:$0xff] %v657
        %682 = vst [vmem:[#allocation2 + $0xa0] sm:$0xff] %v658
        %683 = vst [vmem:[#allocation2 + $0xa8] sm:$0xff] %v659
        %684 = vst [vmem:[#allocation2 + $0xb0] sm:$0xff] %v660
        %685 = vst [vmem:[#allocation2 + $0xb8] sm:$0xff] %v661
        %v686 = vld [vmem:[#allocation2] sm:$0xff]
        %v687 = vld [vmem:[#allocation2 + $0x8] sm:$0xff]
        %v688 = vld [vmem:[#allocation2 + $0x10] sm:$0xff]
        %v689 = vld [vmem:[#allocation2 + $0x18] sm:$0xff]
        %v690 = vld [vmem:[#allocation2 + $0x20] sm:$0xff]
        %v691 = vld [vmem:[#allocation2 + $0x28] sm:$0xff]
        %v692 = vld [vmem:[#allocation2 + $0x30] sm:$0xff]
        %v693 = vld [vmem:[#allocation2 + $0x38] sm:$0xff]
        %v694 = vld [vmem:[#allocation2 + $0x80] sm:$0xff]
        %v695 = vld [vmem:[#allocation2 + $0x88] sm:$0xff]
        %v696 = vld [vmem:[#allocation2 + $0x90] sm:$0xff]
        %v697 = vld [vmem:[#allocation2 + $0x98] sm:$0xff]
        %v698 = vld [vmem:[#allocation2 + $0xa0] sm:$0xff]
        %v699 = vld [vmem:[#allocation2 + $0xa8] sm:$0xff]
        %v700 = vld [vmem:[#allocation2 + $0xb0] sm:$0xff]
        %v701 = vld [vmem:[#allocation2 + $0xb8] sm:$0xff]
        %v704 = vunpack.c.l.b16 %v686
        %v705 = vunpack.c.h.b16 %v686
        %v706 = vunpack.c.l.b16 %v687
        %v707 = vunpack.c.h.b16 %v687
        %v708 = vpack.c.b16 %v706, %v704
        %v709 = vpack.c.b16 %v707, %v705
        %712 = vxpose.binary.xlu0.c.b16.start [1/16] %v709, %v708, 128
        %713 = vxpose.binary.xlu0.c.b16.cont [2/16] 0, 0, 128
        %714 = vxpose.binary.xlu0.c.b16.cont [3/16] 0, 0, 128
        %715 = vxpose.binary.xlu0.c.b16.cont [4/16] 0, 0, 128
        %716 = vxpose.binary.xlu0.c.b16.cont [5/16] 0, 0, 128
        %717 = vxpose.binary.xlu0.c.b16.cont [6/16] 0, 0, 128
        %718 = vxpose.binary.xlu0.c.b16.cont [7/16] 0, 0, 128
        %719 = vxpose.binary.xlu0.c.b16.end [8/16] 0, 0, 128
        %v720 = vpop.trf.xlu0
        %v721 = vpop.trf.xlu0
        %v722 = vpop.trf.xlu0
        %v723 = vpop.trf.xlu0
        %v724 = vpop.trf.xlu0
        %v725 = vpop.trf.xlu0
        %v726 = vpop.trf.xlu0
        %v727 = vpop.trf.xlu0
        %v728 = vpop.trf.xlu0
        %v729 = vpop.trf.xlu0
        %v730 = vpop.trf.xlu0
        %v731 = vpop.trf.xlu0
        %v732 = vpop.trf.xlu0
        %v733 = vpop.trf.xlu0
        %v734 = vpop.trf.xlu0
        %v735 = vpop.trf.xlu0
        %v738 = vunpack.c.l.b16 %v646
        %v739 = vunpack.c.h.b16 %v646
        %v740 = vunpack.c.l.b16 %v647
        %v741 = vunpack.c.h.b16 %v647
        %v742 = vpack.c.b16 %v740, %v738
        %v743 = vpack.c.b16 %v741, %v739
        %vm746 = vcmask 130048
        %v748 = vsel %vm746, %v720, 0
        %v751 = vsel %vm746, %v722, 0
        %v754 = vsel %vm746, %v724, 0
        %v757 = vsel %vm746, %v726, 0
        %v760 = vsel %vm746, %v728, 0
        %v763 = vsel %vm746, %v730, 0
        %v766 = vsel %vm746, %v732, 0
        %v769 = vsel %vm746, %v734, 0
        %v772 = vsel %vm746, %v721, 0
        %v775 = vsel %vm746, %v723, 0
        %v778 = vsel %vm746, %v725, 0
        %v781 = vsel %vm746, %v727, 0
        %v784 = vsel %vm746, %v729, 0
        %v787 = vsel %vm746, %v731, 0
        %v790 = vsel %vm746, %v733, 0
        %v793 = vsel %vm746, %v735, 0
        %795 = vmatpush.bf16.msra.mxu0 0
        %796 = vmatpush.bf16.msra.mxu0 0
        %797 = vmatpush.bf16.msra.mxu0 0
        %798 = vmatpush.bf16.msra.mxu0 0
        %799 = vmatpush.bf16.msra.mxu0 0
        %800 = vmatpush.bf16.msra.mxu0 0
        %801 = vmatpush.bf16.msra.mxu0 0
        %802 = vmatpush.bf16.msra.mxu0 %v742
        %803 = vmatmul.bf16.gmra.mxu0 %v748
        %v804 = vpop.f32.mrf.mxu0
        %v805 = vadd.f32 0.0, %v804
        %v806 = vpop.f32.mrf.mxu0
        %v807 = vadd.f32 0.0, %v806
        %808 = vmatmul.bf16.gmra.mxu0 %v751
        %v809 = vpop.f32.mrf.mxu0
        %v810 = vadd.f32 0.0, %v809
        %v811 = vpop.f32.mrf.mxu0
        %v812 = vadd.f32 0.0, %v811
        %813 = vmatmul.bf16.gmra.mxu0 %v754
        %v814 = vpop.f32.mrf.mxu0
        %v815 = vadd.f32 0.0, %v814
        %v816 = vpop.f32.mrf.mxu0
        %v817 = vadd.f32 0.0, %v816
        %818 = vmatmul.bf16.gmra.mxu0 %v757
        %v819 = vpop.f32.mrf.mxu0
        %v820 = vadd.f32 0.0, %v819
        %v821 = vpop.f32.mrf.mxu0
        %v822 = vadd.f32 0.0, %v821
        %823 = vmatmul.bf16.gmra.mxu0 %v760
        %v824 = vpop.f32.mrf.mxu0
        %v825 = vadd.f32 0.0, %v824
        %v826 = vpop.f32.mrf.mxu0
        %v827 = vadd.f32 0.0, %v826
        %828 = vmatmul.bf16.gmra.mxu0 %v763
        %v829 = vpop.f32.mrf.mxu0
        %v830 = vadd.f32 0.0, %v829
        %v831 = vpop.f32.mrf.mxu0
        %v832 = vadd.f32 0.0, %v831
        %833 = vmatmul.bf16.gmra.mxu0 %v766
        %v834 = vpop.f32.mrf.mxu0
        %v835 = vadd.f32 0.0, %v834
        %v836 = vpop.f32.mrf.mxu0
        %v837 = vadd.f32 0.0, %v836
        %838 = vmatmul.bf16.gmra.mxu0 %v769
        %v839 = vpop.f32.mrf.mxu0
        %v840 = vadd.f32 0.0, %v839
        %v841 = vpop.f32.mrf.mxu0
        %v842 = vadd.f32 0.0, %v841
        %843 = vmatmul.bf16.gmra.mxu0 %v772
        %v844 = vpop.f32.mrf.mxu0
        %v845 = vadd.f32 0.0, %v844
        %v846 = vpop.f32.mrf.mxu0
        %v847 = vadd.f32 0.0, %v846
        %848 = vmatmul.bf16.gmra.mxu0 %v775
        %v849 = vpop.f32.mrf.mxu0
        %v850 = vadd.f32 0.0, %v849
        %v851 = vpop.f32.mrf.mxu0
        %v852 = vadd.f32 0.0, %v851
        %853 = vmatmul.bf16.gmra.mxu0 %v778
        %v854 = vpop.f32.mrf.mxu0
        %v855 = vadd.f32 0.0, %v854
        %v856 = vpop.f32.mrf.mxu0
        %v857 = vadd.f32 0.0, %v856
        %858 = vmatmul.bf16.gmra.mxu0 %v781
        %v859 = vpop.f32.mrf.mxu0
        %v860 = vadd.f32 0.0, %v859
        %v861 = vpop.f32.mrf.mxu0
        %v862 = vadd.f32 0.0, %v861
        %863 = vmatmul.bf16.gmra.mxu0 %v784
        %v864 = vpop.f32.mrf.mxu0
        %v865 = vadd.f32 0.0, %v864
        %v866 = vpop.f32.mrf.mxu0
        %v867 = vadd.f32 0.0, %v866
        %868 = vmatmul.bf16.gmra.mxu0 %v787
        %v869 = vpop.f32.mrf.mxu0
        %v870 = vadd.f32 0.0, %v869
        %v871 = vpop.f32.mrf.mxu0
        %v872 = vadd.f32 0.0, %v871
        %873 = vmatmul.bf16.gmra.mxu0 %v790
        %v874 = vpop.f32.mrf.mxu0
        %v875 = vadd.f32 0.0, %v874
        %v876 = vpop.f32.mrf.mxu0
        %v877 = vadd.f32 0.0, %v876
        %878 = vmatmul.bf16.gmra.mxu0 %v793
        %v879 = vpop.f32.mrf.mxu0
        %v880 = vadd.f32 0.0, %v879
        %v881 = vpop.f32.mrf.mxu0
        %v882 = vadd.f32 0.0, %v881
        %883 = vdwg.mxu0
        %884 = vmatpush.bf16.msra.mxu0 0
        %885 = vmatpush.bf16.msra.mxu0 0
        %886 = vmatpush.bf16.msra.mxu0 0
        %887 = vmatpush.bf16.msra.mxu0 0
        %888 = vmatpush.bf16.msra.mxu0 0
        %889 = vmatpush.bf16.msra.mxu0 0
        %890 = vmatpush.bf16.msra.mxu0 0
        %891 = vmatpush.bf16.msra.mxu0 %v743
        %892 = vmatmul.bf16.gmra.mxu0 %v748
        %v893 = vpop.f32.mrf.mxu0
        %v894 = vadd.f32 0.0, %v893
        %v895 = vpop.f32.mrf.mxu0
        %v896 = vadd.f32 0.0, %v895
        %897 = vmatmul.bf16.gmra.mxu0 %v751
        %v898 = vpop.f32.mrf.mxu0
        %v899 = vadd.f32 0.0, %v898
        %v900 = vpop.f32.mrf.mxu0
        %v901 = vadd.f32 0.0, %v900
        %902 = vmatmul.bf16.gmra.mxu0 %v754
        %v903 = vpop.f32.mrf.mxu0
        %v904 = vadd.f32 0.0, %v903
        %v905 = vpop.f32.mrf.mxu0
        %v906 = vadd.f32 0.0, %v905
        %907 = vmatmul.bf16.gmra.mxu0 %v757
        %v908 = vpop.f32.mrf.mxu0
        %v909 = vadd.f32 0.0, %v908
        %v910 = vpop.f32.mrf.mxu0
        %v911 = vadd.f32 0.0, %v910
        %912 = vmatmul.bf16.gmra.mxu0 %v760
        %v913 = vpop.f32.mrf.mxu0
        %v914 = vadd.f32 0.0, %v913
        %v915 = vpop.f32.mrf.mxu0
        %v916 = vadd.f32 0.0, %v915
        %917 = vmatmul.bf16.gmra.mxu0 %v763
        %v918 = vpop.f32.mrf.mxu0
        %v919 = vadd.f32 0.0, %v918
        %v920 = vpop.f32.mrf.mxu0
        %v921 = vadd.f32 0.0, %v920
        %922 = vmatmul.bf16.gmra.mxu0 %v766
        %v923 = vpop.f32.mrf.mxu0
        %v924 = vadd.f32 0.0, %v923
        %v925 = vpop.f32.mrf.mxu0
        %v926 = vadd.f32 0.0, %v925
        %927 = vmatmul.bf16.gmra.mxu0 %v769
        %v928 = vpop.f32.mrf.mxu0
        %v929 = vadd.f32 0.0, %v928
        %v930 = vpop.f32.mrf.mxu0
        %v931 = vadd.f32 0.0, %v930
        %932 = vmatmul.bf16.gmra.mxu0 %v772
        %v933 = vpop.f32.mrf.mxu0
        %v934 = vadd.f32 0.0, %v933
        %v935 = vpop.f32.mrf.mxu0
        %v936 = vadd.f32 0.0, %v935
        %937 = vmatmul.bf16.gmra.mxu0 %v775
        %v938 = vpop.f32.mrf.mxu0
        %v939 = vadd.f32 0.0, %v938
        %v940 = vpop.f32.mrf.mxu0
        %v941 = vadd.f32 0.0, %v940
        %942 = vmatmul.bf16.gmra.mxu0 %v778
        %v943 = vpop.f32.mrf.mxu0
        %v944 = vadd.f32 0.0, %v943
        %v945 = vpop.f32.mrf.mxu0
        %v946 = vadd.f32 0.0, %v945
        %947 = vmatmul.bf16.gmra.mxu0 %v781
        %v948 = vpop.f32.mrf.mxu0
        %v949 = vadd.f32 0.0, %v948
        %v950 = vpop.f32.mrf.mxu0
        %v951 = vadd.f32 0.0, %v950
        %952 = vmatmul.bf16.gmra.mxu0 %v784
        %v953 = vpop.f32.mrf.mxu0
        %v954 = vadd.f32 0.0, %v953
        %v955 = vpop.f32.mrf.mxu0
        %v956 = vadd.f32 0.0, %v955
        %957 = vmatmul.bf16.gmra.mxu0 %v787
        %v958 = vpop.f32.mrf.mxu0
        %v959 = vadd.f32 0.0, %v958
        %v960 = vpop.f32.mrf.mxu0
        %v961 = vadd.f32 0.0, %v960
        %962 = vmatmul.bf16.gmra.mxu0 %v790
        %v963 = vpop.f32.mrf.mxu0
        %v964 = vadd.f32 0.0, %v963
        %v965 = vpop.f32.mrf.mxu0
        %v966 = vadd.f32 0.0, %v965
        %967 = vmatmul.bf16.gmra.mxu0 %v793
        %v968 = vpop.f32.mrf.mxu0
        %v969 = vadd.f32 0.0, %v968
        %v970 = vpop.f32.mrf.mxu0
        %v971 = vadd.f32 0.0, %v970
        %972 = vdwg.mxu0
        %v975 = vunpack.c.l.b16 %v688
        %v976 = vunpack.c.h.b16 %v688
        %v977 = vunpack.c.l.b16 %v689
        %v978 = vunpack.c.h.b16 %v689
        %v979 = vpack.c.b16 %v977, %v975
        %v980 = vpack.c.b16 %v978, %v976
        %983 = vxpose.binary.xlu0.c.b16.start [1/16] %v980, %v979, 128
        %984 = vxpose.binary.xlu0.c.b16.cont [2/16] 0, 0, 128
        %985 = vxpose.binary.xlu0.c.b16.cont [3/16] 0, 0, 128
        %986 = vxpose.binary.xlu0.c.b16.cont [4/16] 0, 0, 128
        %987 = vxpose.binary.xlu0.c.b16.cont [5/16] 0, 0, 128
        %988 = vxpose.binary.xlu0.c.b16.cont [6/16] 0, 0, 128
        %989 = vxpose.binary.xlu0.c.b16.cont [7/16] 0, 0, 128
        %990 = vxpose.binary.xlu0.c.b16.end [8/16] 0, 0, 128
        %v991 = vpop.trf.xlu0
        %v992 = vpop.trf.xlu0
        %v993 = vpop.trf.xlu0
        %v994 = vpop.trf.xlu0
        %v995 = vpop.trf.xlu0
        %v996 = vpop.trf.xlu0
        %v997 = vpop.trf.xlu0
        %v998 = vpop.trf.xlu0
        %v999 = vpop.trf.xlu0
        %v1000 = vpop.trf.xlu0
        %v1001 = vpop.trf.xlu0
        %v1002 = vpop.trf.xlu0
        %v1003 = vpop.trf.xlu0
        %v1004 = vpop.trf.xlu0
        %v1005 = vpop.trf.xlu0
        %v1006 = vpop.trf.xlu0
        %v1009 = vunpack.c.l.b16 %v648
        %v1010 = vunpack.c.h.b16 %v648
        %v1011 = vunpack.c.l.b16 %v649
        %v1012 = vunpack.c.h.b16 %v649
        %v1013 = vpack.c.b16 %v1011, %v1009
        %v1014 = vpack.c.b16 %v1012, %v1010
        %v1018 = vsel %vm746, %v991, 0
        %v1021 = vsel %vm746, %v993, 0
        %v1024 = vsel %vm746, %v995, 0
        %v1027 = vsel %vm746, %v997, 0
        %v1030 = vsel %vm746, %v999, 0
        %v1033 = vsel %vm746, %v1001, 0
        %v1036 = vsel %vm746, %v1003, 0
        %v1039 = vsel %vm746, %v1005, 0
        %v1042 = vsel %vm746, %v992, 0
        %v1045 = vsel %vm746, %v994, 0
        %v1048 = vsel %vm746, %v996, 0
        %v1051 = vsel %vm746, %v998, 0
        %v1054 = vsel %vm746, %v1000, 0
        %v1057 = vsel %vm746, %v1002, 0
        %v1060 = vsel %vm746, %v1004, 0
        %v1063 = vsel %vm746, %v1006, 0
        %1065 = vmatpush.bf16.msra.mxu0 0
        %1066 = vmatpush.bf16.msra.mxu0 0
        %1067 = vmatpush.bf16.msra.mxu0 0
        %1068 = vmatpush.bf16.msra.mxu0 0
        %1069 = vmatpush.bf16.msra.mxu0 0
        %1070 = vmatpush.bf16.msra.mxu0 0
        %1071 = vmatpush.bf16.msra.mxu0 0
        %1072 = vmatpush.bf16.msra.mxu0 %v1013
        %1073 = vmatmul.bf16.gmra.mxu0 %v1018
        %v1074 = vpop.f32.mrf.mxu0
        %v1075 = vadd.f32 0.0, %v1074
        %v1076 = vpop.f32.mrf.mxu0
        %v1077 = vadd.f32 0.0, %v1076
        %1078 = vmatmul.bf16.gmra.mxu0 %v1021
        %v1079 = vpop.f32.mrf.mxu0
        %v1080 = vadd.f32 0.0, %v1079
        %v1081 = vpop.f32.mrf.mxu0
        %v1082 = vadd.f32 0.0, %v1081
        %1083 = vmatmul.bf16.gmra.mxu0 %v1024
        %v1084 = vpop.f32.mrf.mxu0
        %v1085 = vadd.f32 0.0, %v1084
        %v1086 = vpop.f32.mrf.mxu0
        %v1087 = vadd.f32 0.0, %v1086
        %1088 = vmatmul.bf16.gmra.mxu0 %v1027
        %v1089 = vpop.f32.mrf.mxu0
        %v1090 = vadd.f32 0.0, %v1089
        %v1091 = vpop.f32.mrf.mxu0
        %v1092 = vadd.f32 0.0, %v1091
        %1093 = vmatmul.bf16.gmra.mxu0 %v1030
        %v1094 = vpop.f32.mrf.mxu0
        %v1095 = vadd.f32 0.0, %v1094
        %v1096 = vpop.f32.mrf.mxu0
        %v1097 = vadd.f32 0.0, %v1096
        %1098 = vmatmul.bf16.gmra.mxu0 %v1033
        %v1099 = vpop.f32.mrf.mxu0
        %v1100 = vadd.f32 0.0, %v1099
        %v1101 = vpop.f32.mrf.mxu0
        %v1102 = vadd.f32 0.0, %v1101
        %1103 = vmatmul.bf16.gmra.mxu0 %v1036
        %v1104 = vpop.f32.mrf.mxu0
        %v1105 = vadd.f32 0.0, %v1104
        %v1106 = vpop.f32.mrf.mxu0
        %v1107 = vadd.f32 0.0, %v1106
        %1108 = vmatmul.bf16.gmra.mxu0 %v1039
        %v1109 = vpop.f32.mrf.mxu0
        %v1110 = vadd.f32 0.0, %v1109
        %v1111 = vpop.f32.mrf.mxu0
        %v1112 = vadd.f32 0.0, %v1111
        %1113 = vmatmul.bf16.gmra.mxu0 %v1042
        %v1114 = vpop.f32.mrf.mxu0
        %v1115 = vadd.f32 0.0, %v1114
        %v1116 = vpop.f32.mrf.mxu0
        %v1117 = vadd.f32 0.0, %v1116
        %1118 = vmatmul.bf16.gmra.mxu0 %v1045
        %v1119 = vpop.f32.mrf.mxu0
        %v1120 = vadd.f32 0.0, %v1119
        %v1121 = vpop.f32.mrf.mxu0
        %v1122 = vadd.f32 0.0, %v1121
        %1123 = vmatmul.bf16.gmra.mxu0 %v1048
        %v1124 = vpop.f32.mrf.mxu0
        %v1125 = vadd.f32 0.0, %v1124
        %v1126 = vpop.f32.mrf.mxu0
        %v1127 = vadd.f32 0.0, %v1126
        %1128 = vmatmul.bf16.gmra.mxu0 %v1051
        %v1129 = vpop.f32.mrf.mxu0
        %v1130 = vadd.f32 0.0, %v1129
        %v1131 = vpop.f32.mrf.mxu0
        %v1132 = vadd.f32 0.0, %v1131
        %1133 = vmatmul.bf16.gmra.mxu0 %v1054
        %v1134 = vpop.f32.mrf.mxu0
        %v1135 = vadd.f32 0.0, %v1134
        %v1136 = vpop.f32.mrf.mxu0
        %v1137 = vadd.f32 0.0, %v1136
        %1138 = vmatmul.bf16.gmra.mxu0 %v1057
        %v1139 = vpop.f32.mrf.mxu0
        %v1140 = vadd.f32 0.0, %v1139
        %v1141 = vpop.f32.mrf.mxu0
        %v1142 = vadd.f32 0.0, %v1141
        %1143 = vmatmul.bf16.gmra.mxu0 %v1060
        %v1144 = vpop.f32.mrf.mxu0
        %v1145 = vadd.f32 0.0, %v1144
        %v1146 = vpop.f32.mrf.mxu0
        %v1147 = vadd.f32 0.0, %v1146
        %1148 = vmatmul.bf16.gmra.mxu0 %v1063
        %v1149 = vpop.f32.mrf.mxu0
        %v1150 = vadd.f32 0.0, %v1149
        %v1151 = vpop.f32.mrf.mxu0
        %v1152 = vadd.f32 0.0, %v1151
        %1153 = vdwg.mxu0
        %1154 = vmatpush.bf16.msra.mxu0 0
        %1155 = vmatpush.bf16.msra.mxu0 0
        %1156 = vmatpush.bf16.msra.mxu0 0
        %1157 = vmatpush.bf16.msra.mxu0 0
        %1158 = vmatpush.bf16.msra.mxu0 0
        %1159 = vmatpush.bf16.msra.mxu0 0
        %1160 = vmatpush.bf16.msra.mxu0 0
        %1161 = vmatpush.bf16.msra.mxu0 %v1014
        %1162 = vmatmul.bf16.gmra.mxu0 %v1018
        %v1163 = vpop.f32.mrf.mxu0
        %v1164 = vadd.f32 0.0, %v1163
        %v1165 = vpop.f32.mrf.mxu0
        %v1166 = vadd.f32 0.0, %v1165
        %1167 = vmatmul.bf16.gmra.mxu0 %v1021
        %v1168 = vpop.f32.mrf.mxu0
        %v1169 = vadd.f32 0.0, %v1168
        %v1170 = vpop.f32.mrf.mxu0
        %v1171 = vadd.f32 0.0, %v1170
        %1172 = vmatmul.bf16.gmra.mxu0 %v1024
        %v1173 = vpop.f32.mrf.mxu0
        %v1174 = vadd.f32 0.0, %v1173
        %v1175 = vpop.f32.mrf.mxu0
        %v1176 = vadd.f32 0.0, %v1175
        %1177 = vmatmul.bf16.gmra.mxu0 %v1027
        %v1178 = vpop.f32.mrf.mxu0
        %v1179 = vadd.f32 0.0, %v1178
        %v1180 = vpop.f32.mrf.mxu0
        %v1181 = vadd.f32 0.0, %v1180
        %1182 = vmatmul.bf16.gmra.mxu0 %v1030
        %v1183 = vpop.f32.mrf.mxu0
        %v1184 = vadd.f32 0.0, %v1183
        %v1185 = vpop.f32.mrf.mxu0
        %v1186 = vadd.f32 0.0, %v1185
        %1187 = vmatmul.bf16.gmra.mxu0 %v1033
        %v1188 = vpop.f32.mrf.mxu0
        %v1189 = vadd.f32 0.0, %v1188
        %v1190 = vpop.f32.mrf.mxu0
        %v1191 = vadd.f32 0.0, %v1190
        %1192 = vmatmul.bf16.gmra.mxu0 %v1036
        %v1193 = vpop.f32.mrf.mxu0
        %v1194 = vadd.f32 0.0, %v1193
        %v1195 = vpop.f32.mrf.mxu0
        %v1196 = vadd.f32 0.0, %v1195
        %1197 = vmatmul.bf16.gmra.mxu0 %v1039
        %v1198 = vpop.f32.mrf.mxu0
        %v1199 = vadd.f32 0.0, %v1198
        %v1200 = vpop.f32.mrf.mxu0
        %v1201 = vadd.f32 0.0, %v1200
        %1202 = vmatmul.bf16.gmra.mxu0 %v1042
        %v1203 = vpop.f32.mrf.mxu0
        %v1204 = vadd.f32 0.0, %v1203
        %v1205 = vpop.f32.mrf.mxu0
        %v1206 = vadd.f32 0.0, %v1205
        %1207 = vmatmul.bf16.gmra.mxu0 %v1045
        %v1208 = vpop.f32.mrf.mxu0
        %v1209 = vadd.f32 0.0, %v1208
        %v1210 = vpop.f32.mrf.mxu0
        %v1211 = vadd.f32 0.0, %v1210
        %1212 = vmatmul.bf16.gmra.mxu0 %v1048
        %v1213 = vpop.f32.mrf.mxu0
        %v1214 = vadd.f32 0.0, %v1213
        %v1215 = vpop.f32.mrf.mxu0
        %v1216 = vadd.f32 0.0, %v1215
        %1217 = vmatmul.bf16.gmra.mxu0 %v1051
        %v1218 = vpop.f32.mrf.mxu0
        %v1219 = vadd.f32 0.0, %v1218
        %v1220 = vpop.f32.mrf.mxu0
        %v1221 = vadd.f32 0.0, %v1220
        %1222 = vmatmul.bf16.gmra.mxu0 %v1054
        %v1223 = vpop.f32.mrf.mxu0
        %v1224 = vadd.f32 0.0, %v1223
        %v1225 = vpop.f32.mrf.mxu0
        %v1226 = vadd.f32 0.0, %v1225
        %1227 = vmatmul.bf16.gmra.mxu0 %v1057
        %v1228 = vpop.f32.mrf.mxu0
        %v1229 = vadd.f32 0.0, %v1228
        %v1230 = vpop.f32.mrf.mxu0
        %v1231 = vadd.f32 0.0, %v1230
        %1232 = vmatmul.bf16.gmra.mxu0 %v1060
        %v1233 = vpop.f32.mrf.mxu0
        %v1234 = vadd.f32 0.0, %v1233
        %v1235 = vpop.f32.mrf.mxu0
        %v1236 = vadd.f32 0.0, %v1235
        %1237 = vmatmul.bf16.gmra.mxu0 %v1063
        %v1238 = vpop.f32.mrf.mxu0
        %v1239 = vadd.f32 0.0, %v1238
        %v1240 = vpop.f32.mrf.mxu0
        %v1241 = vadd.f32 0.0, %v1240
        %1242 = vdwg.mxu0
        %v1245 = vunpack.c.l.b16 %v690
        %v1246 = vunpack.c.h.b16 %v690
        %v1247 = vunpack.c.l.b16 %v691
        %v1248 = vunpack.c.h.b16 %v691
        %v1249 = vpack.c.b16 %v1247, %v1245
        %v1250 = vpack.c.b16 %v1248, %v1246
        %1253 = vxpose.binary.xlu0.c.b16.start [1/16] %v1250, %v1249, 128
        %1254 = vxpose.binary.xlu0.c.b16.cont [2/16] 0, 0, 128
        %1255 = vxpose.binary.xlu0.c.b16.cont [3/16] 0, 0, 128
        %1256 = vxpose.binary.xlu0.c.b16.cont [4/16] 0, 0, 128
        %1257 = vxpose.binary.xlu0.c.b16.cont [5/16] 0, 0, 128
        %1258 = vxpose.binary.xlu0.c.b16.cont [6/16] 0, 0, 128
        %1259 = vxpose.binary.xlu0.c.b16.cont [7/16] 0, 0, 128
        %1260 = vxpose.binary.xlu0.c.b16.end [8/16] 0, 0, 128
        %v1261 = vpop.trf.xlu0
        %v1262 = vpop.trf.xlu0
        %v1263 = vpop.trf.xlu0
        %v1264 = vpop.trf.xlu0
        %v1265 = vpop.trf.xlu0
        %v1266 = vpop.trf.xlu0
        %v1267 = vpop.trf.xlu0
        %v1268 = vpop.trf.xlu0
        %v1269 = vpop.trf.xlu0
        %v1270 = vpop.trf.xlu0
        %v1271 = vpop.trf.xlu0
        %v1272 = vpop.trf.xlu0
        %v1273 = vpop.trf.xlu0
        %v1274 = vpop.trf.xlu0
        %v1275 = vpop.trf.xlu0
        %v1276 = vpop.trf.xlu0
        %v1279 = vunpack.c.l.b16 %v650
        %v1280 = vunpack.c.h.b16 %v650
        %v1281 = vunpack.c.l.b16 %v651
        %v1282 = vunpack.c.h.b16 %v651
        %v1283 = vpack.c.b16 %v1281, %v1279
        %v1284 = vpack.c.b16 %v1282, %v1280
        %v1288 = vsel %vm746, %v1261, 0
        %v1291 = vsel %vm746, %v1263, 0
        %v1294 = vsel %vm746, %v1265, 0
        %v1297 = vsel %vm746, %v1267, 0
        %v1300 = vsel %vm746, %v1269, 0
        %v1303 = vsel %vm746, %v1271, 0
        %v1306 = vsel %vm746, %v1273, 0
        %v1309 = vsel %vm746, %v1275, 0
        %v1312 = vsel %vm746, %v1262, 0
        %v1315 = vsel %vm746, %v1264, 0
        %v1318 = vsel %vm746, %v1266, 0
        %v1321 = vsel %vm746, %v1268, 0
        %v1324 = vsel %vm746, %v1270, 0
        %v1327 = vsel %vm746, %v1272, 0
        %v1330 = vsel %vm746, %v1274, 0
        %v1333 = vsel %vm746, %v1276, 0
        %1335 = vmatpush.bf16.msra.mxu0 0
        %1336 = vmatpush.bf16.msra.mxu0 0
        %1337 = vmatpush.bf16.msra.mxu0 0
        %1338 = vmatpush.bf16.msra.mxu0 0
        %1339 = vmatpush.bf16.msra.mxu0 0
        %1340 = vmatpush.bf16.msra.mxu0 0
        %1341 = vmatpush.bf16.msra.mxu0 0
        %1342 = vmatpush.bf16.msra.mxu0 %v1283
        %1343 = vmatmul.bf16.gmra.mxu0 %v1288
        %v1344 = vpop.f32.mrf.mxu0
        %v1345 = vadd.f32 0.0, %v1344
        %v1346 = vpop.f32.mrf.mxu0
        %v1347 = vadd.f32 0.0, %v1346
        %1348 = vmatmul.bf16.gmra.mxu0 %v1291
        %v1349 = vpop.f32.mrf.mxu0
        %v1350 = vadd.f32 0.0, %v1349
        %v1351 = vpop.f32.mrf.mxu0
        %v1352 = vadd.f32 0.0, %v1351
        %1353 = vmatmul.bf16.gmra.mxu0 %v1294
        %v1354 = vpop.f32.mrf.mxu0
        %v1355 = vadd.f32 0.0, %v1354
        %v1356 = vpop.f32.mrf.mxu0
        %v1357 = vadd.f32 0.0, %v1356
        %1358 = vmatmul.bf16.gmra.mxu0 %v1297
        %v1359 = vpop.f32.mrf.mxu0
        %v1360 = vadd.f32 0.0, %v1359
        %v1361 = vpop.f32.mrf.mxu0
        %v1362 = vadd.f32 0.0, %v1361
        %1363 = vmatmul.bf16.gmra.mxu0 %v1300
        %v1364 = vpop.f32.mrf.mxu0
        %v1365 = vadd.f32 0.0, %v1364
        %v1366 = vpop.f32.mrf.mxu0
        %v1367 = vadd.f32 0.0, %v1366
        %1368 = vmatmul.bf16.gmra.mxu0 %v1303
        %v1369 = vpop.f32.mrf.mxu0
        %v1370 = vadd.f32 0.0, %v1369
        %v1371 = vpop.f32.mrf.mxu0
        %v1372 = vadd.f32 0.0, %v1371
        %1373 = vmatmul.bf16.gmra.mxu0 %v1306
        %v1374 = vpop.f32.mrf.mxu0
        %v1375 = vadd.f32 0.0, %v1374
        %v1376 = vpop.f32.mrf.mxu0
        %v1377 = vadd.f32 0.0, %v1376
        %1378 = vmatmul.bf16.gmra.mxu0 %v1309
        %v1379 = vpop.f32.mrf.mxu0
        %v1380 = vadd.f32 0.0, %v1379
        %v1381 = vpop.f32.mrf.mxu0
        %v1382 = vadd.f32 0.0, %v1381
        %1383 = vmatmul.bf16.gmra.mxu0 %v1312
        %v1384 = vpop.f32.mrf.mxu0
        %v1385 = vadd.f32 0.0, %v1384
        %v1386 = vpop.f32.mrf.mxu0
        %v1387 = vadd.f32 0.0, %v1386
        %1388 = vmatmul.bf16.gmra.mxu0 %v1315
        %v1389 = vpop.f32.mrf.mxu0
        %v1390 = vadd.f32 0.0, %v1389
        %v1391 = vpop.f32.mrf.mxu0
        %v1392 = vadd.f32 0.0, %v1391
        %1393 = vmatmul.bf16.gmra.mxu0 %v1318
        %v1394 = vpop.f32.mrf.mxu0
        %v1395 = vadd.f32 0.0, %v1394
        %v1396 = vpop.f32.mrf.mxu0
        %v1397 = vadd.f32 0.0, %v1396
        %1398 = vmatmul.bf16.gmra.mxu0 %v1321
        %v1399 = vpop.f32.mrf.mxu0
        %v1400 = vadd.f32 0.0, %v1399
        %v1401 = vpop.f32.mrf.mxu0
        %v1402 = vadd.f32 0.0, %v1401
        %1403 = vmatmul.bf16.gmra.mxu0 %v1324
        %v1404 = vpop.f32.mrf.mxu0
        %v1405 = vadd.f32 0.0, %v1404
        %v1406 = vpop.f32.mrf.mxu0
        %v1407 = vadd.f32 0.0, %v1406
        %1408 = vmatmul.bf16.gmra.mxu0 %v1327
        %v1409 = vpop.f32.mrf.mxu0
        %v1410 = vadd.f32 0.0, %v1409
        %v1411 = vpop.f32.mrf.mxu0
        %v1412 = vadd.f32 0.0, %v1411
        %1413 = vmatmul.bf16.gmra.mxu0 %v1330
        %v1414 = vpop.f32.mrf.mxu0
        %v1415 = vadd.f32 0.0, %v1414
        %v1416 = vpop.f32.mrf.mxu0
        %v1417 = vadd.f32 0.0, %v1416
        %1418 = vmatmul.bf16.gmra.mxu0 %v1333
        %v1419 = vpop.f32.mrf.mxu0
        %v1420 = vadd.f32 0.0, %v1419
        %v1421 = vpop.f32.mrf.mxu0
        %v1422 = vadd.f32 0.0, %v1421
        %1423 = vdwg.mxu0
        %1424 = vmatpush.bf16.msra.mxu0 0
        %1425 = vmatpush.bf16.msra.mxu0 0
        %1426 = vmatpush.bf16.msra.mxu0 0
        %1427 = vmatpush.bf16.msra.mxu0 0
        %1428 = vmatpush.bf16.msra.mxu0 0
        %1429 = vmatpush.bf16.msra.mxu0 0
        %1430 = vmatpush.bf16.msra.mxu0 0
        %1431 = vmatpush.bf16.msra.mxu0 %v1284
        %1432 = vmatmul.bf16.gmra.mxu0 %v1288
        %v1433 = vpop.f32.mrf.mxu0
        %v1434 = vadd.f32 0.0, %v1433
        %v1435 = vpop.f32.mrf.mxu0
        %v1436 = vadd.f32 0.0, %v1435
        %1437 = vmatmul.bf16.gmra.mxu0 %v1291
        %v1438 = vpop.f32.mrf.mxu0
        %v1439 = vadd.f32 0.0, %v1438
        %v1440 = vpop.f32.mrf.mxu0
        %v1441 = vadd.f32 0.0, %v1440
        %1442 = vmatmul.bf16.gmra.mxu0 %v1294
        %v1443 = vpop.f32.mrf.mxu0
        %v1444 = vadd.f32 0.0, %v1443
        %v1445 = vpop.f32.mrf.mxu0
        %v1446 = vadd.f32 0.0, %v1445
        %1447 = vmatmul.bf16.gmra.mxu0 %v1297
        %v1448 = vpop.f32.mrf.mxu0
        %v1449 = vadd.f32 0.0, %v1448
        %v1450 = vpop.f32.mrf.mxu0
        %v1451 = vadd.f32 0.0, %v1450
        %1452 = vmatmul.bf16.gmra.mxu0 %v1300
        %v1453 = vpop.f32.mrf.mxu0
        %v1454 = vadd.f32 0.0, %v1453
        %v1455 = vpop.f32.mrf.mxu0
        %v1456 = vadd.f32 0.0, %v1455
        %1457 = vmatmul.bf16.gmra.mxu0 %v1303
        %v1458 = vpop.f32.mrf.mxu0
        %v1459 = vadd.f32 0.0, %v1458
        %v1460 = vpop.f32.mrf.mxu0
        %v1461 = vadd.f32 0.0, %v1460
        %1462 = vmatmul.bf16.gmra.mxu0 %v1306
        %v1463 = vpop.f32.mrf.mxu0
        %v1464 = vadd.f32 0.0, %v1463
        %v1465 = vpop.f32.mrf.mxu0
        %v1466 = vadd.f32 0.0, %v1465
        %1467 = vmatmul.bf16.gmra.mxu0 %v1309
        %v1468 = vpop.f32.mrf.mxu0
        %v1469 = vadd.f32 0.0, %v1468
        %v1470 = vpop.f32.mrf.mxu0
        %v1471 = vadd.f32 0.0, %v1470
        %1472 = vmatmul.bf16.gmra.mxu0 %v1312
        %v1473 = vpop.f32.mrf.mxu0
        %v1474 = vadd.f32 0.0, %v1473
        %v1475 = vpop.f32.mrf.mxu0
        %v1476 = vadd.f32 0.0, %v1475
        %1477 = vmatmul.bf16.gmra.mxu0 %v1315
        %v1478 = vpop.f32.mrf.mxu0
        %v1479 = vadd.f32 0.0, %v1478
        %v1480 = vpop.f32.mrf.mxu0
        %v1481 = vadd.f32 0.0, %v1480
        %1482 = vmatmul.bf16.gmra.mxu0 %v1318
        %v1483 = vpop.f32.mrf.mxu0
        %v1484 = vadd.f32 0.0, %v1483
        %v1485 = vpop.f32.mrf.mxu0
        %v1486 = vadd.f32 0.0, %v1485
        %1487 = vmatmul.bf16.gmra.mxu0 %v1321
        %v1488 = vpop.f32.mrf.mxu0
        %v1489 = vadd.f32 0.0, %v1488
        %v1490 = vpop.f32.mrf.mxu0
        %v1491 = vadd.f32 0.0, %v1490
        %1492 = vmatmul.bf16.gmra.mxu0 %v1324
        %v1493 = vpop.f32.mrf.mxu0
        %v1494 = vadd.f32 0.0, %v1493
        %v1495 = vpop.f32.mrf.mxu0
        %v1496 = vadd.f32 0.0, %v1495
        %1497 = vmatmul.bf16.gmra.mxu0 %v1327
        %v1498 = vpop.f32.mrf.mxu0
        %v1499 = vadd.f32 0.0, %v1498
        %v1500 = vpop.f32.mrf.mxu0
        %v1501 = vadd.f32 0.0, %v1500
        %1502 = vmatmul.bf16.gmra.mxu0 %v1330
        %v1503 = vpop.f32.mrf.mxu0
        %v1504 = vadd.f32 0.0, %v1503
        %v1505 = vpop.f32.mrf.mxu0
        %v1506 = vadd.f32 0.0, %v1505
        %1507 = vmatmul.bf16.gmra.mxu0 %v1333
        %v1508 = vpop.f32.mrf.mxu0
        %v1509 = vadd.f32 0.0, %v1508
        %v1510 = vpop.f32.mrf.mxu0
        %v1511 = vadd.f32 0.0, %v1510
        %1512 = vdwg.mxu0
        %v1515 = vunpack.c.l.b16 %v692
        %v1516 = vunpack.c.h.b16 %v692
        %v1517 = vunpack.c.l.b16 %v693
        %v1518 = vunpack.c.h.b16 %v693
        %v1519 = vpack.c.b16 %v1517, %v1515
        %v1520 = vpack.c.b16 %v1518, %v1516
        %1523 = vxpose.binary.xlu0.c.b16.start [1/16] %v1520, %v1519, 128
        %1524 = vxpose.binary.xlu0.c.b16.cont [2/16] 0, 0, 128
        %1525 = vxpose.binary.xlu0.c.b16.cont [3/16] 0, 0, 128
        %1526 = vxpose.binary.xlu0.c.b16.cont [4/16] 0, 0, 128
        %1527 = vxpose.binary.xlu0.c.b16.cont [5/16] 0, 0, 128
        %1528 = vxpose.binary.xlu0.c.b16.cont [6/16] 0, 0, 128
        %1529 = vxpose.binary.xlu0.c.b16.cont [7/16] 0, 0, 128
        %1530 = vxpose.binary.xlu0.c.b16.end [8/16] 0, 0, 128
        %v1531 = vpop.trf.xlu0
        %v1532 = vpop.trf.xlu0
        %v1533 = vpop.trf.xlu0
        %v1534 = vpop.trf.xlu0
        %v1535 = vpop.trf.xlu0
        %v1536 = vpop.trf.xlu0
        %v1537 = vpop.trf.xlu0
        %v1538 = vpop.trf.xlu0
        %v1539 = vpop.trf.xlu0
        %v1540 = vpop.trf.xlu0
        %v1541 = vpop.trf.xlu0
        %v1542 = vpop.trf.xlu0
        %v1543 = vpop.trf.xlu0
        %v1544 = vpop.trf.xlu0
        %v1545 = vpop.trf.xlu0
        %v1546 = vpop.trf.xlu0
        %v1549 = vunpack.c.l.b16 %v652
        %v1550 = vunpack.c.h.b16 %v652
        %v1551 = vunpack.c.l.b16 %v653
        %v1552 = vunpack.c.h.b16 %v653
        %v1553 = vpack.c.b16 %v1551, %v1549
        %v1554 = vpack.c.b16 %v1552, %v1550
        %v1558 = vsel %vm746, %v1531, 0
        %v1561 = vsel %vm746, %v1533, 0
        %v1564 = vsel %vm746, %v1535, 0
        %v1567 = vsel %vm746, %v1537, 0
        %v1570 = vsel %vm746, %v1539, 0
        %v1573 = vsel %vm746, %v1541, 0
        %v1576 = vsel %vm746, %v1543, 0
        %v1579 = vsel %vm746, %v1545, 0
        %v1582 = vsel %vm746, %v1532, 0
        %v1585 = vsel %vm746, %v1534, 0
        %v1588 = vsel %vm746, %v1536, 0
        %v1591 = vsel %vm746, %v1538, 0
        %v1594 = vsel %vm746, %v1540, 0
        %v1597 = vsel %vm746, %v1542, 0
        %v1600 = vsel %vm746, %v1544, 0
        %v1603 = vsel %vm746, %v1546, 0
        %1605 = vmatpush.bf16.msra.mxu0 0
        %1606 = vmatpush.bf16.msra.mxu0 0
        %1607 = vmatpush.bf16.msra.mxu0 0
        %1608 = vmatpush.bf16.msra.mxu0 0
        %1609 = vmatpush.bf16.msra.mxu0 0
        %1610 = vmatpush.bf16.msra.mxu0 0
        %1611 = vmatpush.bf16.msra.mxu0 0
        %1612 = vmatpush.bf16.msra.mxu0 %v1553
        %1613 = vmatmul.bf16.gmra.mxu0 %v1558
        %v1614 = vpop.f32.mrf.mxu0
        %v1615 = vadd.f32 0.0, %v1614
        %v1616 = vpop.f32.mrf.mxu0
        %v1617 = vadd.f32 0.0, %v1616
        %1618 = vmatmul.bf16.gmra.mxu0 %v1561
        %v1619 = vpop.f32.mrf.mxu0
        %v1620 = vadd.f32 0.0, %v1619
        %v1621 = vpop.f32.mrf.mxu0
        %v1622 = vadd.f32 0.0, %v1621
        %1623 = vmatmul.bf16.gmra.mxu0 %v1564
        %v1624 = vpop.f32.mrf.mxu0
        %v1625 = vadd.f32 0.0, %v1624
        %v1626 = vpop.f32.mrf.mxu0
        %v1627 = vadd.f32 0.0, %v1626
        %1628 = vmatmul.bf16.gmra.mxu0 %v1567
        %v1629 = vpop.f32.mrf.mxu0
        %v1630 = vadd.f32 0.0, %v1629
        %v1631 = vpop.f32.mrf.mxu0
        %v1632 = vadd.f32 0.0, %v1631
        %1633 = vmatmul.bf16.gmra.mxu0 %v1570
        %v1634 = vpop.f32.mrf.mxu0
        %v1635 = vadd.f32 0.0, %v1634
        %v1636 = vpop.f32.mrf.mxu0
        %v1637 = vadd.f32 0.0, %v1636
        %1638 = vmatmul.bf16.gmra.mxu0 %v1573
        %v1639 = vpop.f32.mrf.mxu0
        %v1640 = vadd.f32 0.0, %v1639
        %v1641 = vpop.f32.mrf.mxu0
        %v1642 = vadd.f32 0.0, %v1641
        %1643 = vmatmul.bf16.gmra.mxu0 %v1576
        %v1644 = vpop.f32.mrf.mxu0
        %v1645 = vadd.f32 0.0, %v1644
        %v1646 = vpop.f32.mrf.mxu0
        %v1647 = vadd.f32 0.0, %v1646
        %1648 = vmatmul.bf16.gmra.mxu0 %v1579
        %v1649 = vpop.f32.mrf.mxu0
        %v1650 = vadd.f32 0.0, %v1649
        %v1651 = vpop.f32.mrf.mxu0
        %v1652 = vadd.f32 0.0, %v1651
        %1653 = vmatmul.bf16.gmra.mxu0 %v1582
        %v1654 = vpop.f32.mrf.mxu0
        %v1655 = vadd.f32 0.0, %v1654
        %v1656 = vpop.f32.mrf.mxu0
        %v1657 = vadd.f32 0.0, %v1656
        %1658 = vmatmul.bf16.gmra.mxu0 %v1585
        %v1659 = vpop.f32.mrf.mxu0
        %v1660 = vadd.f32 0.0, %v1659
        %v1661 = vpop.f32.mrf.mxu0
        %v1662 = vadd.f32 0.0, %v1661
        %1663 = vmatmul.bf16.gmra.mxu0 %v1588
        %v1664 = vpop.f32.mrf.mxu0
        %v1665 = vadd.f32 0.0, %v1664
        %v1666 = vpop.f32.mrf.mxu0
        %v1667 = vadd.f32 0.0, %v1666
        %1668 = vmatmul.bf16.gmra.mxu0 %v1591
        %v1669 = vpop.f32.mrf.mxu0
        %v1670 = vadd.f32 0.0, %v1669
        %v1671 = vpop.f32.mrf.mxu0
        %v1672 = vadd.f32 0.0, %v1671
        %1673 = vmatmul.bf16.gmra.mxu0 %v1594
        %v1674 = vpop.f32.mrf.mxu0
        %v1675 = vadd.f32 0.0, %v1674
        %v1676 = vpop.f32.mrf.mxu0
        %v1677 = vadd.f32 0.0, %v1676
        %1678 = vmatmul.bf16.gmra.mxu0 %v1597
        %v1679 = vpop.f32.mrf.mxu0
        %v1680 = vadd.f32 0.0, %v1679
        %v1681 = vpop.f32.mrf.mxu0
        %v1682 = vadd.f32 0.0, %v1681
        %1683 = vmatmul.bf16.gmra.mxu0 %v1600
        %v1684 = vpop.f32.mrf.mxu0
        %v1685 = vadd.f32 0.0, %v1684
        %v1686 = vpop.f32.mrf.mxu0
        %v1687 = vadd.f32 0.0, %v1686
        %1688 = vmatmul.bf16.gmra.mxu0 %v1603
        %v1689 = vpop.f32.mrf.mxu0
        %v1690 = vadd.f32 0.0, %v1689
        %v1691 = vpop.f32.mrf.mxu0
        %v1692 = vadd.f32 0.0, %v1691
        %1693 = vdwg.mxu0
        %1694 = vmatpush.bf16.msra.mxu0 0
        %1695 = vmatpush.bf16.msra.mxu0 0
        %1696 = vmatpush.bf16.msra.mxu0 0
        %1697 = vmatpush.bf16.msra.mxu0 0
        %1698 = vmatpush.bf16.msra.mxu0 0
        %1699 = vmatpush.bf16.msra.mxu0 0
        %1700 = vmatpush.bf16.msra.mxu0 0
        %1701 = vmatpush.bf16.msra.mxu0 %v1554
        %1702 = vmatmul.bf16.gmra.mxu0 %v1558
        %v1703 = vpop.f32.mrf.mxu0
        %v1704 = vadd.f32 0.0, %v1703
        %v1705 = vpop.f32.mrf.mxu0
        %v1706 = vadd.f32 0.0, %v1705
        %1707 = vmatmul.bf16.gmra.mxu0 %v1561
        %v1708 = vpop.f32.mrf.mxu0
        %v1709 = vadd.f32 0.0, %v1708
        %v1710 = vpop.f32.mrf.mxu0
        %v1711 = vadd.f32 0.0, %v1710
        %1712 = vmatmul.bf16.gmra.mxu0 %v1564
        %v1713 = vpop.f32.mrf.mxu0
        %v1714 = vadd.f32 0.0, %v1713
        %v1715 = vpop.f32.mrf.mxu0
        %v1716 = vadd.f32 0.0, %v1715
        %1717 = vmatmul.bf16.gmra.mxu0 %v1567
        %v1718 = vpop.f32.mrf.mxu0
        %v1719 = vadd.f32 0.0, %v1718
        %v1720 = vpop.f32.mrf.mxu0
        %v1721 = vadd.f32 0.0, %v1720
        %1722 = vmatmul.bf16.gmra.mxu0 %v1570
        %v1723 = vpop.f32.mrf.mxu0
        %v1724 = vadd.f32 0.0, %v1723
        %v1725 = vpop.f32.mrf.mxu0
        %v1726 = vadd.f32 0.0, %v1725
        %1727 = vmatmul.bf16.gmra.mxu0 %v1573
        %v1728 = vpop.f32.mrf.mxu0
        %v1729 = vadd.f32 0.0, %v1728
        %v1730 = vpop.f32.mrf.mxu0
        %v1731 = vadd.f32 0.0, %v1730
        %1732 = vmatmul.bf16.gmra.mxu0 %v1576
        %v1733 = vpop.f32.mrf.mxu0
        %v1734 = vadd.f32 0.0, %v1733
        %v1735 = vpop.f32.mrf.mxu0
        %v1736 = vadd.f32 0.0, %v1735
        %1737 = vmatmul.bf16.gmra.mxu0 %v1579
        %v1738 = vpop.f32.mrf.mxu0
        %v1739 = vadd.f32 0.0, %v1738
        %v1740 = vpop.f32.mrf.mxu0
        %v1741 = vadd.f32 0.0, %v1740
        %1742 = vmatmul.bf16.gmra.mxu0 %v1582
        %v1743 = vpop.f32.mrf.mxu0
        %v1744 = vadd.f32 0.0, %v1743
        %v1745 = vpop.f32.mrf.mxu0
        %v1746 = vadd.f32 0.0, %v1745
        %1747 = vmatmul.bf16.gmra.mxu0 %v1585
        %v1748 = vpop.f32.mrf.mxu0
        %v1749 = vadd.f32 0.0, %v1748
        %v1750 = vpop.f32.mrf.mxu0
        %v1751 = vadd.f32 0.0, %v1750
        %1752 = vmatmul.bf16.gmra.mxu0 %v1588
        %v1753 = vpop.f32.mrf.mxu0
        %v1754 = vadd.f32 0.0, %v1753
        %v1755 = vpop.f32.mrf.mxu0
        %v1756 = vadd.f32 0.0, %v1755
        %1757 = vmatmul.bf16.gmra.mxu0 %v1591
        %v1758 = vpop.f32.mrf.mxu0
        %v1759 = vadd.f32 0.0, %v1758
        %v1760 = vpop.f32.mrf.mxu0
        %v1761 = vadd.f32 0.0, %v1760
        %1762 = vmatmul.bf16.gmra.mxu0 %v1594
        %v1763 = vpop.f32.mrf.mxu0
        %v1764 = vadd.f32 0.0, %v1763
        %v1765 = vpop.f32.mrf.mxu0
        %v1766 = vadd.f32 0.0, %v1765
        %1767 = vmatmul.bf16.gmra.mxu0 %v1597
        %v1768 = vpop.f32.mrf.mxu0
        %v1769 = vadd.f32 0.0, %v1768
        %v1770 = vpop.f32.mrf.mxu0
        %v1771 = vadd.f32 0.0, %v1770
        %1772 = vmatmul.bf16.gmra.mxu0 %v1600
        %v1773 = vpop.f32.mrf.mxu0
        %v1774 = vadd.f32 0.0, %v1773
        %v1775 = vpop.f32.mrf.mxu0
        %v1776 = vadd.f32 0.0, %v1775
        %1777 = vmatmul.bf16.gmra.mxu0 %v1603
        %v1778 = vpop.f32.mrf.mxu0
        %v1779 = vadd.f32 0.0, %v1778
        %v1780 = vpop.f32.mrf.mxu0
        %v1781 = vadd.f32 0.0, %v1780
        %1782 = vdwg.mxu0
        %v1783 = vmax.f32 %v805, %v894
        %1784 = vmax.xlane.f32.xlu0 %v1783
        %v1785 = vpop.xlane.xlu0 %1784
        %v1786 = vmax.f32 %v807, %v896
        %1787 = vmax.xlane.f32.xlu0 %v1786
        %v1788 = vpop.xlane.xlu0 %1787
        %v1789 = vmax.f32 %v810, %v899
        %1790 = vmax.xlane.f32.xlu0 %v1789
        %v1791 = vpop.xlane.xlu0 %1790
        %v1792 = vmax.f32 %v812, %v901
        %1793 = vmax.xlane.f32.xlu0 %v1792
        %v1794 = vpop.xlane.xlu0 %1793
        %v1795 = vmax.f32 %v815, %v904
        %1796 = vmax.xlane.f32.xlu0 %v1795
        %v1797 = vpop.xlane.xlu0 %1796
        %v1798 = vmax.f32 %v817, %v906
        %1799 = vmax.xlane.f32.xlu0 %v1798
        %v1800 = vpop.xlane.xlu0 %1799
        %v1801 = vmax.f32 %v820, %v909
        %1802 = vmax.xlane.f32.xlu0 %v1801
        %v1803 = vpop.xlane.xlu0 %1802
        %v1804 = vmax.f32 %v822, %v911
        %1805 = vmax.xlane.f32.xlu0 %v1804
        %v1806 = vpop.xlane.xlu0 %1805
        %v1807 = vmax.f32 %v825, %v914
        %1808 = vmax.xlane.f32.xlu0 %v1807
        %v1809 = vpop.xlane.xlu0 %1808
        %v1810 = vmax.f32 %v827, %v916
        %1811 = vmax.xlane.f32.xlu0 %v1810
        %v1812 = vpop.xlane.xlu0 %1811
        %v1813 = vmax.f32 %v830, %v919
        %1814 = vmax.xlane.f32.xlu0 %v1813
        %v1815 = vpop.xlane.xlu0 %1814
        %v1816 = vmax.f32 %v832, %v921
        %1817 = vmax.xlane.f32.xlu0 %v1816
        %v1818 = vpop.xlane.xlu0 %1817
        %v1819 = vmax.f32 %v835, %v924
        %1820 = vmax.xlane.f32.xlu0 %v1819
        %v1821 = vpop.xlane.xlu0 %1820
        %v1822 = vmax.f32 %v837, %v926
        %1823 = vmax.xlane.f32.xlu0 %v1822
        %v1824 = vpop.xlane.xlu0 %1823
        %v1825 = vmax.f32 %v840, %v929
        %1826 = vmax.xlane.f32.xlu0 %v1825
        %v1827 = vpop.xlane.xlu0 %1826
        %v1828 = vmax.f32 %v842, %v931
        %1829 = vmax.xlane.f32.xlu0 %v1828
        %v1830 = vpop.xlane.xlu0 %1829
        %v1831 = vmax.f32 %v845, %v934
        %1832 = vmax.xlane.f32.xlu0 %v1831
        %v1833 = vpop.xlane.xlu0 %1832
        %v1834 = vmax.f32 %v847, %v936
        %1835 = vmax.xlane.f32.xlu0 %v1834
        %v1836 = vpop.xlane.xlu0 %1835
        %v1837 = vmax.f32 %v850, %v939
        %1838 = vmax.xlane.f32.xlu0 %v1837
        %v1839 = vpop.xlane.xlu0 %1838
        %v1840 = vmax.f32 %v852, %v941
        %1841 = vmax.xlane.f32.xlu0 %v1840
        %v1842 = vpop.xlane.xlu0 %1841
        %v1843 = vmax.f32 %v855, %v944
        %1844 = vmax.xlane.f32.xlu0 %v1843
        %v1845 = vpop.xlane.xlu0 %1844
        %v1846 = vmax.f32 %v857, %v946
        %1847 = vmax.xlane.f32.xlu0 %v1846
        %v1848 = vpop.xlane.xlu0 %1847
        %v1849 = vmax.f32 %v860, %v949
        %1850 = vmax.xlane.f32.xlu0 %v1849
        %v1851 = vpop.xlane.xlu0 %1850
        %v1852 = vmax.f32 %v862, %v951
        %1853 = vmax.xlane.f32.xlu0 %v1852
        %v1854 = vpop.xlane.xlu0 %1853
        %v1855 = vmax.f32 %v865, %v954
        %1856 = vmax.xlane.f32.xlu0 %v1855
        %v1857 = vpop.xlane.xlu0 %1856
        %v1858 = vmax.f32 %v867, %v956
        %1859 = vmax.xlane.f32.xlu0 %v1858
        %v1860 = vpop.xlane.xlu0 %1859
        %v1861 = vmax.f32 %v870, %v959
        %1862 = vmax.xlane.f32.xlu0 %v1861
        %v1863 = vpop.xlane.xlu0 %1862
        %v1864 = vmax.f32 %v872, %v961
        %1865 = vmax.xlane.f32.xlu0 %v1864
        %v1866 = vpop.xlane.xlu0 %1865
        %v1867 = vmax.f32 %v875, %v964
        %1868 = vmax.xlane.f32.xlu0 %v1867
        %v1869 = vpop.xlane.xlu0 %1868
        %v1870 = vmax.f32 %v877, %v966
        %1871 = vmax.xlane.f32.xlu0 %v1870
        %v1872 = vpop.xlane.xlu0 %1871
        %v1873 = vmax.f32 %v880, %v969
        %1874 = vmax.xlane.f32.xlu0 %v1873
        %v1875 = vpop.xlane.xlu0 %1874
        %v1876 = vmax.f32 %v882, %v971
        %1877 = vmax.xlane.f32.xlu0 %v1876
        %v1878 = vpop.xlane.xlu0 %1877
        %v1879 = vmax.f32 %v1075, %v1164
        %1880 = vmax.xlane.f32.xlu0 %v1879
        %v1881 = vpop.xlane.xlu0 %1880
        %v1882 = vmax.f32 %v1077, %v1166
        %1883 = vmax.xlane.f32.xlu0 %v1882
        %v1884 = vpop.xlane.xlu0 %1883
        %v1885 = vmax.f32 %v1080, %v1169
        %1886 = vmax.xlane.f32.xlu0 %v1885
        %v1887 = vpop.xlane.xlu0 %1886
        %v1888 = vmax.f32 %v1082, %v1171
        %1889 = vmax.xlane.f32.xlu0 %v1888
        %v1890 = vpop.xlane.xlu0 %1889
        %v1891 = vmax.f32 %v1085, %v1174
        %1892 = vmax.xlane.f32.xlu0 %v1891
        %v1893 = vpop.xlane.xlu0 %1892
        %v1894 = vmax.f32 %v1087, %v1176
        %1895 = vmax.xlane.f32.xlu0 %v1894
        %v1896 = vpop.xlane.xlu0 %1895
        %v1897 = vmax.f32 %v1090, %v1179
        %1898 = vmax.xlane.f32.xlu0 %v1897
        %v1899 = vpop.xlane.xlu0 %1898
        %v1900 = vmax.f32 %v1092, %v1181
        %1901 = vmax.xlane.f32.xlu0 %v1900
        %v1902 = vpop.xlane.xlu0 %1901
        %v1903 = vmax.f32 %v1095, %v1184
        %1904 = vmax.xlane.f32.xlu0 %v1903
        %v1905 = vpop.xlane.xlu0 %1904
        %v1906 = vmax.f32 %v1097, %v1186
        %1907 = vmax.xlane.f32.xlu0 %v1906
        %v1908 = vpop.xlane.xlu0 %1907
        %v1909 = vmax.f32 %v1100, %v1189
        %1910 = vmax.xlane.f32.xlu0 %v1909
        %v1911 = vpop.xlane.xlu0 %1910
        %v1912 = vmax.f32 %v1102, %v1191
        %1913 = vmax.xlane.f32.xlu0 %v1912
        %v1914 = vpop.xlane.xlu0 %1913
        %v1915 = vmax.f32 %v1105, %v1194
        %1916 = vmax.xlane.f32.xlu0 %v1915
        %v1917 = vpop.xlane.xlu0 %1916
        %v1918 = vmax.f32 %v1107, %v1196
        %1919 = vmax.xlane.f32.xlu0 %v1918
        %v1920 = vpop.xlane.xlu0 %1919
        %v1921 = vmax.f32 %v1110, %v1199
        %1922 = vmax.xlane.f32.xlu0 %v1921
        %v1923 = vpop.xlane.xlu0 %1922
        %v1924 = vmax.f32 %v1112, %v1201
        %1925 = vmax.xlane.f32.xlu0 %v1924
        %v1926 = vpop.xlane.xlu0 %1925
        %v1927 = vmax.f32 %v1115, %v1204
        %1928 = vmax.xlane.f32.xlu0 %v1927
        %v1929 = vpop.xlane.xlu0 %1928
        %v1930 = vmax.f32 %v1117, %v1206
        %1931 = vmax.xlane.f32.xlu0 %v1930
        %v1932 = vpop.xlane.xlu0 %1931
        %v1933 = vmax.f32 %v1120, %v1209
        %1934 = vmax.xlane.f32.xlu0 %v1933
        %v1935 = vpop.xlane.xlu0 %1934
        %v1936 = vmax.f32 %v1122, %v1211
        %1937 = vmax.xlane.f32.xlu0 %v1936
        %v1938 = vpop.xlane.xlu0 %1937
        %v1939 = vmax.f32 %v1125, %v1214
        %1940 = vmax.xlane.f32.xlu0 %v1939
        %v1941 = vpop.xlane.xlu0 %1940
        %v1942 = vmax.f32 %v1127, %v1216
        %1943 = vmax.xlane.f32.xlu0 %v1942
        %v1944 = vpop.xlane.xlu0 %1943
        %v1945 = vmax.f32 %v1130, %v1219
        %1946 = vmax.xlane.f32.xlu0 %v1945
        %v1947 = vpop.xlane.xlu0 %1946
        %v1948 = vmax.f32 %v1132, %v1221
        %1949 = vmax.xlane.f32.xlu0 %v1948
        %v1950 = vpop.xlane.xlu0 %1949
        %v1951 = vmax.f32 %v1135, %v1224
        %1952 = vmax.xlane.f32.xlu0 %v1951
        %v1953 = vpop.xlane.xlu0 %1952
        %v1954 = vmax.f32 %v1137, %v1226
        %1955 = vmax.xlane.f32.xlu0 %v1954
        %v1956 = vpop.xlane.xlu0 %1955
        %v1957 = vmax.f32 %v1140, %v1229
        %1958 = vmax.xlane.f32.xlu0 %v1957
        %v1959 = vpop.xlane.xlu0 %1958
        %v1960 = vmax.f32 %v1142, %v1231
        %1961 = vmax.xlane.f32.xlu0 %v1960
        %v1962 = vpop.xlane.xlu0 %1961
        %v1963 = vmax.f32 %v1145, %v1234
        %1964 = vmax.xlane.f32.xlu0 %v1963
        %v1965 = vpop.xlane.xlu0 %1964
        %v1966 = vmax.f32 %v1147, %v1236
        %1967 = vmax.xlane.f32.xlu0 %v1966
        %v1968 = vpop.xlane.xlu0 %1967
        %v1969 = vmax.f32 %v1150, %v1239
        %1970 = vmax.xlane.f32.xlu0 %v1969
        %v1971 = vpop.xlane.xlu0 %1970
        %v1972 = vmax.f32 %v1152, %v1241
        %1973 = vmax.xlane.f32.xlu0 %v1972
        %v1974 = vpop.xlane.xlu0 %1973
        %v1975 = vmax.f32 %v1345, %v1434
        %1976 = vmax.xlane.f32.xlu0 %v1975
        %v1977 = vpop.xlane.xlu0 %1976
        %v1978 = vmax.f32 %v1347, %v1436
        %1979 = vmax.xlane.f32.xlu0 %v1978
        %v1980 = vpop.xlane.xlu0 %1979
        %v1981 = vmax.f32 %v1350, %v1439
        %1982 = vmax.xlane.f32.xlu0 %v1981
        %v1983 = vpop.xlane.xlu0 %1982
        %v1984 = vmax.f32 %v1352, %v1441
        %1985 = vmax.xlane.f32.xlu0 %v1984
        %v1986 = vpop.xlane.xlu0 %1985
        %v1987 = vmax.f32 %v1355, %v1444
        %1988 = vmax.xlane.f32.xlu0 %v1987
        %v1989 = vpop.xlane.xlu0 %1988
        %v1990 = vmax.f32 %v1357, %v1446
        %1991 = vmax.xlane.f32.xlu0 %v1990
        %v1992 = vpop.xlane.xlu0 %1991
        %v1993 = vmax.f32 %v1360, %v1449
        %1994 = vmax.xlane.f32.xlu0 %v1993
        %v1995 = vpop.xlane.xlu0 %1994
        %v1996 = vmax.f32 %v1362, %v1451
        %1997 = vmax.xlane.f32.xlu0 %v1996
        %v1998 = vpop.xlane.xlu0 %1997
        %v1999 = vmax.f32 %v1365, %v1454
        %2000 = vmax.xlane.f32.xlu0 %v1999
        %v2001 = vpop.xlane.xlu0 %2000
        %v2002 = vmax.f32 %v1367, %v1456
        %2003 = vmax.xlane.f32.xlu0 %v2002
        %v2004 = vpop.xlane.xlu0 %2003
        %v2005 = vmax.f32 %v1370, %v1459
        %2006 = vmax.xlane.f32.xlu0 %v2005
        %v2007 = vpop.xlane.xlu0 %2006
        %v2008 = vmax.f32 %v1372, %v1461
        %2009 = vmax.xlane.f32.xlu0 %v2008
        %v2010 = vpop.xlane.xlu0 %2009
        %v2011 = vmax.f32 %v1375, %v1464
        %2012 = vmax.xlane.f32.xlu0 %v2011
        %v2013 = vpop.xlane.xlu0 %2012
        %v2014 = vmax.f32 %v1377, %v1466
        %2015 = vmax.xlane.f32.xlu0 %v2014
        %v2016 = vpop.xlane.xlu0 %2015
        %v2017 = vmax.f32 %v1380, %v1469
        %2018 = vmax.xlane.f32.xlu0 %v2017
        %v2019 = vpop.xlane.xlu0 %2018
        %v2020 = vmax.f32 %v1382, %v1471
        %2021 = vmax.xlane.f32.xlu0 %v2020
        %v2022 = vpop.xlane.xlu0 %2021
        %v2023 = vmax.f32 %v1385, %v1474
        %2024 = vmax.xlane.f32.xlu0 %v2023
        %v2025 = vpop.xlane.xlu0 %2024
        %v2026 = vmax.f32 %v1387, %v1476
        %2027 = vmax.xlane.f32.xlu0 %v2026
        %v2028 = vpop.xlane.xlu0 %2027
        %v2029 = vmax.f32 %v1390, %v1479
        %2030 = vmax.xlane.f32.xlu0 %v2029
        %v2031 = vpop.xlane.xlu0 %2030
        %v2032 = vmax.f32 %v1392, %v1481
        %2033 = vmax.xlane.f32.xlu0 %v2032
        %v2034 = vpop.xlane.xlu0 %2033
        %v2035 = vmax.f32 %v1395, %v1484
        %2036 = vmax.xlane.f32.xlu0 %v2035
        %v2037 = vpop.xlane.xlu0 %2036
        %v2038 = vmax.f32 %v1397, %v1486
        %2039 = vmax.xlane.f32.xlu0 %v2038
        %v2040 = vpop.xlane.xlu0 %2039
        %v2041 = vmax.f32 %v1400, %v1489
        %2042 = vmax.xlane.f32.xlu0 %v2041
        %v2043 = vpop.xlane.xlu0 %2042
        %v2044 = vmax.f32 %v1402, %v1491
        %2045 = vmax.xlane.f32.xlu0 %v2044
        %v2046 = vpop.xlane.xlu0 %2045
        %v2047 = vmax.f32 %v1405, %v1494
        %2048 = vmax.xlane.f32.xlu0 %v2047
        %v2049 = vpop.xlane.xlu0 %2048
        %v2050 = vmax.f32 %v1407, %v1496
        %2051 = vmax.xlane.f32.xlu0 %v2050
        %v2052 = vpop.xlane.xlu0 %2051
        %v2053 = vmax.f32 %v1410, %v1499
        %2054 = vmax.xlane.f32.xlu0 %v2053
        %v2055 = vpop.xlane.xlu0 %2054
        %v2056 = vmax.f32 %v1412, %v1501
        %2057 = vmax.xlane.f32.xlu0 %v2056
        %v2058 = vpop.xlane.xlu0 %2057
        %v2059 = vmax.f32 %v1415, %v1504
        %2060 = vmax.xlane.f32.xlu0 %v2059
        %v2061 = vpop.xlane.xlu0 %2060
        %v2062 = vmax.f32 %v1417, %v1506
        %2063 = vmax.xlane.f32.xlu0 %v2062
        %v2064 = vpop.xlane.xlu0 %2063
        %v2065 = vmax.f32 %v1420, %v1509
        %2066 = vmax.xlane.f32.xlu0 %v2065
        %v2067 = vpop.xlane.xlu0 %2066
        %v2068 = vmax.f32 %v1422, %v1511
        %2069 = vmax.xlane.f32.xlu0 %v2068
        %v2070 = vpop.xlane.xlu0 %2069
        %v2071 = vmax.f32 %v1615, %v1704
        %2072 = vmax.xlane.f32.xlu0 %v2071
        %v2073 = vpop.xlane.xlu0 %2072
        %v2074 = vmax.f32 %v1617, %v1706
        %2075 = vmax.xlane.f32.xlu0 %v2074
        %v2076 = vpop.xlane.xlu0 %2075
        %v2077 = vmax.f32 %v1620, %v1709
        %2078 = vmax.xlane.f32.xlu0 %v2077
        %v2079 = vpop.xlane.xlu0 %2078
        %v2080 = vmax.f32 %v1622, %v1711
        %2081 = vmax.xlane.f32.xlu0 %v2080
        %v2082 = vpop.xlane.xlu0 %2081
        %v2083 = vmax.f32 %v1625, %v1714
        %2084 = vmax.xlane.f32.xlu0 %v2083
        %v2085 = vpop.xlane.xlu0 %2084
        %v2086 = vmax.f32 %v1627, %v1716
        %2087 = vmax.xlane.f32.xlu0 %v2086
        %v2088 = vpop.xlane.xlu0 %2087
        %v2089 = vmax.f32 %v1630, %v1719
        %2090 = vmax.xlane.f32.xlu0 %v2089
        %v2091 = vpop.xlane.xlu0 %2090
        %v2092 = vmax.f32 %v1632, %v1721
        %2093 = vmax.xlane.f32.xlu0 %v2092
        %v2094 = vpop.xlane.xlu0 %2093
        %v2095 = vmax.f32 %v1635, %v1724
        %2096 = vmax.xlane.f32.xlu0 %v2095
        %v2097 = vpop.xlane.xlu0 %2096
        %v2098 = vmax.f32 %v1637, %v1726
        %2099 = vmax.xlane.f32.xlu0 %v2098
        %v2100 = vpop.xlane.xlu0 %2099
        %v2101 = vmax.f32 %v1640, %v1729
        %2102 = vmax.xlane.f32.xlu0 %v2101
        %v2103 = vpop.xlane.xlu0 %2102
        %v2104 = vmax.f32 %v1642, %v1731
        %2105 = vmax.xlane.f32.xlu0 %v2104
        %v2106 = vpop.xlane.xlu0 %2105
        %v2107 = vmax.f32 %v1645, %v1734
        %2108 = vmax.xlane.f32.xlu0 %v2107
        %v2109 = vpop.xlane.xlu0 %2108
        %v2110 = vmax.f32 %v1647, %v1736
        %2111 = vmax.xlane.f32.xlu0 %v2110
        %v2112 = vpop.xlane.xlu0 %2111
        %v2113 = vmax.f32 %v1650, %v1739
        %2114 = vmax.xlane.f32.xlu0 %v2113
        %v2115 = vpop.xlane.xlu0 %2114
        %v2116 = vmax.f32 %v1652, %v1741
        %2117 = vmax.xlane.f32.xlu0 %v2116
        %v2118 = vpop.xlane.xlu0 %2117
        %v2119 = vmax.f32 %v1655, %v1744
        %2120 = vmax.xlane.f32.xlu0 %v2119
        %v2121 = vpop.xlane.xlu0 %2120
        %v2122 = vmax.f32 %v1657, %v1746
        %2123 = vmax.xlane.f32.xlu0 %v2122
        %v2124 = vpop.xlane.xlu0 %2123
        %v2125 = vmax.f32 %v1660, %v1749
        %2126 = vmax.xlane.f32.xlu0 %v2125
        %v2127 = vpop.xlane.xlu0 %2126
        %v2128 = vmax.f32 %v1662, %v1751
        %2129 = vmax.xlane.f32.xlu0 %v2128
        %v2130 = vpop.xlane.xlu0 %2129
        %v2131 = vmax.f32 %v1665, %v1754
        %2132 = vmax.xlane.f32.xlu0 %v2131
        %v2133 = vpop.xlane.xlu0 %2132
        %v2134 = vmax.f32 %v1667, %v1756
        %2135 = vmax.xlane.f32.xlu0 %v2134
        %v2136 = vpop.xlane.xlu0 %2135
        %v2137 = vmax.f32 %v1670, %v1759
        %2138 = vmax.xlane.f32.xlu0 %v2137
        %v2139 = vpop.xlane.xlu0 %2138
        %v2140 = vmax.f32 %v1672, %v1761
        %2141 = vmax.xlane.f32.xlu0 %v2140
        %v2142 = vpop.xlane.xlu0 %2141
        %v2143 = vmax.f32 %v1675, %v1764
        %2144 = vmax.xlane.f32.xlu0 %v2143
        %v2145 = vpop.xlane.xlu0 %2144
        %v2146 = vmax.f32 %v1677, %v1766
        %2147 = vmax.xlane.f32.xlu0 %v2146
        %v2148 = vpop.xlane.xlu0 %2147
        %v2149 = vmax.f32 %v1680, %v1769
        %2150 = vmax.xlane.f32.xlu0 %v2149
        %v2151 = vpop.xlane.xlu0 %2150
        %v2152 = vmax.f32 %v1682, %v1771
        %2153 = vmax.xlane.f32.xlu0 %v2152
        %v2154 = vpop.xlane.xlu0 %2153
        %v2155 = vmax.f32 %v1685, %v1774
        %2156 = vmax.xlane.f32.xlu0 %v2155
        %v2157 = vpop.xlane.xlu0 %2156
        %v2158 = vmax.f32 %v1687, %v1776
        %2159 = vmax.xlane.f32.xlu0 %v2158
        %v2160 = vpop.xlane.xlu0 %2159
        %v2161 = vmax.f32 %v1690, %v1779
        %2162 = vmax.xlane.f32.xlu0 %v2161
        %v2163 = vpop.xlane.xlu0 %2162
        %v2164 = vmax.f32 %v1692, %v1781
        %2165 = vmax.xlane.f32.xlu0 %v2164
        %v2166 = vpop.xlane.xlu0 %2165
        %v2167 = vsub.f32 %v805, %v1785
        %v2168 = vsub.f32 %v894, %v1785
        %v2169 = vsub.f32 %v807, %v1788
        %v2170 = vsub.f32 %v896, %v1788
        %v2171 = vsub.f32 %v810, %v1791
        %v2172 = vsub.f32 %v899, %v1791
        %v2173 = vsub.f32 %v812, %v1794
        %v2174 = vsub.f32 %v901, %v1794
        %v2175 = vsub.f32 %v815, %v1797
        %v2176 = vsub.f32 %v904, %v1797
        %v2177 = vsub.f32 %v817, %v1800
        %v2178 = vsub.f32 %v906, %v1800
        %v2179 = vsub.f32 %v820, %v1803
        %v2180 = vsub.f32 %v909, %v1803
        %v2181 = vsub.f32 %v822, %v1806
        %v2182 = vsub.f32 %v911, %v1806
        %v2183 = vsub.f32 %v825, %v1809
        %v2184 = vsub.f32 %v914, %v1809
        %v2185 = vsub.f32 %v827, %v1812
        %v2186 = vsub.f32 %v916, %v1812
        %v2187 = vsub.f32 %v830, %v1815
        %v2188 = vsub.f32 %v919, %v1815
        %v2189 = vsub.f32 %v832, %v1818
        %v2190 = vsub.f32 %v921, %v1818
        %v2191 = vsub.f32 %v835, %v1821
        %v2192 = vsub.f32 %v924, %v1821
        %v2193 = vsub.f32 %v837, %v1824
        %v2194 = vsub.f32 %v926, %v1824
        %v2195 = vsub.f32 %v840, %v1827
        %v2196 = vsub.f32 %v929, %v1827
        %v2197 = vsub.f32 %v842, %v1830
        %v2198 = vsub.f32 %v931, %v1830
        %v2199 = vsub.f32 %v845, %v1833
        %v2200 = vsub.f32 %v934, %v1833
        %v2201 = vsub.f32 %v847, %v1836
        %v2202 = vsub.f32 %v936, %v1836
        %v2203 = vsub.f32 %v850, %v1839
        %v2204 = vsub.f32 %v939, %v1839
        %v2205 = vsub.f32 %v852, %v1842
        %v2206 = vsub.f32 %v941, %v1842
        %v2207 = vsub.f32 %v855, %v1845
        %v2208 = vsub.f32 %v944, %v1845
        %v2209 = vsub.f32 %v857, %v1848
        %v2210 = vsub.f32 %v946, %v1848
        %v2211 = vsub.f32 %v860, %v1851
        %v2212 = vsub.f32 %v949, %v1851
        %v2213 = vsub.f32 %v862, %v1854
        %v2214 = vsub.f32 %v951, %v1854
        %v2215 = vsub.f32 %v865, %v1857
        %v2216 = vsub.f32 %v954, %v1857
        %v2217 = vsub.f32 %v867, %v1860
        %v2218 = vsub.f32 %v956, %v1860
        %v2219 = vsub.f32 %v870, %v1863
        %v2220 = vsub.f32 %v959, %v1863
        %v2221 = vsub.f32 %v872, %v1866
        %v2222 = vsub.f32 %v961, %v1866
        %v2223 = vsub.f32 %v875, %v1869
        %v2224 = vsub.f32 %v964, %v1869
        %v2225 = vsub.f32 %v877, %v1872
        %v2226 = vsub.f32 %v966, %v1872
        %v2227 = vsub.f32 %v880, %v1875
        %v2228 = vsub.f32 %v969, %v1875
        %v2229 = vsub.f32 %v882, %v1878
        %v2230 = vsub.f32 %v971, %v1878
        %v2231 = vsub.f32 %v1075, %v1881
        %v2232 = vsub.f32 %v1164, %v1881
        %v2233 = vsub.f32 %v1077, %v1884
        %v2234 = vsub.f32 %v1166, %v1884
        %v2235 = vsub.f32 %v1080, %v1887
        %v2236 = vsub.f32 %v1169, %v1887
        %v2237 = vsub.f32 %v1082, %v1890
        %v2238 = vsub.f32 %v1171, %v1890
        %v2239 = vsub.f32 %v1085, %v1893
        %v2240 = vsub.f32 %v1174, %v1893
        %v2241 = vsub.f32 %v1087, %v1896
        %v2242 = vsub.f32 %v1176, %v1896
        %v2243 = vsub.f32 %v1090, %v1899
        %v2244 = vsub.f32 %v1179, %v1899
        %v2245 = vsub.f32 %v1092, %v1902
        %v2246 = vsub.f32 %v1181, %v1902
        %v2247 = vsub.f32 %v1095, %v1905
        %v2248 = vsub.f32 %v1184, %v1905
        %v2249 = vsub.f32 %v1097, %v1908
        %v2250 = vsub.f32 %v1186, %v1908
        %v2251 = vsub.f32 %v1100, %v1911
        %v2252 = vsub.f32 %v1189, %v1911
        %v2253 = vsub.f32 %v1102, %v1914
        %v2254 = vsub.f32 %v1191, %v1914
        %v2255 = vsub.f32 %v1105, %v1917
        %v2256 = vsub.f32 %v1194, %v1917
        %v2257 = vsub.f32 %v1107, %v1920
        %v2258 = vsub.f32 %v1196, %v1920
        %v2259 = vsub.f32 %v1110, %v1923
        %v2260 = vsub.f32 %v1199, %v1923
        %v2261 = vsub.f32 %v1112, %v1926
        %v2262 = vsub.f32 %v1201, %v1926
        %v2263 = vsub.f32 %v1115, %v1929
        %v2264 = vsub.f32 %v1204, %v1929
        %v2265 = vsub.f32 %v1117, %v1932
        %v2266 = vsub.f32 %v1206, %v1932
        %v2267 = vsub.f32 %v1120, %v1935
        %v2268 = vsub.f32 %v1209, %v1935
        %v2269 = vsub.f32 %v1122, %v1938
        %v2270 = vsub.f32 %v1211, %v1938
        %v2271 = vsub.f32 %v1125, %v1941
        %v2272 = vsub.f32 %v1214, %v1941
        %v2273 = vsub.f32 %v1127, %v1944
        %v2274 = vsub.f32 %v1216, %v1944
        %v2275 = vsub.f32 %v1130, %v1947
        %v2276 = vsub.f32 %v1219, %v1947
        %v2277 = vsub.f32 %v1132, %v1950
        %v2278 = vsub.f32 %v1221, %v1950
        %v2279 = vsub.f32 %v1135, %v1953
        %v2280 = vsub.f32 %v1224, %v1953
        %v2281 = vsub.f32 %v1137, %v1956
        %v2282 = vsub.f32 %v1226, %v1956
        %v2283 = vsub.f32 %v1140, %v1959
        %v2284 = vsub.f32 %v1229, %v1959
        %v2285 = vsub.f32 %v1142, %v1962
        %v2286 = vsub.f32 %v1231, %v1962
        %v2287 = vsub.f32 %v1145, %v1965
        %v2288 = vsub.f32 %v1234, %v1965
        %v2289 = vsub.f32 %v1147, %v1968
        %v2290 = vsub.f32 %v1236, %v1968
        %v2291 = vsub.f32 %v1150, %v1971
        %v2292 = vsub.f32 %v1239, %v1971
        %v2293 = vsub.f32 %v1152, %v1974
        %v2294 = vsub.f32 %v1241, %v1974
        %v2295 = vsub.f32 %v1345, %v1977
        %v2296 = vsub.f32 %v1434, %v1977
        %v2297 = vsub.f32 %v1347, %v1980
        %v2298 = vsub.f32 %v1436, %v1980
        %v2299 = vsub.f32 %v1350, %v1983
        %v2300 = vsub.f32 %v1439, %v1983
        %v2301 = vsub.f32 %v1352, %v1986
        %v2302 = vsub.f32 %v1441, %v1986
        %v2303 = vsub.f32 %v1355, %v1989
        %v2304 = vsub.f32 %v1444, %v1989
        %v2305 = vsub.f32 %v1357, %v1992
        %v2306 = vsub.f32 %v1446, %v1992
        %v2307 = vsub.f32 %v1360, %v1995
        %v2308 = vsub.f32 %v1449, %v1995
        %v2309 = vsub.f32 %v1362, %v1998
        %v2310 = vsub.f32 %v1451, %v1998
        %v2311 = vsub.f32 %v1365, %v2001
        %v2312 = vsub.f32 %v1454, %v2001
        %v2313 = vsub.f32 %v1367, %v2004
        %v2314 = vsub.f32 %v1456, %v2004
        %v2315 = vsub.f32 %v1370, %v2007
        %v2316 = vsub.f32 %v1459, %v2007
        %v2317 = vsub.f32 %v1372, %v2010
        %v2318 = vsub.f32 %v1461, %v2010
        %v2319 = vsub.f32 %v1375, %v2013
        %v2320 = vsub.f32 %v1464, %v2013
        %v2321 = vsub.f32 %v1377, %v2016
        %v2322 = vsub.f32 %v1466, %v2016
        %v2323 = vsub.f32 %v1380, %v2019
        %v2324 = vsub.f32 %v1469, %v2019
        %v2325 = vsub.f32 %v1382, %v2022
        %v2326 = vsub.f32 %v1471, %v2022
        %v2327 = vsub.f32 %v1385, %v2025
        %v2328 = vsub.f32 %v1474, %v2025
        %v2329 = vsub.f32 %v1387, %v2028
        %v2330 = vsub.f32 %v1476, %v2028
        %v2331 = vsub.f32 %v1390, %v2031
        %v2332 = vsub.f32 %v1479, %v2031
        %v2333 = vsub.f32 %v1392, %v2034
        %v2334 = vsub.f32 %v1481, %v2034
        %v2335 = vsub.f32 %v1395, %v2037
        %v2336 = vsub.f32 %v1484, %v2037
        %v2337 = vsub.f32 %v1397, %v2040
        %v2338 = vsub.f32 %v1486, %v2040
        %v2339 = vsub.f32 %v1400, %v2043
        %v2340 = vsub.f32 %v1489, %v2043
        %v2341 = vsub.f32 %v1402, %v2046
        %v2342 = vsub.f32 %v1491, %v2046
        %v2343 = vsub.f32 %v1405, %v2049
        %v2344 = vsub.f32 %v1494, %v2049
        %v2345 = vsub.f32 %v1407, %v2052
        %v2346 = vsub.f32 %v1496, %v2052
        %v2347 = vsub.f32 %v1410, %v2055
        %v2348 = vsub.f32 %v1499, %v2055
        %v2349 = vsub.f32 %v1412, %v2058
        %v2350 = vsub.f32 %v1501, %v2058
        %v2351 = vsub.f32 %v1415, %v2061
        %v2352 = vsub.f32 %v1504, %v2061
        %v2353 = vsub.f32 %v1417, %v2064
        %v2354 = vsub.f32 %v1506, %v2064
        %v2355 = vsub.f32 %v1420, %v2067
        %v2356 = vsub.f32 %v1509, %v2067
        %v2357 = vsub.f32 %v1422, %v2070
        %v2358 = vsub.f32 %v1511, %v2070
        %v2359 = vsub.f32 %v1615, %v2073
        %v2360 = vsub.f32 %v1704, %v2073
        %v2361 = vsub.f32 %v1617, %v2076
        %v2362 = vsub.f32 %v1706, %v2076
        %v2363 = vsub.f32 %v1620, %v2079
        %v2364 = vsub.f32 %v1709, %v2079
        %v2365 = vsub.f32 %v1622, %v2082
        %v2366 = vsub.f32 %v1711, %v2082
        %v2367 = vsub.f32 %v1625, %v2085
        %v2368 = vsub.f32 %v1714, %v2085
        %v2369 = vsub.f32 %v1627, %v2088
        %v2370 = vsub.f32 %v1716, %v2088
        %v2371 = vsub.f32 %v1630, %v2091
        %v2372 = vsub.f32 %v1719, %v2091
        %v2373 = vsub.f32 %v1632, %v2094
        %v2374 = vsub.f32 %v1721, %v2094
        %v2375 = vsub.f32 %v1635, %v2097
        %v2376 = vsub.f32 %v1724, %v2097
        %v2377 = vsub.f32 %v1637, %v2100
        %v2378 = vsub.f32 %v1726, %v2100
        %v2379 = vsub.f32 %v1640, %v2103
        %v2380 = vsub.f32 %v1729, %v2103
        %v2381 = vsub.f32 %v1642, %v2106
        %v2382 = vsub.f32 %v1731, %v2106
        %v2383 = vsub.f32 %v1645, %v2109
        %v2384 = vsub.f32 %v1734, %v2109
        %v2385 = vsub.f32 %v1647, %v2112
        %v2386 = vsub.f32 %v1736, %v2112
        %v2387 = vsub.f32 %v1650, %v2115
        %v2388 = vsub.f32 %v1739, %v2115
        %v2389 = vsub.f32 %v1652, %v2118
        %v2390 = vsub.f32 %v1741, %v2118
        %v2391 = vsub.f32 %v1655, %v2121
        %v2392 = vsub.f32 %v1744, %v2121
        %v2393 = vsub.f32 %v1657, %v2124
        %v2394 = vsub.f32 %v1746, %v2124
        %v2395 = vsub.f32 %v1660, %v2127
        %v2396 = vsub.f32 %v1749, %v2127
        %v2397 = vsub.f32 %v1662, %v2130
        %v2398 = vsub.f32 %v1751, %v2130
        %v2399 = vsub.f32 %v1665, %v2133
        %v2400 = vsub.f32 %v1754, %v2133
        %v2401 = vsub.f32 %v1667, %v2136
        %v2402 = vsub.f32 %v1756, %v2136
        %v2403 = vsub.f32 %v1670, %v2139
        %v2404 = vsub.f32 %v1759, %v2139
        %v2405 = vsub.f32 %v1672, %v2142
        %v2406 = vsub.f32 %v1761, %v2142
        %v2407 = vsub.f32 %v1675, %v2145
        %v2408 = vsub.f32 %v1764, %v2145
        %v2409 = vsub.f32 %v1677, %v2148
        %v2410 = vsub.f32 %v1766, %v2148
        %v2411 = vsub.f32 %v1680, %v2151
        %v2412 = vsub.f32 %v1769, %v2151
        %v2413 = vsub.f32 %v1682, %v2154
        %v2414 = vsub.f32 %v1771, %v2154
        %v2415 = vsub.f32 %v1685, %v2157
        %v2416 = vsub.f32 %v1774, %v2157
        %v2417 = vsub.f32 %v1687, %v2160
        %v2418 = vsub.f32 %v1776, %v2160
        %v2419 = vsub.f32 %v1690, %v2163
        %v2420 = vsub.f32 %v1779, %v2163
        %v2421 = vsub.f32 %v1692, %v2166
        %v2422 = vsub.f32 %v1781, %v2166
        %v2423 = vmul.f32 %v2167, 1.442695
        %v2424 = vpow.pop %v2423
        %v2425 = vmul.f32 %v2168, 1.442695
        %v2426 = vpow.pop %v2425
        %v2427 = vmul.f32 %v2169, 1.442695
        %v2428 = vpow.pop %v2427
        %v2429 = vmul.f32 %v2170, 1.442695
        %v2430 = vpow.pop %v2429
        %v2431 = vmul.f32 %v2171, 1.442695
        %v2432 = vpow.pop %v2431
        %v2433 = vmul.f32 %v2172, 1.442695
        %v2434 = vpow.pop %v2433
        %v2435 = vmul.f32 %v2173, 1.442695
        %v2436 = vpow.pop %v2435
        %v2437 = vmul.f32 %v2174, 1.442695
        %v2438 = vpow.pop %v2437
        %v2439 = vmul.f32 %v2175, 1.442695
        %v2440 = vpow.pop %v2439
        %v2441 = vmul.f32 %v2176, 1.442695
        %v2442 = vpow.pop %v2441
        %v2443 = vmul.f32 %v2177, 1.442695
        %v2444 = vpow.pop %v2443
        %v2445 = vmul.f32 %v2178, 1.442695
        %v2446 = vpow.pop %v2445
        %v2447 = vmul.f32 %v2179, 1.442695
        %v2448 = vpow.pop %v2447
        %v2449 = vmul.f32 %v2180, 1.442695
        %v2450 = vpow.pop %v2449
        %v2451 = vmul.f32 %v2181, 1.442695
        %v2452 = vpow.pop %v2451
        %v2453 = vmul.f32 %v2182, 1.442695
        %v2454 = vpow.pop %v2453
        %v2455 = vmul.f32 %v2183, 1.442695
        %v2456 = vpow.pop %v2455
        %v2457 = vmul.f32 %v2184, 1.442695
        %v2458 = vpow.pop %v2457
        %v2459 = vmul.f32 %v2185, 1.442695
        %v2460 = vpow.pop %v2459
        %v2461 = vmul.f32 %v2186, 1.442695
        %v2462 = vpow.pop %v2461
        %v2463 = vmul.f32 %v2187, 1.442695
        %v2464 = vpow.pop %v2463
        %v2465 = vmul.f32 %v2188, 1.442695
        %v2466 = vpow.pop %v2465
        %v2467 = vmul.f32 %v2189, 1.442695
        %v2468 = vpow.pop %v2467
        %v2469 = vmul.f32 %v2190, 1.442695
        %v2470 = vpow.pop %v2469
        %v2471 = vmul.f32 %v2191, 1.442695
        %v2472 = vpow.pop %v2471
        %v2473 = vmul.f32 %v2192, 1.442695
        %v2474 = vpow.pop %v2473
        %v2475 = vmul.f32 %v2193, 1.442695
        %v2476 = vpow.pop %v2475
        %v2477 = vmul.f32 %v2194, 1.442695
        %v2478 = vpow.pop %v2477
        %v2479 = vmul.f32 %v2195, 1.442695
        %v2480 = vpow.pop %v2479
        %v2481 = vmul.f32 %v2196, 1.442695
        %v2482 = vpow.pop %v2481
        %v2483 = vmul.f32 %v2197, 1.442695
        %v2484 = vpow.pop %v2483
        %v2485 = vmul.f32 %v2198, 1.442695
        %v2486 = vpow.pop %v2485
        %v2487 = vmul.f32 %v2199, 1.442695
        %v2488 = vpow.pop %v2487
        %v2489 = vmul.f32 %v2200, 1.442695
        %v2490 = vpow.pop %v2489
        %v2491 = vmul.f32 %v2201, 1.442695
        %v2492 = vpow.pop %v2491
        %v2493 = vmul.f32 %v2202, 1.442695
        %v2494 = vpow.pop %v2493
        %v2495 = vmul.f32 %v2203, 1.442695
        %v2496 = vpow.pop %v2495
        %v2497 = vmul.f32 %v2204, 1.442695
        %v2498 = vpow.pop %v2497
        %v2499 = vmul.f32 %v2205, 1.442695
        %v2500 = vpow.pop %v2499
        %v2501 = vmul.f32 %v2206, 1.442695
        %v2502 = vpow.pop %v2501
        %v2503 = vmul.f32 %v2207, 1.442695
        %v2504 = vpow.pop %v2503
        %v2505 = vmul.f32 %v2208, 1.442695
        %v2506 = vpow.pop %v2505
        %v2507 = vmul.f32 %v2209, 1.442695
        %v2508 = vpow.pop %v2507
        %v2509 = vmul.f32 %v2210, 1.442695
        %v2510 = vpow.pop %v2509
        %v2511 = vmul.f32 %v2211, 1.442695
        %v2512 = vpow.pop %v2511
        %v2513 = vmul.f32 %v2212, 1.442695
        %v2514 = vpow.pop %v2513
        %v2515 = vmul.f32 %v2213, 1.442695
        %v2516 = vpow.pop %v2515
        %v2517 = vmul.f32 %v2214, 1.442695
        %v2518 = vpow.pop %v2517
        %v2519 = vmul.f32 %v2215, 1.442695
        %v2520 = vpow.pop %v2519
        %v2521 = vmul.f32 %v2216, 1.442695
        %v2522 = vpow.pop %v2521
        %v2523 = vmul.f32 %v2217, 1.442695
        %v2524 = vpow.pop %v2523
        %v2525 = vmul.f32 %v2218, 1.442695
        %v2526 = vpow.pop %v2525
        %v2527 = vmul.f32 %v2219, 1.442695
        %v2528 = vpow.pop %v2527
        %v2529 = vmul.f32 %v2220, 1.442695
        %v2530 = vpow.pop %v2529
        %v2531 = vmul.f32 %v2221, 1.442695
        %v2532 = vpow.pop %v2531
        %v2533 = vmul.f32 %v2222, 1.442695
        %v2534 = vpow.pop %v2533
        %v2535 = vmul.f32 %v2223, 1.442695
        %v2536 = vpow.pop %v2535
        %v2537 = vmul.f32 %v2224, 1.442695
        %v2538 = vpow.pop %v2537
        %v2539 = vmul.f32 %v2225, 1.442695
        %v2540 = vpow.pop %v2539
        %v2541 = vmul.f32 %v2226, 1.442695
        %v2542 = vpow.pop %v2541
        %v2543 = vmul.f32 %v2227, 1.442695
        %v2544 = vpow.pop %v2543
        %v2545 = vmul.f32 %v2228, 1.442695
        %v2546 = vpow.pop %v2545
        %v2547 = vmul.f32 %v2229, 1.442695
        %v2548 = vpow.pop %v2547
        %v2549 = vmul.f32 %v2230, 1.442695
        %v2550 = vpow.pop %v2549
        %v2551 = vmul.f32 %v2231, 1.442695
        %v2552 = vpow.pop %v2551
        %v2553 = vmul.f32 %v2232, 1.442695
        %v2554 = vpow.pop %v2553
        %v2555 = vmul.f32 %v2233, 1.442695
        %v2556 = vpow.pop %v2555
        %v2557 = vmul.f32 %v2234, 1.442695
        %v2558 = vpow.pop %v2557
        %v2559 = vmul.f32 %v2235, 1.442695
        %v2560 = vpow.pop %v2559
        %v2561 = vmul.f32 %v2236, 1.442695
        %v2562 = vpow.pop %v2561
        %v2563 = vmul.f32 %v2237, 1.442695
        %v2564 = vpow.pop %v2563
        %v2565 = vmul.f32 %v2238, 1.442695
        %v2566 = vpow.pop %v2565
        %v2567 = vmul.f32 %v2239, 1.442695
        %v2568 = vpow.pop %v2567
        %v2569 = vmul.f32 %v2240, 1.442695
        %v2570 = vpow.pop %v2569
        %v2571 = vmul.f32 %v2241, 1.442695
        %v2572 = vpow.pop %v2571
        %v2573 = vmul.f32 %v2242, 1.442695
        %v2574 = vpow.pop %v2573
        %v2575 = vmul.f32 %v2243, 1.442695
        %v2576 = vpow.pop %v2575
        %v2577 = vmul.f32 %v2244, 1.442695
        %v2578 = vpow.pop %v2577
        %v2579 = vmul.f32 %v2245, 1.442695
        %v2580 = vpow.pop %v2579
        %v2581 = vmul.f32 %v2246, 1.442695
        %v2582 = vpow.pop %v2581
        %v2583 = vmul.f32 %v2247, 1.442695
        %v2584 = vpow.pop %v2583
        %v2585 = vmul.f32 %v2248, 1.442695
        %v2586 = vpow.pop %v2585
        %v2587 = vmul.f32 %v2249, 1.442695
        %v2588 = vpow.pop %v2587
        %v2589 = vmul.f32 %v2250, 1.442695
        %v2590 = vpow.pop %v2589
        %v2591 = vmul.f32 %v2251, 1.442695
        %v2592 = vpow.pop %v2591
        %v2593 = vmul.f32 %v2252, 1.442695
        %v2594 = vpow.pop %v2593
        %v2595 = vmul.f32 %v2253, 1.442695
        %v2596 = vpow.pop %v2595
        %v2597 = vmul.f32 %v2254, 1.442695
        %v2598 = vpow.pop %v2597
        %v2599 = vmul.f32 %v2255, 1.442695
        %v2600 = vpow.pop %v2599
        %v2601 = vmul.f32 %v2256, 1.442695
        %v2602 = vpow.pop %v2601
        %v2603 = vmul.f32 %v2257, 1.442695
        %v2604 = vpow.pop %v2603
        %v2605 = vmul.f32 %v2258, 1.442695
        %v2606 = vpow.pop %v2605
        %v2607 = vmul.f32 %v2259, 1.442695
        %v2608 = vpow.pop %v2607
        %v2609 = vmul.f32 %v2260, 1.442695
        %v2610 = vpow.pop %v2609
        %v2611 = vmul.f32 %v2261, 1.442695
        %v2612 = vpow.pop %v2611
        %v2613 = vmul.f32 %v2262, 1.442695
        %v2614 = vpow.pop %v2613
        %v2615 = vmul.f32 %v2263, 1.442695
        %v2616 = vpow.pop %v2615
        %v2617 = vmul.f32 %v2264, 1.442695
        %v2618 = vpow.pop %v2617
        %v2619 = vmul.f32 %v2265, 1.442695
        %v2620 = vpow.pop %v2619
        %v2621 = vmul.f32 %v2266, 1.442695
        %v2622 = vpow.pop %v2621
        %v2623 = vmul.f32 %v2267, 1.442695
        %v2624 = vpow.pop %v2623
        %v2625 = vmul.f32 %v2268, 1.442695
        %v2626 = vpow.pop %v2625
        %v2627 = vmul.f32 %v2269, 1.442695
        %v2628 = vpow.pop %v2627
        %v2629 = vmul.f32 %v2270, 1.442695
        %v2630 = vpow.pop %v2629
        %v2631 = vmul.f32 %v2271, 1.442695
        %v2632 = vpow.pop %v2631
        %v2633 = vmul.f32 %v2272, 1.442695
        %v2634 = vpow.pop %v2633
        %v2635 = vmul.f32 %v2273, 1.442695
        %v2636 = vpow.pop %v2635
        %v2637 = vmul.f32 %v2274, 1.442695
        %v2638 = vpow.pop %v2637
        %v2639 = vmul.f32 %v2275, 1.442695
        %v2640 = vpow.pop %v2639
        %v2641 = vmul.f32 %v2276, 1.442695
        %v2642 = vpow.pop %v2641
        %v2643 = vmul.f32 %v2277, 1.442695
        %v2644 = vpow.pop %v2643
        %v2645 = vmul.f32 %v2278, 1.442695
        %v2646 = vpow.pop %v2645
        %v2647 = vmul.f32 %v2279, 1.442695
        %v2648 = vpow.pop %v2647
        %v2649 = vmul.f32 %v2280, 1.442695
        %v2650 = vpow.pop %v2649
        %v2651 = vmul.f32 %v2281, 1.442695
        %v2652 = vpow.pop %v2651
        %v2653 = vmul.f32 %v2282, 1.442695
        %v2654 = vpow.pop %v2653
        %v2655 = vmul.f32 %v2283, 1.442695
        %v2656 = vpow.pop %v2655
        %v2657 = vmul.f32 %v2284, 1.442695
        %v2658 = vpow.pop %v2657
        %v2659 = vmul.f32 %v2285, 1.442695
        %v2660 = vpow.pop %v2659
        %v2661 = vmul.f32 %v2286, 1.442695
        %v2662 = vpow.pop %v2661
        %v2663 = vmul.f32 %v2287, 1.442695
        %v2664 = vpow.pop %v2663
        %v2665 = vmul.f32 %v2288, 1.442695
        %v2666 = vpow.pop %v2665
        %v2667 = vmul.f32 %v2289, 1.442695
        %v2668 = vpow.pop %v2667
        %v2669 = vmul.f32 %v2290, 1.442695
        %v2670 = vpow.pop %v2669
        %v2671 = vmul.f32 %v2291, 1.442695
        %v2672 = vpow.pop %v2671
        %v2673 = vmul.f32 %v2292, 1.442695
        %v2674 = vpow.pop %v2673
        %v2675 = vmul.f32 %v2293, 1.442695
        %v2676 = vpow.pop %v2675
        %v2677 = vmul.f32 %v2294, 1.442695
        %v2678 = vpow.pop %v2677
        %v2679 = vmul.f32 %v2295, 1.442695
        %v2680 = vpow.pop %v2679
        %v2681 = vmul.f32 %v2296, 1.442695
        %v2682 = vpow.pop %v2681
        %v2683 = vmul.f32 %v2297, 1.442695
        %v2684 = vpow.pop %v2683
        %v2685 = vmul.f32 %v2298, 1.442695
        %v2686 = vpow.pop %v2685
        %v2687 = vmul.f32 %v2299, 1.442695
        %v2688 = vpow.pop %v2687
        %v2689 = vmul.f32 %v2300, 1.442695
        %v2690 = vpow.pop %v2689
        %v2691 = vmul.f32 %v2301, 1.442695
        %v2692 = vpow.pop %v2691
        %v2693 = vmul.f32 %v2302, 1.442695
        %v2694 = vpow.pop %v2693
        %v2695 = vmul.f32 %v2303, 1.442695
        %v2696 = vpow.pop %v2695
        %v2697 = vmul.f32 %v2304, 1.442695
        %v2698 = vpow.pop %v2697
        %v2699 = vmul.f32 %v2305, 1.442695
        %v2700 = vpow.pop %v2699
        %v2701 = vmul.f32 %v2306, 1.442695
        %v2702 = vpow.pop %v2701
        %v2703 = vmul.f32 %v2307, 1.442695
        %v2704 = vpow.pop %v2703
        %v2705 = vmul.f32 %v2308, 1.442695
        %v2706 = vpow.pop %v2705
        %v2707 = vmul.f32 %v2309, 1.442695
        %v2708 = vpow.pop %v2707
        %v2709 = vmul.f32 %v2310, 1.442695
        %v2710 = vpow.pop %v2709
        %v2711 = vmul.f32 %v2311, 1.442695
        %v2712 = vpow.pop %v2711
        %v2713 = vmul.f32 %v2312, 1.442695
        %v2714 = vpow.pop %v2713
        %v2715 = vmul.f32 %v2313, 1.442695
        %v2716 = vpow.pop %v2715
        %v2717 = vmul.f32 %v2314, 1.442695
        %v2718 = vpow.pop %v2717
        %v2719 = vmul.f32 %v2315, 1.442695
        %v2720 = vpow.pop %v2719
        %v2721 = vmul.f32 %v2316, 1.442695
        %v2722 = vpow.pop %v2721
        %v2723 = vmul.f32 %v2317, 1.442695
        %v2724 = vpow.pop %v2723
        %v2725 = vmul.f32 %v2318, 1.442695
        %v2726 = vpow.pop %v2725
        %v2727 = vmul.f32 %v2319, 1.442695
        %v2728 = vpow.pop %v2727
        %v2729 = vmul.f32 %v2320, 1.442695
        %v2730 = vpow.pop %v2729
        %v2731 = vmul.f32 %v2321, 1.442695
        %v2732 = vpow.pop %v2731
        %v2733 = vmul.f32 %v2322, 1.442695
        %v2734 = vpow.pop %v2733
        %v2735 = vmul.f32 %v2323, 1.442695
        %v2736 = vpow.pop %v2735
        %v2737 = vmul.f32 %v2324, 1.442695
        %v2738 = vpow.pop %v2737
        %v2739 = vmul.f32 %v2325, 1.442695
        %v2740 = vpow.pop %v2739
        %v2741 = vmul.f32 %v2326, 1.442695
        %v2742 = vpow.pop %v2741
        %v2743 = vmul.f32 %v2327, 1.442695
        %v2744 = vpow.pop %v2743
        %v2745 = vmul.f32 %v2328, 1.442695
        %v2746 = vpow.pop %v2745
        %v2747 = vmul.f32 %v2329, 1.442695
        %v2748 = vpow.pop %v2747
        %v2749 = vmul.f32 %v2330, 1.442695
        %v2750 = vpow.pop %v2749
        %v2751 = vmul.f32 %v2331, 1.442695
        %v2752 = vpow.pop %v2751
        %v2753 = vmul.f32 %v2332, 1.442695
        %v2754 = vpow.pop %v2753
        %v2755 = vmul.f32 %v2333, 1.442695
        %v2756 = vpow.pop %v2755
        %v2757 = vmul.f32 %v2334, 1.442695
        %v2758 = vpow.pop %v2757
        %v2759 = vmul.f32 %v2335, 1.442695
        %v2760 = vpow.pop %v2759
        %v2761 = vmul.f32 %v2336, 1.442695
        %v2762 = vpow.pop %v2761
        %v2763 = vmul.f32 %v2337, 1.442695
        %v2764 = vpow.pop %v2763
        %v2765 = vmul.f32 %v2338, 1.442695
        %v2766 = vpow.pop %v2765
        %v2767 = vmul.f32 %v2339, 1.442695
        %v2768 = vpow.pop %v2767
        %v2769 = vmul.f32 %v2340, 1.442695
        %v2770 = vpow.pop %v2769
        %v2771 = vmul.f32 %v2341, 1.442695
        %v2772 = vpow.pop %v2771
        %v2773 = vmul.f32 %v2342, 1.442695
        %v2774 = vpow.pop %v2773
        %v2775 = vmul.f32 %v2343, 1.442695
        %v2776 = vpow.pop %v2775
        %v2777 = vmul.f32 %v2344, 1.442695
        %v2778 = vpow.pop %v2777
        %v2779 = vmul.f32 %v2345, 1.442695
        %v2780 = vpow.pop %v2779
        %v2781 = vmul.f32 %v2346, 1.442695
        %v2782 = vpow.pop %v2781
        %v2783 = vmul.f32 %v2347, 1.442695
        %v2784 = vpow.pop %v2783
        %v2785 = vmul.f32 %v2348, 1.442695
        %v2786 = vpow.pop %v2785
        %v2787 = vmul.f32 %v2349, 1.442695
        %v2788 = vpow.pop %v2787
        %v2789 = vmul.f32 %v2350, 1.442695
        %v2790 = vpow.pop %v2789
        %v2791 = vmul.f32 %v2351, 1.442695
        %v2792 = vpow.pop %v2791
        %v2793 = vmul.f32 %v2352, 1.442695
        %v2794 = vpow.pop %v2793
        %v2795 = vmul.f32 %v2353, 1.442695
        %v2796 = vpow.pop %v2795
        %v2797 = vmul.f32 %v2354, 1.442695
        %v2798 = vpow.pop %v2797
        %v2799 = vmul.f32 %v2355, 1.442695
        %v2800 = vpow.pop %v2799
        %v2801 = vmul.f32 %v2356, 1.442695
        %v2802 = vpow.pop %v2801
        %v2803 = vmul.f32 %v2357, 1.442695
        %v2804 = vpow.pop %v2803
        %v2805 = vmul.f32 %v2358, 1.442695
        %v2806 = vpow.pop %v2805
        %v2807 = vmul.f32 %v2359, 1.442695
        %v2808 = vpow.pop %v2807
        %v2809 = vmul.f32 %v2360, 1.442695
        %v2810 = vpow.pop %v2809
        %v2811 = vmul.f32 %v2361, 1.442695
        %v2812 = vpow.pop %v2811
        %v2813 = vmul.f32 %v2362, 1.442695
        %v2814 = vpow.pop %v2813
        %v2815 = vmul.f32 %v2363, 1.442695
        %v2816 = vpow.pop %v2815
        %v2817 = vmul.f32 %v2364, 1.442695
        %v2818 = vpow.pop %v2817
        %v2819 = vmul.f32 %v2365, 1.442695
        %v2820 = vpow.pop %v2819
        %v2821 = vmul.f32 %v2366, 1.442695
        %v2822 = vpow.pop %v2821
        %v2823 = vmul.f32 %v2367, 1.442695
        %v2824 = vpow.pop %v2823
        %v2825 = vmul.f32 %v2368, 1.442695
        %v2826 = vpow.pop %v2825
        %v2827 = vmul.f32 %v2369, 1.442695
        %v2828 = vpow.pop %v2827
        %v2829 = vmul.f32 %v2370, 1.442695
        %v2830 = vpow.pop %v2829
        %v2831 = vmul.f32 %v2371, 1.442695
        %v2832 = vpow.pop %v2831
        %v2833 = vmul.f32 %v2372, 1.442695
        %v2834 = vpow.pop %v2833
        %v2835 = vmul.f32 %v2373, 1.442695
        %v2836 = vpow.pop %v2835
        %v2837 = vmul.f32 %v2374, 1.442695
        %v2838 = vpow.pop %v2837
        %v2839 = vmul.f32 %v2375, 1.442695
        %v2840 = vpow.pop %v2839
        %v2841 = vmul.f32 %v2376, 1.442695
        %v2842 = vpow.pop %v2841
        %v2843 = vmul.f32 %v2377, 1.442695
        %v2844 = vpow.pop %v2843
        %v2845 = vmul.f32 %v2378, 1.442695
        %v2846 = vpow.pop %v2845
        %v2847 = vmul.f32 %v2379, 1.442695
        %v2848 = vpow.pop %v2847
        %v2849 = vmul.f32 %v2380, 1.442695
        %v2850 = vpow.pop %v2849
        %v2851 = vmul.f32 %v2381, 1.442695
        %v2852 = vpow.pop %v2851
        %v2853 = vmul.f32 %v2382, 1.442695
        %v2854 = vpow.pop %v2853
        %v2855 = vmul.f32 %v2383, 1.442695
        %v2856 = vpow.pop %v2855
        %v2857 = vmul.f32 %v2384, 1.442695
        %v2858 = vpow.pop %v2857
        %v2859 = vmul.f32 %v2385, 1.442695
        %v2860 = vpow.pop %v2859
        %v2861 = vmul.f32 %v2386, 1.442695
        %v2862 = vpow.pop %v2861
        %v2863 = vmul.f32 %v2387, 1.442695
        %v2864 = vpow.pop %v2863
        %v2865 = vmul.f32 %v2388, 1.442695
        %v2866 = vpow.pop %v2865
        %v2867 = vmul.f32 %v2389, 1.442695
        %v2868 = vpow.pop %v2867
        %v2869 = vmul.f32 %v2390, 1.442695
        %v2870 = vpow.pop %v2869
        %v2871 = vmul.f32 %v2391, 1.442695
        %v2872 = vpow.pop %v2871
        %v2873 = vmul.f32 %v2392, 1.442695
        %v2874 = vpow.pop %v2873
        %v2875 = vmul.f32 %v2393, 1.442695
        %v2876 = vpow.pop %v2875
        %v2877 = vmul.f32 %v2394, 1.442695
        %v2878 = vpow.pop %v2877
        %v2879 = vmul.f32 %v2395, 1.442695
        %v2880 = vpow.pop %v2879
        %v2881 = vmul.f32 %v2396, 1.442695
        %v2882 = vpow.pop %v2881
        %v2883 = vmul.f32 %v2397, 1.442695
        %v2884 = vpow.pop %v2883
        %v2885 = vmul.f32 %v2398, 1.442695
        %v2886 = vpow.pop %v2885
        %v2887 = vmul.f32 %v2399, 1.442695
        %v2888 = vpow.pop %v2887
        %v2889 = vmul.f32 %v2400, 1.442695
        %v2890 = vpow.pop %v2889
        %v2891 = vmul.f32 %v2401, 1.442695
        %v2892 = vpow.pop %v2891
        %v2893 = vmul.f32 %v2402, 1.442695
        %v2894 = vpow.pop %v2893
        %v2895 = vmul.f32 %v2403, 1.442695
        %v2896 = vpow.pop %v2895
        %v2897 = vmul.f32 %v2404, 1.442695
        %v2898 = vpow.pop %v2897
        %v2899 = vmul.f32 %v2405, 1.442695
        %v2900 = vpow.pop %v2899
        %v2901 = vmul.f32 %v2406, 1.442695
        %v2902 = vpow.pop %v2901
        %v2903 = vmul.f32 %v2407, 1.442695
        %v2904 = vpow.pop %v2903
        %v2905 = vmul.f32 %v2408, 1.442695
        %v2906 = vpow.pop %v2905
        %v2907 = vmul.f32 %v2409, 1.442695
        %v2908 = vpow.pop %v2907
        %v2909 = vmul.f32 %v2410, 1.442695
        %v2910 = vpow.pop %v2909
        %v2911 = vmul.f32 %v2411, 1.442695
        %v2912 = vpow.pop %v2911
        %v2913 = vmul.f32 %v2412, 1.442695
        %v2914 = vpow.pop %v2913
        %v2915 = vmul.f32 %v2413, 1.442695
        %v2916 = vpow.pop %v2915
        %v2917 = vmul.f32 %v2414, 1.442695
        %v2918 = vpow.pop %v2917
        %v2919 = vmul.f32 %v2415, 1.442695
        %v2920 = vpow.pop %v2919
        %v2921 = vmul.f32 %v2416, 1.442695
        %v2922 = vpow.pop %v2921
        %v2923 = vmul.f32 %v2417, 1.442695
        %v2924 = vpow.pop %v2923
        %v2925 = vmul.f32 %v2418, 1.442695
        %v2926 = vpow.pop %v2925
        %v2927 = vmul.f32 %v2419, 1.442695
        %v2928 = vpow.pop %v2927
        %v2929 = vmul.f32 %v2420, 1.442695
        %v2930 = vpow.pop %v2929
        %v2931 = vmul.f32 %v2421, 1.442695
        %v2932 = vpow.pop %v2931
        %v2933 = vmul.f32 %v2422, 1.442695
        %v2934 = vpow.pop %v2933
        %v2935 = vadd.f32 %v2424, %v2426
        %2936 = vadd.xlane.f32.xlu0 %v2935
        %v2937 = vpop.xlane.xlu0 %2936
        %v2938 = vadd.f32 %v2428, %v2430
        %2939 = vadd.xlane.f32.xlu0 %v2938
        %v2940 = vpop.xlane.xlu0 %2939
        %v2941 = vadd.f32 %v2432, %v2434
        %2942 = vadd.xlane.f32.xlu0 %v2941
        %v2943 = vpop.xlane.xlu0 %2942
        %v2944 = vadd.f32 %v2436, %v2438
        %2945 = vadd.xlane.f32.xlu0 %v2944
        %v2946 = vpop.xlane.xlu0 %2945
        %v2947 = vadd.f32 %v2440, %v2442
        %2948 = vadd.xlane.f32.xlu0 %v2947
        %v2949 = vpop.xlane.xlu0 %2948
        %v2950 = vadd.f32 %v2444, %v2446
        %2951 = vadd.xlane.f32.xlu0 %v2950
        %v2952 = vpop.xlane.xlu0 %2951
        %v2953 = vadd.f32 %v2448, %v2450
        %2954 = vadd.xlane.f32.xlu0 %v2953
        %v2955 = vpop.xlane.xlu0 %2954
        %v2956 = vadd.f32 %v2452, %v2454
        %2957 = vadd.xlane.f32.xlu0 %v2956
        %v2958 = vpop.xlane.xlu0 %2957
        %v2959 = vadd.f32 %v2456, %v2458
        %2960 = vadd.xlane.f32.xlu0 %v2959
        %v2961 = vpop.xlane.xlu0 %2960
        %v2962 = vadd.f32 %v2460, %v2462
        %2963 = vadd.xlane.f32.xlu0 %v2962
        %v2964 = vpop.xlane.xlu0 %2963
        %v2965 = vadd.f32 %v2464, %v2466
        %2966 = vadd.xlane.f32.xlu0 %v2965
        %v2967 = vpop.xlane.xlu0 %2966
        %v2968 = vadd.f32 %v2468, %v2470
        %2969 = vadd.xlane.f32.xlu0 %v2968
        %v2970 = vpop.xlane.xlu0 %2969
        %v2971 = vadd.f32 %v2472, %v2474
        %2972 = vadd.xlane.f32.xlu0 %v2971
        %v2973 = vpop.xlane.xlu0 %2972
        %v2974 = vadd.f32 %v2476, %v2478
        %2975 = vadd.xlane.f32.xlu0 %v2974
        %v2976 = vpop.xlane.xlu0 %2975
        %v2977 = vadd.f32 %v2480, %v2482
        %2978 = vadd.xlane.f32.xlu0 %v2977
        %v2979 = vpop.xlane.xlu0 %2978
        %v2980 = vadd.f32 %v2484, %v2486
        %2981 = vadd.xlane.f32.xlu0 %v2980
        %v2982 = vpop.xlane.xlu0 %2981
        %v2983 = vadd.f32 %v2488, %v2490
        %2984 = vadd.xlane.f32.xlu0 %v2983
        %v2985 = vpop.xlane.xlu0 %2984
        %v2986 = vadd.f32 %v2492, %v2494
        %2987 = vadd.xlane.f32.xlu0 %v2986
        %v2988 = vpop.xlane.xlu0 %2987
        %v2989 = vadd.f32 %v2496, %v2498
        %2990 = vadd.xlane.f32.xlu0 %v2989
        %v2991 = vpop.xlane.xlu0 %2990
        %v2992 = vadd.f32 %v2500, %v2502
        %2993 = vadd.xlane.f32.xlu0 %v2992
        %v2994 = vpop.xlane.xlu0 %2993
        %v2995 = vadd.f32 %v2504, %v2506
        %2996 = vadd.xlane.f32.xlu0 %v2995
        %v2997 = vpop.xlane.xlu0 %2996
        %v2998 = vadd.f32 %v2508, %v2510
        %2999 = vadd.xlane.f32.xlu0 %v2998
        %v3000 = vpop.xlane.xlu0 %2999
        %v3001 = vadd.f32 %v2512, %v2514
        %3002 = vadd.xlane.f32.xlu0 %v3001
        %v3003 = vpop.xlane.xlu0 %3002
        %v3004 = vadd.f32 %v2516, %v2518
        %3005 = vadd.xlane.f32.xlu0 %v3004
        %v3006 = vpop.xlane.xlu0 %3005
        %v3007 = vadd.f32 %v2520, %v2522
        %3008 = vadd.xlane.f32.xlu0 %v3007
        %v3009 = vpop.xlane.xlu0 %3008
        %v3010 = vadd.f32 %v2524, %v2526
        %3011 = vadd.xlane.f32.xlu0 %v3010
        %v3012 = vpop.xlane.xlu0 %3011
        %v3013 = vadd.f32 %v2528, %v2530
        %3014 = vadd.xlane.f32.xlu0 %v3013
        %v3015 = vpop.xlane.xlu0 %3014
        %v3016 = vadd.f32 %v2532, %v2534
        %3017 = vadd.xlane.f32.xlu0 %v3016
        %v3018 = vpop.xlane.xlu0 %3017
        %v3019 = vadd.f32 %v2536, %v2538
        %3020 = vadd.xlane.f32.xlu0 %v3019
        %v3021 = vpop.xlane.xlu0 %3020
        %v3022 = vadd.f32 %v2540, %v2542
        %3023 = vadd.xlane.f32.xlu0 %v3022
        %v3024 = vpop.xlane.xlu0 %3023
        %v3025 = vadd.f32 %v2544, %v2546
        %3026 = vadd.xlane.f32.xlu0 %v3025
        %v3027 = vpop.xlane.xlu0 %3026
        %v3028 = vadd.f32 %v2548, %v2550
        %3029 = vadd.xlane.f32.xlu0 %v3028
        %v3030 = vpop.xlane.xlu0 %3029
        %v3031 = vadd.f32 %v2552, %v2554
        %3032 = vadd.xlane.f32.xlu0 %v3031
        %v3033 = vpop.xlane.xlu0 %3032
        %v3034 = vadd.f32 %v2556, %v2558
        %3035 = vadd.xlane.f32.xlu0 %v3034
        %v3036 = vpop.xlane.xlu0 %3035
        %v3037 = vadd.f32 %v2560, %v2562
        %3038 = vadd.xlane.f32.xlu0 %v3037
        %v3039 = vpop.xlane.xlu0 %3038
        %v3040 = vadd.f32 %v2564, %v2566
        %3041 = vadd.xlane.f32.xlu0 %v3040
        %v3042 = vpop.xlane.xlu0 %3041
        %v3043 = vadd.f32 %v2568, %v2570
        %3044 = vadd.xlane.f32.xlu0 %v3043
        %v3045 = vpop.xlane.xlu0 %3044
        %v3046 = vadd.f32 %v2572, %v2574
        %3047 = vadd.xlane.f32.xlu0 %v3046
        %v3048 = vpop.xlane.xlu0 %3047
        %v3049 = vadd.f32 %v2576, %v2578
        %3050 = vadd.xlane.f32.xlu0 %v3049
        %v3051 = vpop.xlane.xlu0 %3050
        %v3052 = vadd.f32 %v2580, %v2582
        %3053 = vadd.xlane.f32.xlu0 %v3052
        %v3054 = vpop.xlane.xlu0 %3053
        %v3055 = vadd.f32 %v2584, %v2586
        %3056 = vadd.xlane.f32.xlu0 %v3055
        %v3057 = vpop.xlane.xlu0 %3056
        %v3058 = vadd.f32 %v2588, %v2590
        %3059 = vadd.xlane.f32.xlu0 %v3058
        %v3060 = vpop.xlane.xlu0 %3059
        %v3061 = vadd.f32 %v2592, %v2594
        %3062 = vadd.xlane.f32.xlu0 %v3061
        %v3063 = vpop.xlane.xlu0 %3062
        %v3064 = vadd.f32 %v2596, %v2598
        %3065 = vadd.xlane.f32.xlu0 %v3064
        %v3066 = vpop.xlane.xlu0 %3065
        %v3067 = vadd.f32 %v2600, %v2602
        %3068 = vadd.xlane.f32.xlu0 %v3067
        %v3069 = vpop.xlane.xlu0 %3068
        %v3070 = vadd.f32 %v2604, %v2606
        %3071 = vadd.xlane.f32.xlu0 %v3070
        %v3072 = vpop.xlane.xlu0 %3071
        %v3073 = vadd.f32 %v2608, %v2610
        %3074 = vadd.xlane.f32.xlu0 %v3073
        %v3075 = vpop.xlane.xlu0 %3074
        %v3076 = vadd.f32 %v2612, %v2614
        %3077 = vadd.xlane.f32.xlu0 %v3076
        %v3078 = vpop.xlane.xlu0 %3077
        %v3079 = vadd.f32 %v2616, %v2618
        %3080 = vadd.xlane.f32.xlu0 %v3079
        %v3081 = vpop.xlane.xlu0 %3080
        %v3082 = vadd.f32 %v2620, %v2622
        %3083 = vadd.xlane.f32.xlu0 %v3082
        %v3084 = vpop.xlane.xlu0 %3083
        %v3085 = vadd.f32 %v2624, %v2626
        %3086 = vadd.xlane.f32.xlu0 %v3085
        %v3087 = vpop.xlane.xlu0 %3086
        %v3088 = vadd.f32 %v2628, %v2630
        %3089 = vadd.xlane.f32.xlu0 %v3088
        %v3090 = vpop.xlane.xlu0 %3089
        %v3091 = vadd.f32 %v2632, %v2634
        %3092 = vadd.xlane.f32.xlu0 %v3091
        %v3093 = vpop.xlane.xlu0 %3092
        %v3094 = vadd.f32 %v2636, %v2638
        %3095 = vadd.xlane.f32.xlu0 %v3094
        %v3096 = vpop.xlane.xlu0 %3095
        %v3097 = vadd.f32 %v2640, %v2642
        %3098 = vadd.xlane.f32.xlu0 %v3097
        %v3099 = vpop.xlane.xlu0 %3098
        %v3100 = vadd.f32 %v2644, %v2646
        %3101 = vadd.xlane.f32.xlu0 %v3100
        %v3102 = vpop.xlane.xlu0 %3101
        %v3103 = vadd.f32 %v2648, %v2650
        %3104 = vadd.xlane.f32.xlu0 %v3103
        %v3105 = vpop.xlane.xlu0 %3104
        %v3106 = vadd.f32 %v2652, %v2654
        %3107 = vadd.xlane.f32.xlu0 %v3106
        %v3108 = vpop.xlane.xlu0 %3107
        %v3109 = vadd.f32 %v2656, %v2658
        %3110 = vadd.xlane.f32.xlu0 %v3109
        %v3111 = vpop.xlane.xlu0 %3110
        %v3112 = vadd.f32 %v2660, %v2662
        %3113 = vadd.xlane.f32.xlu0 %v3112
        %v3114 = vpop.xlane.xlu0 %3113
        %v3115 = vadd.f32 %v2664, %v2666
        %3116 = vadd.xlane.f32.xlu0 %v3115
        %v3117 = vpop.xlane.xlu0 %3116
        %v3118 = vadd.f32 %v2668, %v2670
        %3119 = vadd.xlane.f32.xlu0 %v3118
        %v3120 = vpop.xlane.xlu0 %3119
        %v3121 = vadd.f32 %v2672, %v2674
        %3122 = vadd.xlane.f32.xlu0 %v3121
        %v3123 = vpop.xlane.xlu0 %3122
        %v3124 = vadd.f32 %v2676, %v2678
        %3125 = vadd.xlane.f32.xlu0 %v3124
        %v3126 = vpop.xlane.xlu0 %3125
        %v3127 = vadd.f32 %v2680, %v2682
        %3128 = vadd.xlane.f32.xlu0 %v3127
        %v3129 = vpop.xlane.xlu0 %3128
        %v3130 = vadd.f32 %v2684, %v2686
        %3131 = vadd.xlane.f32.xlu0 %v3130
        %v3132 = vpop.xlane.xlu0 %3131
        %v3133 = vadd.f32 %v2688, %v2690
        %3134 = vadd.xlane.f32.xlu0 %v3133
        %v3135 = vpop.xlane.xlu0 %3134
        %v3136 = vadd.f32 %v2692, %v2694
        %3137 = vadd.xlane.f32.xlu0 %v3136
        %v3138 = vpop.xlane.xlu0 %3137
        %v3139 = vadd.f32 %v2696, %v2698
        %3140 = vadd.xlane.f32.xlu0 %v3139
        %v3141 = vpop.xlane.xlu0 %3140
        %v3142 = vadd.f32 %v2700, %v2702
        %3143 = vadd.xlane.f32.xlu0 %v3142
        %v3144 = vpop.xlane.xlu0 %3143
        %v3145 = vadd.f32 %v2704, %v2706
        %3146 = vadd.xlane.f32.xlu0 %v3145
        %v3147 = vpop.xlane.xlu0 %3146
        %v3148 = vadd.f32 %v2708, %v2710
        %3149 = vadd.xlane.f32.xlu0 %v3148
        %v3150 = vpop.xlane.xlu0 %3149
        %v3151 = vadd.f32 %v2712, %v2714
        %3152 = vadd.xlane.f32.xlu0 %v3151
        %v3153 = vpop.xlane.xlu0 %3152
        %v3154 = vadd.f32 %v2716, %v2718
        %3155 = vadd.xlane.f32.xlu0 %v3154
        %v3156 = vpop.xlane.xlu0 %3155
        %v3157 = vadd.f32 %v2720, %v2722
        %3158 = vadd.xlane.f32.xlu0 %v3157
        %v3159 = vpop.xlane.xlu0 %3158
        %v3160 = vadd.f32 %v2724, %v2726
        %3161 = vadd.xlane.f32.xlu0 %v3160
        %v3162 = vpop.xlane.xlu0 %3161
        %v3163 = vadd.f32 %v2728, %v2730
        %3164 = vadd.xlane.f32.xlu0 %v3163
        %v3165 = vpop.xlane.xlu0 %3164
        %v3166 = vadd.f32 %v2732, %v2734
        %3167 = vadd.xlane.f32.xlu0 %v3166
        %v3168 = vpop.xlane.xlu0 %3167
        %v3169 = vadd.f32 %v2736, %v2738
        %3170 = vadd.xlane.f32.xlu0 %v3169
        %v3171 = vpop.xlane.xlu0 %3170
        %v3172 = vadd.f32 %v2740, %v2742
        %3173 = vadd.xlane.f32.xlu0 %v3172
        %v3174 = vpop.xlane.xlu0 %3173
        %v3175 = vadd.f32 %v2744, %v2746
        %3176 = vadd.xlane.f32.xlu0 %v3175
        %v3177 = vpop.xlane.xlu0 %3176
        %v3178 = vadd.f32 %v2748, %v2750
        %3179 = vadd.xlane.f32.xlu0 %v3178
        %v3180 = vpop.xlane.xlu0 %3179
        %v3181 = vadd.f32 %v2752, %v2754
        %3182 = vadd.xlane.f32.xlu0 %v3181
        %v3183 = vpop.xlane.xlu0 %3182
        %v3184 = vadd.f32 %v2756, %v2758
        %3185 = vadd.xlane.f32.xlu0 %v3184
        %v3186 = vpop.xlane.xlu0 %3185
        %v3187 = vadd.f32 %v2760, %v2762
        %3188 = vadd.xlane.f32.xlu0 %v3187
        %v3189 = vpop.xlane.xlu0 %3188
        %v3190 = vadd.f32 %v2764, %v2766
        %3191 = vadd.xlane.f32.xlu0 %v3190
        %v3192 = vpop.xlane.xlu0 %3191
        %v3193 = vadd.f32 %v2768, %v2770
        %3194 = vadd.xlane.f32.xlu0 %v3193
        %v3195 = vpop.xlane.xlu0 %3194
        %v3196 = vadd.f32 %v2772, %v2774
        %3197 = vadd.xlane.f32.xlu0 %v3196
        %v3198 = vpop.xlane.xlu0 %3197
        %v3199 = vadd.f32 %v2776, %v2778
        %3200 = vadd.xlane.f32.xlu0 %v3199
        %v3201 = vpop.xlane.xlu0 %3200
        %v3202 = vadd.f32 %v2780, %v2782
        %3203 = vadd.xlane.f32.xlu0 %v3202
        %v3204 = vpop.xlane.xlu0 %3203
        %v3205 = vadd.f32 %v2784, %v2786
        %3206 = vadd.xlane.f32.xlu0 %v3205
        %v3207 = vpop.xlane.xlu0 %3206
        %v3208 = vadd.f32 %v2788, %v2790
        %3209 = vadd.xlane.f32.xlu0 %v3208
        %v3210 = vpop.xlane.xlu0 %3209
        %v3211 = vadd.f32 %v2792, %v2794
        %3212 = vadd.xlane.f32.xlu0 %v3211
        %v3213 = vpop.xlane.xlu0 %3212
        %v3214 = vadd.f32 %v2796, %v2798
        %3215 = vadd.xlane.f32.xlu0 %v3214
        %v3216 = vpop.xlane.xlu0 %3215
        %v3217 = vadd.f32 %v2800, %v2802
        %3218 = vadd.xlane.f32.xlu0 %v3217
        %v3219 = vpop.xlane.xlu0 %3218
        %v3220 = vadd.f32 %v2804, %v2806
        %3221 = vadd.xlane.f32.xlu0 %v3220
        %v3222 = vpop.xlane.xlu0 %3221
        %v3223 = vadd.f32 %v2808, %v2810
        %3224 = vadd.xlane.f32.xlu0 %v3223
        %v3225 = vpop.xlane.xlu0 %3224
        %v3226 = vadd.f32 %v2812, %v2814
        %3227 = vadd.xlane.f32.xlu0 %v3226
        %v3228 = vpop.xlane.xlu0 %3227
        %v3229 = vadd.f32 %v2816, %v2818
        %3230 = vadd.xlane.f32.xlu0 %v3229
        %v3231 = vpop.xlane.xlu0 %3230
        %v3232 = vadd.f32 %v2820, %v2822
        %3233 = vadd.xlane.f32.xlu0 %v3232
        %v3234 = vpop.xlane.xlu0 %3233
        %v3235 = vadd.f32 %v2824, %v2826
        %3236 = vadd.xlane.f32.xlu0 %v3235
        %v3237 = vpop.xlane.xlu0 %3236
        %v3238 = vadd.f32 %v2828, %v2830
        %3239 = vadd.xlane.f32.xlu0 %v3238
        %v3240 = vpop.xlane.xlu0 %3239
        %v3241 = vadd.f32 %v2832, %v2834
        %3242 = vadd.xlane.f32.xlu0 %v3241
        %v3243 = vpop.xlane.xlu0 %3242
        %v3244 = vadd.f32 %v2836, %v2838
        %3245 = vadd.xlane.f32.xlu0 %v3244
        %v3246 = vpop.xlane.xlu0 %3245
        %v3247 = vadd.f32 %v2840, %v2842
        %3248 = vadd.xlane.f32.xlu0 %v3247
        %v3249 = vpop.xlane.xlu0 %3248
        %v3250 = vadd.f32 %v2844, %v2846
        %3251 = vadd.xlane.f32.xlu0 %v3250
        %v3252 = vpop.xlane.xlu0 %3251
        %v3253 = vadd.f32 %v2848, %v2850
        %3254 = vadd.xlane.f32.xlu0 %v3253
        %v3255 = vpop.xlane.xlu0 %3254
        %v3256 = vadd.f32 %v2852, %v2854
        %3257 = vadd.xlane.f32.xlu0 %v3256
        %v3258 = vpop.xlane.xlu0 %3257
        %v3259 = vadd.f32 %v2856, %v2858
        %3260 = vadd.xlane.f32.xlu0 %v3259
        %v3261 = vpop.xlane.xlu0 %3260
        %v3262 = vadd.f32 %v2860, %v2862
        %3263 = vadd.xlane.f32.xlu0 %v3262
        %v3264 = vpop.xlane.xlu0 %3263
        %v3265 = vadd.f32 %v2864, %v2866
        %3266 = vadd.xlane.f32.xlu0 %v3265
        %v3267 = vpop.xlane.xlu0 %3266
        %v3268 = vadd.f32 %v2868, %v2870
        %3269 = vadd.xlane.f32.xlu0 %v3268
        %v3270 = vpop.xlane.xlu0 %3269
        %v3271 = vadd.f32 %v2872, %v2874
        %3272 = vadd.xlane.f32.xlu0 %v3271
        %v3273 = vpop.xlane.xlu0 %3272
        %v3274 = vadd.f32 %v2876, %v2878
        %3275 = vadd.xlane.f32.xlu0 %v3274
        %v3276 = vpop.xlane.xlu0 %3275
        %v3277 = vadd.f32 %v2880, %v2882
        %3278 = vadd.xlane.f32.xlu0 %v3277
        %v3279 = vpop.xlane.xlu0 %3278
        %v3280 = vadd.f32 %v2884, %v2886
        %3281 = vadd.xlane.f32.xlu0 %v3280
        %v3282 = vpop.xlane.xlu0 %3281
        %v3283 = vadd.f32 %v2888, %v2890
        %3284 = vadd.xlane.f32.xlu0 %v3283
        %v3285 = vpop.xlane.xlu0 %3284
        %v3286 = vadd.f32 %v2892, %v2894
        %3287 = vadd.xlane.f32.xlu0 %v3286
        %v3288 = vpop.xlane.xlu0 %3287
        %v3289 = vadd.f32 %v2896, %v2898
        %3290 = vadd.xlane.f32.xlu0 %v3289
        %v3291 = vpop.xlane.xlu0 %3290
        %v3292 = vadd.f32 %v2900, %v2902
        %3293 = vadd.xlane.f32.xlu0 %v3292
        %v3294 = vpop.xlane.xlu0 %3293
        %v3295 = vadd.f32 %v2904, %v2906
        %3296 = vadd.xlane.f32.xlu0 %v3295
        %v3297 = vpop.xlane.xlu0 %3296
        %v3298 = vadd.f32 %v2908, %v2910
        %3299 = vadd.xlane.f32.xlu0 %v3298
        %v3300 = vpop.xlane.xlu0 %3299
        %v3301 = vadd.f32 %v2912, %v2914
        %3302 = vadd.xlane.f32.xlu0 %v3301
        %v3303 = vpop.xlane.xlu0 %3302
        %v3304 = vadd.f32 %v2916, %v2918
        %3305 = vadd.xlane.f32.xlu0 %v3304
        %v3306 = vpop.xlane.xlu0 %3305
        %v3307 = vadd.f32 %v2920, %v2922
        %3308 = vadd.xlane.f32.xlu0 %v3307
        %v3309 = vpop.xlane.xlu0 %3308
        %v3310 = vadd.f32 %v2924, %v2926
        %3311 = vadd.xlane.f32.xlu0 %v3310
        %v3312 = vpop.xlane.xlu0 %3311
        %v3313 = vadd.f32 %v2928, %v2930
        %3314 = vadd.xlane.f32.xlu0 %v3313
        %v3315 = vpop.xlane.xlu0 %3314
        %v3316 = vadd.f32 %v2932, %v2934
        %3317 = vadd.xlane.f32.xlu0 %v3316
        %v3318 = vpop.xlane.xlu0 %3317
        %v3319 = vrcp.pop %v2937
        %v3320 = vrcp.pop %v2940
        %v3321 = vrcp.pop %v2943
        %v3322 = vrcp.pop %v2946
        %v3323 = vrcp.pop %v2949
        %v3324 = vrcp.pop %v2952
        %v3325 = vrcp.pop %v2955
        %v3326 = vrcp.pop %v2958
        %v3327 = vrcp.pop %v2961
        %v3328 = vrcp.pop %v2964
        %v3329 = vrcp.pop %v2967
        %v3330 = vrcp.pop %v2970
        %v3331 = vrcp.pop %v2973
        %v3332 = vrcp.pop %v2976
        %v3333 = vrcp.pop %v2979
        %v3334 = vrcp.pop %v2982
        %v3335 = vrcp.pop %v2985
        %v3336 = vrcp.pop %v2988
        %v3337 = vrcp.pop %v2991
        %v3338 = vrcp.pop %v2994
        %v3339 = vrcp.pop %v2997
        %v3340 = vrcp.pop %v3000
        %v3341 = vrcp.pop %v3003
        %v3342 = vrcp.pop %v3006
        %v3343 = vrcp.pop %v3009
        %v3344 = vrcp.pop %v3012
        %v3345 = vrcp.pop %v3015
        %v3346 = vrcp.pop %v3018
        %v3347 = vrcp.pop %v3021
        %v3348 = vrcp.pop %v3024
        %v3349 = vrcp.pop %v3027
        %v3350 = vrcp.pop %v3030
        %v3351 = vrcp.pop %v3033
        %v3352 = vrcp.pop %v3036
        %v3353 = vrcp.pop %v3039
        %v3354 = vrcp.pop %v3042
        %v3355 = vrcp.pop %v3045
        %v3356 = vrcp.pop %v3048
        %v3357 = vrcp.pop %v3051
        %v3358 = vrcp.pop %v3054
        %v3359 = vrcp.pop %v3057
        %v3360 = vrcp.pop %v3060
        %v3361 = vrcp.pop %v3063
        %v3362 = vrcp.pop %v3066
        %v3363 = vrcp.pop %v3069
        %v3364 = vrcp.pop %v3072
        %v3365 = vrcp.pop %v3075
        %v3366 = vrcp.pop %v3078
        %v3367 = vrcp.pop %v3081
        %v3368 = vrcp.pop %v3084
        %v3369 = vrcp.pop %v3087
        %v3370 = vrcp.pop %v3090
        %v3371 = vrcp.pop %v3093
        %v3372 = vrcp.pop %v3096
        %v3373 = vrcp.pop %v3099
        %v3374 = vrcp.pop %v3102
        %v3375 = vrcp.pop %v3105
        %v3376 = vrcp.pop %v3108
        %v3377 = vrcp.pop %v3111
        %v3378 = vrcp.pop %v3114
        %v3379 = vrcp.pop %v3117
        %v3380 = vrcp.pop %v3120
        %v3381 = vrcp.pop %v3123
        %v3382 = vrcp.pop %v3126
        %v3383 = vrcp.pop %v3129
        %v3384 = vrcp.pop %v3132
        %v3385 = vrcp.pop %v3135
        %v3386 = vrcp.pop %v3138
        %v3387 = vrcp.pop %v3141
        %v3388 = vrcp.pop %v3144
        %v3389 = vrcp.pop %v3147
        %v3390 = vrcp.pop %v3150
        %v3391 = vrcp.pop %v3153
        %v3392 = vrcp.pop %v3156
        %v3393 = vrcp.pop %v3159
        %v3394 = vrcp.pop %v3162
        %v3395 = vrcp.pop %v3165
        %v3396 = vrcp.pop %v3168
        %v3397 = vrcp.pop %v3171
        %v3398 = vrcp.pop %v3174
        %v3399 = vrcp.pop %v3177
        %v3400 = vrcp.pop %v3180
        %v3401 = vrcp.pop %v3183
        %v3402 = vrcp.pop %v3186
        %v3403 = vrcp.pop %v3189
        %v3404 = vrcp.pop %v3192
        %v3405 = vrcp.pop %v3195
        %v3406 = vrcp.pop %v3198
        %v3407 = vrcp.pop %v3201
        %v3408 = vrcp.pop %v3204
        %v3409 = vrcp.pop %v3207
        %v3410 = vrcp.pop %v3210
        %v3411 = vrcp.pop %v3213
        %v3412 = vrcp.pop %v3216
        %v3413 = vrcp.pop %v3219
        %v3414 = vrcp.pop %v3222
        %v3415 = vrcp.pop %v3225
        %v3416 = vrcp.pop %v3228
        %v3417 = vrcp.pop %v3231
        %v3418 = vrcp.pop %v3234
        %v3419 = vrcp.pop %v3237
        %v3420 = vrcp.pop %v3240
        %v3421 = vrcp.pop %v3243
        %v3422 = vrcp.pop %v3246
        %v3423 = vrcp.pop %v3249
        %v3424 = vrcp.pop %v3252
        %v3425 = vrcp.pop %v3255
        %v3426 = vrcp.pop %v3258
        %v3427 = vrcp.pop %v3261
        %v3428 = vrcp.pop %v3264
        %v3429 = vrcp.pop %v3267
        %v3430 = vrcp.pop %v3270
        %v3431 = vrcp.pop %v3273
        %v3432 = vrcp.pop %v3276
        %v3433 = vrcp.pop %v3279
        %v3434 = vrcp.pop %v3282
        %v3435 = vrcp.pop %v3285
        %v3436 = vrcp.pop %v3288
        %v3437 = vrcp.pop %v3291
        %v3438 = vrcp.pop %v3294
        %v3439 = vrcp.pop %v3297
        %v3440 = vrcp.pop %v3300
        %v3441 = vrcp.pop %v3303
        %v3442 = vrcp.pop %v3306
        %v3443 = vrcp.pop %v3309
        %v3444 = vrcp.pop %v3312
        %v3445 = vrcp.pop %v3315
        %v3446 = vrcp.pop %v3318
        %v3447 = vmul.f32 %v2424, %v3319
        %v3448 = vmul.f32 %v2426, %v3319
        %v3449 = vmul.f32 %v2428, %v3320
        %v3450 = vmul.f32 %v2430, %v3320
        %v3451 = vmul.f32 %v2432, %v3321
        %v3452 = vmul.f32 %v2434, %v3321
        %v3453 = vmul.f32 %v2436, %v3322
        %v3454 = vmul.f32 %v2438, %v3322
        %v3455 = vmul.f32 %v2440, %v3323
        %v3456 = vmul.f32 %v2442, %v3323
        %v3457 = vmul.f32 %v2444, %v3324
        %v3458 = vmul.f32 %v2446, %v3324
        %v3459 = vmul.f32 %v2448, %v3325
        %v3460 = vmul.f32 %v2450, %v3325
        %v3461 = vmul.f32 %v2452, %v3326
        %v3462 = vmul.f32 %v2454, %v3326
        %v3463 = vmul.f32 %v2456, %v3327
        %v3464 = vmul.f32 %v2458, %v3327
        %v3465 = vmul.f32 %v2460, %v3328
        %v3466 = vmul.f32 %v2462, %v3328
        %v3467 = vmul.f32 %v2464, %v3329
        %v3468 = vmul.f32 %v2466, %v3329
        %v3469 = vmul.f32 %v2468, %v3330
        %v3470 = vmul.f32 %v2470, %v3330
        %v3471 = vmul.f32 %v2472, %v3331
        %v3472 = vmul.f32 %v2474, %v3331
        %v3473 = vmul.f32 %v2476, %v3332
        %v3474 = vmul.f32 %v2478, %v3332
        %v3475 = vmul.f32 %v2480, %v3333
        %v3476 = vmul.f32 %v2482, %v3333
        %v3477 = vmul.f32 %v2484, %v3334
        %v3478 = vmul.f32 %v2486, %v3334
        %v3479 = vmul.f32 %v2488, %v3335
        %v3480 = vmul.f32 %v2490, %v3335
        %v3481 = vmul.f32 %v2492, %v3336
        %v3482 = vmul.f32 %v2494, %v3336
        %v3483 = vmul.f32 %v2496, %v3337
        %v3484 = vmul.f32 %v2498, %v3337
        %v3485 = vmul.f32 %v2500, %v3338
        %v3486 = vmul.f32 %v2502, %v3338
        %v3487 = vmul.f32 %v2504, %v3339
        %v3488 = vmul.f32 %v2506, %v3339
        %v3489 = vmul.f32 %v2508, %v3340
        %v3490 = vmul.f32 %v2510, %v3340
        %v3491 = vmul.f32 %v2512, %v3341
        %v3492 = vmul.f32 %v2514, %v3341
        %v3493 = vmul.f32 %v2516, %v3342
        %v3494 = vmul.f32 %v2518, %v3342
        %v3495 = vmul.f32 %v2520, %v3343
        %v3496 = vmul.f32 %v2522, %v3343
        %v3497 = vmul.f32 %v2524, %v3344
        %v3498 = vmul.f32 %v2526, %v3344
        %v3499 = vmul.f32 %v2528, %v3345
        %v3500 = vmul.f32 %v2530, %v3345
        %v3501 = vmul.f32 %v2532, %v3346
        %v3502 = vmul.f32 %v2534, %v3346
        %v3503 = vmul.f32 %v2536, %v3347
        %v3504 = vmul.f32 %v2538, %v3347
        %v3505 = vmul.f32 %v2540, %v3348
        %v3506 = vmul.f32 %v2542, %v3348
        %v3507 = vmul.f32 %v2544, %v3349
        %v3508 = vmul.f32 %v2546, %v3349
        %v3509 = vmul.f32 %v2548, %v3350
        %v3510 = vmul.f32 %v2550, %v3350
        %v3511 = vmul.f32 %v2552, %v3351
        %v3512 = vmul.f32 %v2554, %v3351
        %v3513 = vmul.f32 %v2556, %v3352
        %v3514 = vmul.f32 %v2558, %v3352
        %v3515 = vmul.f32 %v2560, %v3353
        %v3516 = vmul.f32 %v2562, %v3353
        %v3517 = vmul.f32 %v2564, %v3354
        %v3518 = vmul.f32 %v2566, %v3354
        %v3519 = vmul.f32 %v2568, %v3355
        %v3520 = vmul.f32 %v2570, %v3355
        %v3521 = vmul.f32 %v2572, %v3356
        %v3522 = vmul.f32 %v2574, %v3356
        %v3523 = vmul.f32 %v2576, %v3357
        %v3524 = vmul.f32 %v2578, %v3357
        %v3525 = vmul.f32 %v2580, %v3358
        %v3526 = vmul.f32 %v2582, %v3358
        %v3527 = vmul.f32 %v2584, %v3359
        %v3528 = vmul.f32 %v2586, %v3359
        %v3529 = vmul.f32 %v2588, %v3360
        %v3530 = vmul.f32 %v2590, %v3360
        %v3531 = vmul.f32 %v2592, %v3361
        %v3532 = vmul.f32 %v2594, %v3361
        %v3533 = vmul.f32 %v2596, %v3362
        %v3534 = vmul.f32 %v2598, %v3362
        %v3535 = vmul.f32 %v2600, %v3363
        %v3536 = vmul.f32 %v2602, %v3363
        %v3537 = vmul.f32 %v2604, %v3364
        %v3538 = vmul.f32 %v2606, %v3364
        %v3539 = vmul.f32 %v2608, %v3365
        %v3540 = vmul.f32 %v2610, %v3365
        %v3541 = vmul.f32 %v2612, %v3366
        %v3542 = vmul.f32 %v2614, %v3366
        %v3543 = vmul.f32 %v2616, %v3367
        %v3544 = vmul.f32 %v2618, %v3367
        %v3545 = vmul.f32 %v2620, %v3368
        %v3546 = vmul.f32 %v2622, %v3368
        %v3547 = vmul.f32 %v2624, %v3369
        %v3548 = vmul.f32 %v2626, %v3369
        %v3549 = vmul.f32 %v2628, %v3370
        %v3550 = vmul.f32 %v2630, %v3370
        %v3551 = vmul.f32 %v2632, %v3371
        %v3552 = vmul.f32 %v2634, %v3371
        %v3553 = vmul.f32 %v2636, %v3372
        %v3554 = vmul.f32 %v2638, %v3372
        %v3555 = vmul.f32 %v2640, %v3373
        %v3556 = vmul.f32 %v2642, %v3373
        %v3557 = vmul.f32 %v2644, %v3374
        %v3558 = vmul.f32 %v2646, %v3374
        %v3559 = vmul.f32 %v2648, %v3375
        %v3560 = vmul.f32 %v2650, %v3375
        %v3561 = vmul.f32 %v2652, %v3376
        %v3562 = vmul.f32 %v2654, %v3376
        %v3563 = vmul.f32 %v2656, %v3377
        %v3564 = vmul.f32 %v2658, %v3377
        %v3565 = vmul.f32 %v2660, %v3378
        %v3566 = vmul.f32 %v2662, %v3378
        %v3567 = vmul.f32 %v2664, %v3379
        %v3568 = vmul.f32 %v2666, %v3379
        %v3569 = vmul.f32 %v2668, %v3380
        %v3570 = vmul.f32 %v2670, %v3380
        %v3571 = vmul.f32 %v2672, %v3381
        %v3572 = vmul.f32 %v2674, %v3381
        %v3573 = vmul.f32 %v2676, %v3382
        %v3574 = vmul.f32 %v2678, %v3382
        %v3575 = vmul.f32 %v2680, %v3383
        %v3576 = vmul.f32 %v2682, %v3383
        %v3577 = vmul.f32 %v2684, %v3384
        %v3578 = vmul.f32 %v2686, %v3384
        %v3579 = vmul.f32 %v2688, %v3385
        %v3580 = vmul.f32 %v2690, %v3385
        %v3581 = vmul.f32 %v2692, %v3386
        %v3582 = vmul.f32 %v2694, %v3386
        %v3583 = vmul.f32 %v2696, %v3387
        %v3584 = vmul.f32 %v2698, %v3387
        %v3585 = vmul.f32 %v2700, %v3388
        %v3586 = vmul.f32 %v2702, %v3388
        %v3587 = vmul.f32 %v2704, %v3389
        %v3588 = vmul.f32 %v2706, %v3389
        %v3589 = vmul.f32 %v2708, %v3390
        %v3590 = vmul.f32 %v2710, %v3390
        %v3591 = vmul.f32 %v2712, %v3391
        %v3592 = vmul.f32 %v2714, %v3391
        %v3593 = vmul.f32 %v2716, %v3392
        %v3594 = vmul.f32 %v2718, %v3392
        %v3595 = vmul.f32 %v2720, %v3393
        %v3596 = vmul.f32 %v2722, %v3393
        %v3597 = vmul.f32 %v2724, %v3394
        %v3598 = vmul.f32 %v2726, %v3394
        %v3599 = vmul.f32 %v2728, %v3395
        %v3600 = vmul.f32 %v2730, %v3395
        %v3601 = vmul.f32 %v2732, %v3396
        %v3602 = vmul.f32 %v2734, %v3396
        %v3603 = vmul.f32 %v2736, %v3397
        %v3604 = vmul.f32 %v2738, %v3397
        %v3605 = vmul.f32 %v2740, %v3398
        %v3606 = vmul.f32 %v2742, %v3398
        %v3607 = vmul.f32 %v2744, %v3399
        %v3608 = vmul.f32 %v2746, %v3399
        %v3609 = vmul.f32 %v2748, %v3400
        %v3610 = vmul.f32 %v2750, %v3400
        %v3611 = vmul.f32 %v2752, %v3401
        %v3612 = vmul.f32 %v2754, %v3401
        %v3613 = vmul.f32 %v2756, %v3402
        %v3614 = vmul.f32 %v2758, %v3402
        %v3615 = vmul.f32 %v2760, %v3403
        %v3616 = vmul.f32 %v2762, %v3403
        %v3617 = vmul.f32 %v2764, %v3404
        %v3618 = vmul.f32 %v2766, %v3404
        %v3619 = vmul.f32 %v2768, %v3405
        %v3620 = vmul.f32 %v2770, %v3405
        %v3621 = vmul.f32 %v2772, %v3406
        %v3622 = vmul.f32 %v2774, %v3406
        %v3623 = vmul.f32 %v2776, %v3407
        %v3624 = vmul.f32 %v2778, %v3407
        %v3625 = vmul.f32 %v2780, %v3408
        %v3626 = vmul.f32 %v2782, %v3408
        %v3627 = vmul.f32 %v2784, %v3409
        %v3628 = vmul.f32 %v2786, %v3409
        %v3629 = vmul.f32 %v2788, %v3410
        %v3630 = vmul.f32 %v2790, %v3410
        %v3631 = vmul.f32 %v2792, %v3411
        %v3632 = vmul.f32 %v2794, %v3411
        %v3633 = vmul.f32 %v2796, %v3412
        %v3634 = vmul.f32 %v2798, %v3412
        %v3635 = vmul.f32 %v2800, %v3413
        %v3636 = vmul.f32 %v2802, %v3413
        %v3637 = vmul.f32 %v2804, %v3414
        %v3638 = vmul.f32 %v2806, %v3414
        %v3639 = vmul.f32 %v2808, %v3415
        %v3640 = vmul.f32 %v2810, %v3415
        %v3641 = vmul.f32 %v2812, %v3416
        %v3642 = vmul.f32 %v2814, %v3416
        %v3643 = vmul.f32 %v2816, %v3417
        %v3644 = vmul.f32 %v2818, %v3417
        %v3645 = vmul.f32 %v2820, %v3418
        %v3646 = vmul.f32 %v2822, %v3418
        %v3647 = vmul.f32 %v2824, %v3419
        %v3648 = vmul.f32 %v2826, %v3419
        %v3649 = vmul.f32 %v2828, %v3420
        %v3650 = vmul.f32 %v2830, %v3420
        %v3651 = vmul.f32 %v2832, %v3421
        %v3652 = vmul.f32 %v2834, %v3421
        %v3653 = vmul.f32 %v2836, %v3422
        %v3654 = vmul.f32 %v2838, %v3422
        %v3655 = vmul.f32 %v2840, %v3423
        %v3656 = vmul.f32 %v2842, %v3423
        %v3657 = vmul.f32 %v2844, %v3424
        %v3658 = vmul.f32 %v2846, %v3424
        %v3659 = vmul.f32 %v2848, %v3425
        %v3660 = vmul.f32 %v2850, %v3425
        %v3661 = vmul.f32 %v2852, %v3426
        %v3662 = vmul.f32 %v2854, %v3426
        %v3663 = vmul.f32 %v2856, %v3427
        %v3664 = vmul.f32 %v2858, %v3427
        %v3665 = vmul.f32 %v2860, %v3428
        %v3666 = vmul.f32 %v2862, %v3428
        %v3667 = vmul.f32 %v2864, %v3429
        %v3668 = vmul.f32 %v2866, %v3429
        %v3669 = vmul.f32 %v2868, %v3430
        %v3670 = vmul.f32 %v2870, %v3430
        %v3671 = vmul.f32 %v2872, %v3431
        %v3672 = vmul.f32 %v2874, %v3431
        %v3673 = vmul.f32 %v2876, %v3432
        %v3674 = vmul.f32 %v2878, %v3432
        %v3675 = vmul.f32 %v2880, %v3433
        %v3676 = vmul.f32 %v2882, %v3433
        %v3677 = vmul.f32 %v2884, %v3434
        %v3678 = vmul.f32 %v2886, %v3434
        %v3679 = vmul.f32 %v2888, %v3435
        %v3680 = vmul.f32 %v2890, %v3435
        %v3681 = vmul.f32 %v2892, %v3436
        %v3682 = vmul.f32 %v2894, %v3436
        %v3683 = vmul.f32 %v2896, %v3437
        %v3684 = vmul.f32 %v2898, %v3437
        %v3685 = vmul.f32 %v2900, %v3438
        %v3686 = vmul.f32 %v2902, %v3438
        %v3687 = vmul.f32 %v2904, %v3439
        %v3688 = vmul.f32 %v2906, %v3439
        %v3689 = vmul.f32 %v2908, %v3440
        %v3690 = vmul.f32 %v2910, %v3440
        %v3691 = vmul.f32 %v2912, %v3441
        %v3692 = vmul.f32 %v2914, %v3441
        %v3693 = vmul.f32 %v2916, %v3442
        %v3694 = vmul.f32 %v2918, %v3442
        %v3695 = vmul.f32 %v2920, %v3443
        %v3696 = vmul.f32 %v2922, %v3443
        %v3697 = vmul.f32 %v2924, %v3444
        %v3698 = vmul.f32 %v2926, %v3444
        %v3699 = vmul.f32 %v2928, %v3445
        %v3700 = vmul.f32 %v2930, %v3445
        %v3701 = vmul.f32 %v2932, %v3446
        %v3702 = vmul.f32 %v2934, %v3446
        %v3703 = vpack.c.bf16 %v3448, %v3447
        %v3704 = vpack.c.bf16 %v3450, %v3449
        %v3705 = vpack.c.bf16 %v3452, %v3451
        %v3706 = vpack.c.bf16 %v3454, %v3453
        %v3707 = vpack.c.bf16 %v3456, %v3455
        %v3708 = vpack.c.bf16 %v3458, %v3457
        %v3709 = vpack.c.bf16 %v3460, %v3459
        %v3710 = vpack.c.bf16 %v3462, %v3461
        %v3711 = vpack.c.bf16 %v3464, %v3463
        %v3712 = vpack.c.bf16 %v3466, %v3465
        %v3713 = vpack.c.bf16 %v3468, %v3467
        %v3714 = vpack.c.bf16 %v3470, %v3469
        %v3715 = vpack.c.bf16 %v3472, %v3471
        %v3716 = vpack.c.bf16 %v3474, %v3473
        %v3717 = vpack.c.bf16 %v3476, %v3475
        %v3718 = vpack.c.bf16 %v3478, %v3477
        %v3719 = vpack.c.bf16 %v3480, %v3479
        %v3720 = vpack.c.bf16 %v3482, %v3481
        %v3721 = vpack.c.bf16 %v3484, %v3483
        %v3722 = vpack.c.bf16 %v3486, %v3485
        %v3723 = vpack.c.bf16 %v3488, %v3487
        %v3724 = vpack.c.bf16 %v3490, %v3489
        %v3725 = vpack.c.bf16 %v3492, %v3491
        %v3726 = vpack.c.bf16 %v3494, %v3493
        %v3727 = vpack.c.bf16 %v3496, %v3495
        %v3728 = vpack.c.bf16 %v3498, %v3497
        %v3729 = vpack.c.bf16 %v3500, %v3499
        %v3730 = vpack.c.bf16 %v3502, %v3501
        %v3731 = vpack.c.bf16 %v3504, %v3503
        %v3732 = vpack.c.bf16 %v3506, %v3505
        %v3733 = vpack.c.bf16 %v3508, %v3507
        %v3734 = vpack.c.bf16 %v3510, %v3509
        %v3735 = vpack.c.bf16 %v3512, %v3511
        %v3736 = vpack.c.bf16 %v3514, %v3513
        %v3737 = vpack.c.bf16 %v3516, %v3515
        %v3738 = vpack.c.bf16 %v3518, %v3517
        %v3739 = vpack.c.bf16 %v3520, %v3519
        %v3740 = vpack.c.bf16 %v3522, %v3521
        %v3741 = vpack.c.bf16 %v3524, %v3523
        %v3742 = vpack.c.bf16 %v3526, %v3525
        %v3743 = vpack.c.bf16 %v3528, %v3527
        %v3744 = vpack.c.bf16 %v3530, %v3529
        %v3745 = vpack.c.bf16 %v3532, %v3531
        %v3746 = vpack.c.bf16 %v3534, %v3533
        %v3747 = vpack.c.bf16 %v3536, %v3535
        %v3748 = vpack.c.bf16 %v3538, %v3537
        %v3749 = vpack.c.bf16 %v3540, %v3539
        %v3750 = vpack.c.bf16 %v3542, %v3541
        %v3751 = vpack.c.bf16 %v3544, %v3543
        %v3752 = vpack.c.bf16 %v3546, %v3545
        %v3753 = vpack.c.bf16 %v3548, %v3547
        %v3754 = vpack.c.bf16 %v3550, %v3549
        %v3755 = vpack.c.bf16 %v3552, %v3551
        %v3756 = vpack.c.bf16 %v3554, %v3553
        %v3757 = vpack.c.bf16 %v3556, %v3555
        %v3758 = vpack.c.bf16 %v3558, %v3557
        %v3759 = vpack.c.bf16 %v3560, %v3559
        %v3760 = vpack.c.bf16 %v3562, %v3561
        %v3761 = vpack.c.bf16 %v3564, %v3563
        %v3762 = vpack.c.bf16 %v3566, %v3565
        %v3763 = vpack.c.bf16 %v3568, %v3567
        %v3764 = vpack.c.bf16 %v3570, %v3569
        %v3765 = vpack.c.bf16 %v3572, %v3571
        %v3766 = vpack.c.bf16 %v3574, %v3573
        %v3767 = vpack.c.bf16 %v3576, %v3575
        %v3768 = vpack.c.bf16 %v3578, %v3577
        %v3769 = vpack.c.bf16 %v3580, %v3579
        %v3770 = vpack.c.bf16 %v3582, %v3581
        %v3771 = vpack.c.bf16 %v3584, %v3583
        %v3772 = vpack.c.bf16 %v3586, %v3585
        %v3773 = vpack.c.bf16 %v3588, %v3587
        %v3774 = vpack.c.bf16 %v3590, %v3589
        %v3775 = vpack.c.bf16 %v3592, %v3591
        %v3776 = vpack.c.bf16 %v3594, %v3593
        %v3777 = vpack.c.bf16 %v3596, %v3595
        %v3778 = vpack.c.bf16 %v3598, %v3597
        %v3779 = vpack.c.bf16 %v3600, %v3599
        %v3780 = vpack.c.bf16 %v3602, %v3601
        %v3781 = vpack.c.bf16 %v3604, %v3603
        %v3782 = vpack.c.bf16 %v3606, %v3605
        %v3783 = vpack.c.bf16 %v3608, %v3607
        %v3784 = vpack.c.bf16 %v3610, %v3609
        %v3785 = vpack.c.bf16 %v3612, %v3611
        %v3786 = vpack.c.bf16 %v3614, %v3613
        %v3787 = vpack.c.bf16 %v3616, %v3615
        %v3788 = vpack.c.bf16 %v3618, %v3617
        %v3789 = vpack.c.bf16 %v3620, %v3619
        %v3790 = vpack.c.bf16 %v3622, %v3621
        %v3791 = vpack.c.bf16 %v3624, %v3623
        %v3792 = vpack.c.bf16 %v3626, %v3625
        %v3793 = vpack.c.bf16 %v3628, %v3627
        %v3794 = vpack.c.bf16 %v3630, %v3629
        %v3795 = vpack.c.bf16 %v3632, %v3631
        %v3796 = vpack.c.bf16 %v3634, %v3633
        %v3797 = vpack.c.bf16 %v3636, %v3635
        %v3798 = vpack.c.bf16 %v3638, %v3637
        %v3799 = vpack.c.bf16 %v3640, %v3639
        %v3800 = vpack.c.bf16 %v3642, %v3641
        %v3801 = vpack.c.bf16 %v3644, %v3643
        %v3802 = vpack.c.bf16 %v3646, %v3645
        %v3803 = vpack.c.bf16 %v3648, %v3647
        %v3804 = vpack.c.bf16 %v3650, %v3649
        %v3805 = vpack.c.bf16 %v3652, %v3651
        %v3806 = vpack.c.bf16 %v3654, %v3653
        %v3807 = vpack.c.bf16 %v3656, %v3655
        %v3808 = vpack.c.bf16 %v3658, %v3657
        %v3809 = vpack.c.bf16 %v3660, %v3659
        %v3810 = vpack.c.bf16 %v3662, %v3661
        %v3811 = vpack.c.bf16 %v3664, %v3663
        %v3812 = vpack.c.bf16 %v3666, %v3665
        %v3813 = vpack.c.bf16 %v3668, %v3667
        %v3814 = vpack.c.bf16 %v3670, %v3669
        %v3815 = vpack.c.bf16 %v3672, %v3671
        %v3816 = vpack.c.bf16 %v3674, %v3673
        %v3817 = vpack.c.bf16 %v3676, %v3675
        %v3818 = vpack.c.bf16 %v3678, %v3677
        %v3819 = vpack.c.bf16 %v3680, %v3679
        %v3820 = vpack.c.bf16 %v3682, %v3681
        %v3821 = vpack.c.bf16 %v3684, %v3683
        %v3822 = vpack.c.bf16 %v3686, %v3685
        %v3823 = vpack.c.bf16 %v3688, %v3687
        %v3824 = vpack.c.bf16 %v3690, %v3689
        %v3825 = vpack.c.bf16 %v3692, %v3691
        %v3826 = vpack.c.bf16 %v3694, %v3693
        %v3827 = vpack.c.bf16 %v3696, %v3695
        %v3828 = vpack.c.bf16 %v3698, %v3697
        %v3829 = vpack.c.bf16 %v3700, %v3699
        %v3830 = vpack.c.bf16 %v3702, %v3701
        %v3833 = vunpack.c.l.b16 %v694
        %v3834 = vunpack.c.h.b16 %v694
        %v3835 = vunpack.c.l.b16 %v695
        %v3836 = vunpack.c.h.b16 %v695
        %v3837 = vpack.c.b16 %v3835, %v3833
        %v3838 = vpack.c.b16 %v3836, %v3834
        %v3873 = vunpack.c.l.b16 %v3703
        %v3874 = vunpack.c.h.b16 %v3703
        %v3875 = vunpack.c.l.b16 %v3704
        %v3876 = vunpack.c.h.b16 %v3704
        %v3877 = vunpack.c.l.b16 %v3705
        %v3878 = vunpack.c.h.b16 %v3705
        %v3879 = vunpack.c.l.b16 %v3706
        %v3880 = vunpack.c.h.b16 %v3706
        %v3881 = vunpack.c.l.b16 %v3707
        %v3882 = vunpack.c.h.b16 %v3707
        %v3883 = vunpack.c.l.b16 %v3708
        %v3884 = vunpack.c.h.b16 %v3708
        %v3885 = vunpack.c.l.b16 %v3709
        %v3886 = vunpack.c.h.b16 %v3709
        %v3887 = vunpack.c.l.b16 %v3710
        %v3888 = vunpack.c.h.b16 %v3710
        %v3889 = vunpack.c.l.b16 %v3711
        %v3890 = vunpack.c.h.b16 %v3711
        %v3891 = vunpack.c.l.b16 %v3712
        %v3892 = vunpack.c.h.b16 %v3712
        %v3893 = vunpack.c.l.b16 %v3713
        %v3894 = vunpack.c.h.b16 %v3713
        %v3895 = vunpack.c.l.b16 %v3714
        %v3896 = vunpack.c.h.b16 %v3714
        %v3897 = vunpack.c.l.b16 %v3715
        %v3898 = vunpack.c.h.b16 %v3715
        %v3899 = vunpack.c.l.b16 %v3716
        %v3900 = vunpack.c.h.b16 %v3716
        %v3901 = vunpack.c.l.b16 %v3717
        %v3902 = vunpack.c.h.b16 %v3717
        %v3903 = vunpack.c.l.b16 %v3718
        %v3904 = vunpack.c.h.b16 %v3718
        %v3905 = vunpack.c.l.b16 %v3719
        %v3906 = vunpack.c.h.b16 %v3719
        %v3907 = vunpack.c.l.b16 %v3720
        %v3908 = vunpack.c.h.b16 %v3720
        %v3909 = vunpack.c.l.b16 %v3721
        %v3910 = vunpack.c.h.b16 %v3721
        %v3911 = vunpack.c.l.b16 %v3722
        %v3912 = vunpack.c.h.b16 %v3722
        %v3913 = vunpack.c.l.b16 %v3723
        %v3914 = vunpack.c.h.b16 %v3723
        %v3915 = vunpack.c.l.b16 %v3724
        %v3916 = vunpack.c.h.b16 %v3724
        %v3917 = vunpack.c.l.b16 %v3725
        %v3918 = vunpack.c.h.b16 %v3725
        %v3919 = vunpack.c.l.b16 %v3726
        %v3920 = vunpack.c.h.b16 %v3726
        %v3921 = vunpack.c.l.b16 %v3727
        %v3922 = vunpack.c.h.b16 %v3727
        %v3923 = vunpack.c.l.b16 %v3728
        %v3924 = vunpack.c.h.b16 %v3728
        %v3925 = vunpack.c.l.b16 %v3729
        %v3926 = vunpack.c.h.b16 %v3729
        %v3927 = vunpack.c.l.b16 %v3730
        %v3928 = vunpack.c.h.b16 %v3730
        %v3929 = vunpack.c.l.b16 %v3731
        %v3930 = vunpack.c.h.b16 %v3731
        %v3931 = vunpack.c.l.b16 %v3732
        %v3932 = vunpack.c.h.b16 %v3732
        %v3933 = vunpack.c.l.b16 %v3733
        %v3934 = vunpack.c.h.b16 %v3733
        %v3935 = vunpack.c.l.b16 %v3734
        %v3936 = vunpack.c.h.b16 %v3734
        %v3937 = vpack.c.b16 %v3875, %v3873
        %v3938 = vpack.c.b16 %v3876, %v3874
        %v3939 = vpack.c.b16 %v3879, %v3877
        %v3940 = vpack.c.b16 %v3880, %v3878
        %v3941 = vpack.c.b16 %v3883, %v3881
        %v3942 = vpack.c.b16 %v3884, %v3882
        %v3943 = vpack.c.b16 %v3887, %v3885
        %v3944 = vpack.c.b16 %v3888, %v3886
        %v3945 = vpack.c.b16 %v3891, %v3889
        %v3946 = vpack.c.b16 %v3892, %v3890
        %v3947 = vpack.c.b16 %v3895, %v3893
        %v3948 = vpack.c.b16 %v3896, %v3894
        %v3949 = vpack.c.b16 %v3899, %v3897
        %v3950 = vpack.c.b16 %v3900, %v3898
        %v3951 = vpack.c.b16 %v3903, %v3901
        %v3952 = vpack.c.b16 %v3904, %v3902
        %v3953 = vpack.c.b16 %v3907, %v3905
        %v3954 = vpack.c.b16 %v3908, %v3906
        %v3955 = vpack.c.b16 %v3911, %v3909
        %v3956 = vpack.c.b16 %v3912, %v3910
        %v3957 = vpack.c.b16 %v3915, %v3913
        %v3958 = vpack.c.b16 %v3916, %v3914
        %v3959 = vpack.c.b16 %v3919, %v3917
        %v3960 = vpack.c.b16 %v3920, %v3918
        %v3961 = vpack.c.b16 %v3923, %v3921
        %v3962 = vpack.c.b16 %v3924, %v3922
        %v3963 = vpack.c.b16 %v3927, %v3925
        %v3964 = vpack.c.b16 %v3928, %v3926
        %v3965 = vpack.c.b16 %v3931, %v3929
        %v3966 = vpack.c.b16 %v3932, %v3930
        %v3967 = vpack.c.b16 %v3935, %v3933
        %v3968 = vpack.c.b16 %v3936, %v3934
        %4001 = vmatpush.bf16.msra.mxu0 %v3951
        %4002 = vmatpush.bf16.msra.mxu0 %v3949
        %4003 = vmatpush.bf16.msra.mxu0 %v3947
        %4004 = vmatpush.bf16.msra.mxu0 %v3945
        %4005 = vmatpush.bf16.msra.mxu0 %v3943
        %4006 = vmatpush.bf16.msra.mxu0 %v3941
        %4007 = vmatpush.bf16.msra.mxu0 %v3939
        %4008 = vmatpush.bf16.msra.mxu0 %v3937
        %4009 = vmatmul.bf16.gmra.mxu0 %v3837
        %v4010 = vpop.f32.mrf.mxu0
        %v4011 = vadd.f32 0.0, %v4010
        %v4012 = vpop.f32.mrf.mxu0
        %v4013 = vadd.f32 0.0, %v4012
        %4014 = vdwg.mxu0
        %4015 = vmatpush.bf16.msra.mxu0 %v3967
        %4016 = vmatpush.bf16.msra.mxu0 %v3965
        %4017 = vmatpush.bf16.msra.mxu0 %v3963
        %4018 = vmatpush.bf16.msra.mxu0 %v3961
        %4019 = vmatpush.bf16.msra.mxu0 %v3959
        %4020 = vmatpush.bf16.msra.mxu0 %v3957
        %4021 = vmatpush.bf16.msra.mxu0 %v3955
        %4022 = vmatpush.bf16.msra.mxu0 %v3953
        %4023 = vmatmul.bf16.gmra.mxu0 %v3838
        %v4024 = vpop.f32.mrf.mxu0
        %v4025 = vadd.f32 %v4011, %v4024
        %v4026 = vpop.f32.mrf.mxu0
        %v4027 = vadd.f32 %v4013, %v4026
        %4028 = vdwg.mxu0
        %4029 = vmatpush.bf16.msra.mxu0 %v3952
        %4030 = vmatpush.bf16.msra.mxu0 %v3950
        %4031 = vmatpush.bf16.msra.mxu0 %v3948
        %4032 = vmatpush.bf16.msra.mxu0 %v3946
        %4033 = vmatpush.bf16.msra.mxu0 %v3944
        %4034 = vmatpush.bf16.msra.mxu0 %v3942
        %4035 = vmatpush.bf16.msra.mxu0 %v3940
        %4036 = vmatpush.bf16.msra.mxu0 %v3938
        %4037 = vmatmul.bf16.gmra.mxu0 %v3837
        %v4038 = vpop.f32.mrf.mxu0
        %v4039 = vadd.f32 0.0, %v4038
        %v4040 = vpop.f32.mrf.mxu0
        %v4041 = vadd.f32 0.0, %v4040
        %4042 = vdwg.mxu0
        %4043 = vmatpush.bf16.msra.mxu0 %v3968
        %4044 = vmatpush.bf16.msra.mxu0 %v3966
        %4045 = vmatpush.bf16.msra.mxu0 %v3964
        %4046 = vmatpush.bf16.msra.mxu0 %v3962
        %4047 = vmatpush.bf16.msra.mxu0 %v3960
        %4048 = vmatpush.bf16.msra.mxu0 %v3958
        %4049 = vmatpush.bf16.msra.mxu0 %v3956
        %4050 = vmatpush.bf16.msra.mxu0 %v3954
        %4051 = vmatmul.bf16.gmra.mxu0 %v3838
        %v4052 = vpop.f32.mrf.mxu0
        %v4053 = vadd.f32 %v4039, %v4052
        %v4054 = vpop.f32.mrf.mxu0
        %v4055 = vadd.f32 %v4041, %v4054
        %4056 = vdwg.mxu0
        %v4059 = vunpack.c.l.b16 %v696
        %v4060 = vunpack.c.h.b16 %v696
        %v4061 = vunpack.c.l.b16 %v697
        %v4062 = vunpack.c.h.b16 %v697
        %v4063 = vpack.c.b16 %v4061, %v4059
        %v4064 = vpack.c.b16 %v4062, %v4060
        %v4099 = vunpack.c.l.b16 %v3735
        %v4100 = vunpack.c.h.b16 %v3735
        %v4101 = vunpack.c.l.b16 %v3736
        %v4102 = vunpack.c.h.b16 %v3736
        %v4103 = vunpack.c.l.b16 %v3737
        %v4104 = vunpack.c.h.b16 %v3737
        %v4105 = vunpack.c.l.b16 %v3738
        %v4106 = vunpack.c.h.b16 %v3738
        %v4107 = vunpack.c.l.b16 %v3739
        %v4108 = vunpack.c.h.b16 %v3739
        %v4109 = vunpack.c.l.b16 %v3740
        %v4110 = vunpack.c.h.b16 %v3740
        %v4111 = vunpack.c.l.b16 %v3741
        %v4112 = vunpack.c.h.b16 %v3741
        %v4113 = vunpack.c.l.b16 %v3742
        %v4114 = vunpack.c.h.b16 %v3742
        %v4115 = vunpack.c.l.b16 %v3743
        %v4116 = vunpack.c.h.b16 %v3743
        %v4117 = vunpack.c.l.b16 %v3744
        %v4118 = vunpack.c.h.b16 %v3744
        %v4119 = vunpack.c.l.b16 %v3745
        %v4120 = vunpack.c.h.b16 %v3745
        %v4121 = vunpack.c.l.b16 %v3746
        %v4122 = vunpack.c.h.b16 %v3746
        %v4123 = vunpack.c.l.b16 %v3747
        %v4124 = vunpack.c.h.b16 %v3747
        %v4125 = vunpack.c.l.b16 %v3748
        %v4126 = vunpack.c.h.b16 %v3748
        %v4127 = vunpack.c.l.b16 %v3749
        %v4128 = vunpack.c.h.b16 %v3749
        %v4129 = vunpack.c.l.b16 %v3750
        %v4130 = vunpack.c.h.b16 %v3750
        %v4131 = vunpack.c.l.b16 %v3751
        %v4132 = vunpack.c.h.b16 %v3751
        %v4133 = vunpack.c.l.b16 %v3752
        %v4134 = vunpack.c.h.b16 %v3752
        %v4135 = vunpack.c.l.b16 %v3753
        %v4136 = vunpack.c.h.b16 %v3753
        %v4137 = vunpack.c.l.b16 %v3754
        %v4138 = vunpack.c.h.b16 %v3754
        %v4139 = vunpack.c.l.b16 %v3755
        %v4140 = vunpack.c.h.b16 %v3755
        %v4141 = vunpack.c.l.b16 %v3756
        %v4142 = vunpack.c.h.b16 %v3756
        %v4143 = vunpack.c.l.b16 %v3757
        %v4144 = vunpack.c.h.b16 %v3757
        %v4145 = vunpack.c.l.b16 %v3758
        %v4146 = vunpack.c.h.b16 %v3758
        %v4147 = vunpack.c.l.b16 %v3759
        %v4148 = vunpack.c.h.b16 %v3759
        %v4149 = vunpack.c.l.b16 %v3760
        %v4150 = vunpack.c.h.b16 %v3760
        %v4151 = vunpack.c.l.b16 %v3761
        %v4152 = vunpack.c.h.b16 %v3761
        %v4153 = vunpack.c.l.b16 %v3762
        %v4154 = vunpack.c.h.b16 %v3762
        %v4155 = vunpack.c.l.b16 %v3763
        %v4156 = vunpack.c.h.b16 %v3763
        %v4157 = vunpack.c.l.b16 %v3764
        %v4158 = vunpack.c.h.b16 %v3764
        %v4159 = vunpack.c.l.b16 %v3765
        %v4160 = vunpack.c.h.b16 %v3765
        %v4161 = vunpack.c.l.b16 %v3766
        %v4162 = vunpack.c.h.b16 %v3766
        %v4163 = vpack.c.b16 %v4101, %v4099
        %v4164 = vpack.c.b16 %v4102, %v4100
        %v4165 = vpack.c.b16 %v4105, %v4103
        %v4166 = vpack.c.b16 %v4106, %v4104
        %v4167 = vpack.c.b16 %v4109, %v4107
        %v4168 = vpack.c.b16 %v4110, %v4108
        %v4169 = vpack.c.b16 %v4113, %v4111
        %v4170 = vpack.c.b16 %v4114, %v4112
        %v4171 = vpack.c.b16 %v4117, %v4115
        %v4172 = vpack.c.b16 %v4118, %v4116
        %v4173 = vpack.c.b16 %v4121, %v4119
        %v4174 = vpack.c.b16 %v4122, %v4120
        %v4175 = vpack.c.b16 %v4125, %v4123
        %v4176 = vpack.c.b16 %v4126, %v4124
        %v4177 = vpack.c.b16 %v4129, %v4127
        %v4178 = vpack.c.b16 %v4130, %v4128
        %v4179 = vpack.c.b16 %v4133, %v4131
        %v4180 = vpack.c.b16 %v4134, %v4132
        %v4181 = vpack.c.b16 %v4137, %v4135
        %v4182 = vpack.c.b16 %v4138, %v4136
        %v4183 = vpack.c.b16 %v4141, %v4139
        %v4184 = vpack.c.b16 %v4142, %v4140
        %v4185 = vpack.c.b16 %v4145, %v4143
        %v4186 = vpack.c.b16 %v4146, %v4144
        %v4187 = vpack.c.b16 %v4149, %v4147
        %v4188 = vpack.c.b16 %v4150, %v4148
        %v4189 = vpack.c.b16 %v4153, %v4151
        %v4190 = vpack.c.b16 %v4154, %v4152
        %v4191 = vpack.c.b16 %v4157, %v4155
        %v4192 = vpack.c.b16 %v4158, %v4156
        %v4193 = vpack.c.b16 %v4161, %v4159
        %v4194 = vpack.c.b16 %v4162, %v4160
        %4227 = vmatpush.bf16.msra.mxu0 %v4177
        %4228 = vmatpush.bf16.msra.mxu0 %v4175
        %4229 = vmatpush.bf16.msra.mxu0 %v4173
        %4230 = vmatpush.bf16.msra.mxu0 %v4171
        %4231 = vmatpush.bf16.msra.mxu0 %v4169
        %4232 = vmatpush.bf16.msra.mxu0 %v4167
        %4233 = vmatpush.bf16.msra.mxu0 %v4165
        %4234 = vmatpush.bf16.msra.mxu0 %v4163
        %4235 = vmatmul.bf16.gmra.mxu0 %v4063
        %v4236 = vpop.f32.mrf.mxu0
        %v4237 = vadd.f32 0.0, %v4236
        %v4238 = vpop.f32.mrf.mxu0
        %v4239 = vadd.f32 0.0, %v4238
        %4240 = vdwg.mxu0
        %4241 = vmatpush.bf16.msra.mxu0 %v4193
        %4242 = vmatpush.bf16.msra.mxu0 %v4191
        %4243 = vmatpush.bf16.msra.mxu0 %v4189
        %4244 = vmatpush.bf16.msra.mxu0 %v4187
        %4245 = vmatpush.bf16.msra.mxu0 %v4185
        %4246 = vmatpush.bf16.msra.mxu0 %v4183
        %4247 = vmatpush.bf16.msra.mxu0 %v4181
        %4248 = vmatpush.bf16.msra.mxu0 %v4179
        %4249 = vmatmul.bf16.gmra.mxu0 %v4064
        %v4250 = vpop.f32.mrf.mxu0
        %v4251 = vadd.f32 %v4237, %v4250
        %v4252 = vpop.f32.mrf.mxu0
        %v4253 = vadd.f32 %v4239, %v4252
        %4254 = vdwg.mxu0
        %4255 = vmatpush.bf16.msra.mxu0 %v4178
        %4256 = vmatpush.bf16.msra.mxu0 %v4176
        %4257 = vmatpush.bf16.msra.mxu0 %v4174
        %4258 = vmatpush.bf16.msra.mxu0 %v4172
        %4259 = vmatpush.bf16.msra.mxu0 %v4170
        %4260 = vmatpush.bf16.msra.mxu0 %v4168
        %4261 = vmatpush.bf16.msra.mxu0 %v4166
        %4262 = vmatpush.bf16.msra.mxu0 %v4164
        %4263 = vmatmul.bf16.gmra.mxu0 %v4063
        %v4264 = vpop.f32.mrf.mxu0
        %v4265 = vadd.f32 0.0, %v4264
        %v4266 = vpop.f32.mrf.mxu0
        %v4267 = vadd.f32 0.0, %v4266
        %4268 = vdwg.mxu0
        %4269 = vmatpush.bf16.msra.mxu0 %v4194
        %4270 = vmatpush.bf16.msra.mxu0 %v4192
        %4271 = vmatpush.bf16.msra.mxu0 %v4190
        %4272 = vmatpush.bf16.msra.mxu0 %v4188
        %4273 = vmatpush.bf16.msra.mxu0 %v4186
        %4274 = vmatpush.bf16.msra.mxu0 %v4184
        %4275 = vmatpush.bf16.msra.mxu0 %v4182
        %4276 = vmatpush.bf16.msra.mxu0 %v4180
        %4277 = vmatmul.bf16.gmra.mxu0 %v4064
        %v4278 = vpop.f32.mrf.mxu0
        %v4279 = vadd.f32 %v4265, %v4278
        %v4280 = vpop.f32.mrf.mxu0
        %v4281 = vadd.f32 %v4267, %v4280
        %4282 = vdwg.mxu0
        %v4285 = vunpack.c.l.b16 %v698
        %v4286 = vunpack.c.h.b16 %v698
        %v4287 = vunpack.c.l.b16 %v699
        %v4288 = vunpack.c.h.b16 %v699
        %v4289 = vpack.c.b16 %v4287, %v4285
        %v4290 = vpack.c.b16 %v4288, %v4286
        %v4325 = vunpack.c.l.b16 %v3767
        %v4326 = vunpack.c.h.b16 %v3767
        %v4327 = vunpack.c.l.b16 %v3768
        %v4328 = vunpack.c.h.b16 %v3768
        %v4329 = vunpack.c.l.b16 %v3769
        %v4330 = vunpack.c.h.b16 %v3769
        %v4331 = vunpack.c.l.b16 %v3770
        %v4332 = vunpack.c.h.b16 %v3770
        %v4333 = vunpack.c.l.b16 %v3771
        %v4334 = vunpack.c.h.b16 %v3771
        %v4335 = vunpack.c.l.b16 %v3772
        %v4336 = vunpack.c.h.b16 %v3772
        %v4337 = vunpack.c.l.b16 %v3773
        %v4338 = vunpack.c.h.b16 %v3773
        %v4339 = vunpack.c.l.b16 %v3774
        %v4340 = vunpack.c.h.b16 %v3774
        %v4341 = vunpack.c.l.b16 %v3775
        %v4342 = vunpack.c.h.b16 %v3775
        %v4343 = vunpack.c.l.b16 %v3776
        %v4344 = vunpack.c.h.b16 %v3776
        %v4345 = vunpack.c.l.b16 %v3777
        %v4346 = vunpack.c.h.b16 %v3777
        %v4347 = vunpack.c.l.b16 %v3778
        %v4348 = vunpack.c.h.b16 %v3778
        %v4349 = vunpack.c.l.b16 %v3779
        %v4350 = vunpack.c.h.b16 %v3779
        %v4351 = vunpack.c.l.b16 %v3780
        %v4352 = vunpack.c.h.b16 %v3780
        %v4353 = vunpack.c.l.b16 %v3781
        %v4354 = vunpack.c.h.b16 %v3781
        %v4355 = vunpack.c.l.b16 %v3782
        %v4356 = vunpack.c.h.b16 %v3782
        %v4357 = vunpack.c.l.b16 %v3783
        %v4358 = vunpack.c.h.b16 %v3783
        %v4359 = vunpack.c.l.b16 %v3784
        %v4360 = vunpack.c.h.b16 %v3784
        %v4361 = vunpack.c.l.b16 %v3785
        %v4362 = vunpack.c.h.b16 %v3785
        %v4363 = vunpack.c.l.b16 %v3786
        %v4364 = vunpack.c.h.b16 %v3786
        %v4365 = vunpack.c.l.b16 %v3787
        %v4366 = vunpack.c.h.b16 %v3787
        %v4367 = vunpack.c.l.b16 %v3788
        %v4368 = vunpack.c.h.b16 %v3788
        %v4369 = vunpack.c.l.b16 %v3789
        %v4370 = vunpack.c.h.b16 %v3789
        %v4371 = vunpack.c.l.b16 %v3790
        %v4372 = vunpack.c.h.b16 %v3790
        %v4373 = vunpack.c.l.b16 %v3791
        %v4374 = vunpack.c.h.b16 %v3791
        %v4375 = vunpack.c.l.b16 %v3792
        %v4376 = vunpack.c.h.b16 %v3792
        %v4377 = vunpack.c.l.b16 %v3793
        %v4378 = vunpack.c.h.b16 %v3793
        %v4379 = vunpack.c.l.b16 %v3794
        %v4380 = vunpack.c.h.b16 %v3794
        %v4381 = vunpack.c.l.b16 %v3795
        %v4382 = vunpack.c.h.b16 %v3795
        %v4383 = vunpack.c.l.b16 %v3796
        %v4384 = vunpack.c.h.b16 %v3796
        %v4385 = vunpack.c.l.b16 %v3797
        %v4386 = vunpack.c.h.b16 %v3797
        %v4387 = vunpack.c.l.b16 %v3798
        %v4388 = vunpack.c.h.b16 %v3798
        %v4389 = vpack.c.b16 %v4327, %v4325
        %v4390 = vpack.c.b16 %v4328, %v4326
        %v4391 = vpack.c.b16 %v4331, %v4329
        %v4392 = vpack.c.b16 %v4332, %v4330
        %v4393 = vpack.c.b16 %v4335, %v4333
        %v4394 = vpack.c.b16 %v4336, %v4334
        %v4395 = vpack.c.b16 %v4339, %v4337
        %v4396 = vpack.c.b16 %v4340, %v4338
        %v4397 = vpack.c.b16 %v4343, %v4341
        %v4398 = vpack.c.b16 %v4344, %v4342
        %v4399 = vpack.c.b16 %v4347, %v4345
        %v4400 = vpack.c.b16 %v4348, %v4346
        %v4401 = vpack.c.b16 %v4351, %v4349
        %v4402 = vpack.c.b16 %v4352, %v4350
        %v4403 = vpack.c.b16 %v4355, %v4353
        %v4404 = vpack.c.b16 %v4356, %v4354
        %v4405 = vpack.c.b16 %v4359, %v4357
        %v4406 = vpack.c.b16 %v4360, %v4358
        %v4407 = vpack.c.b16 %v4363, %v4361
        %v4408 = vpack.c.b16 %v4364, %v4362
        %v4409 = vpack.c.b16 %v4367, %v4365
        %v4410 = vpack.c.b16 %v4368, %v4366
        %v4411 = vpack.c.b16 %v4371, %v4369
        %v4412 = vpack.c.b16 %v4372, %v4370
        %v4413 = vpack.c.b16 %v4375, %v4373
        %v4414 = vpack.c.b16 %v4376, %v4374
        %v4415 = vpack.c.b16 %v4379, %v4377
        %v4416 = vpack.c.b16 %v4380, %v4378
        %v4417 = vpack.c.b16 %v4383, %v4381
        %v4418 = vpack.c.b16 %v4384, %v4382
        %v4419 = vpack.c.b16 %v4387, %v4385
        %v4420 = vpack.c.b16 %v4388, %v4386
        %4453 = vmatpush.bf16.msra.mxu0 %v4403
        %4454 = vmatpush.bf16.msra.mxu0 %v4401
        %4455 = vmatpush.bf16.msra.mxu0 %v4399
        %4456 = vmatpush.bf16.msra.mxu0 %v4397
        %4457 = vmatpush.bf16.msra.mxu0 %v4395
        %4458 = vmatpush.bf16.msra.mxu0 %v4393
        %4459 = vmatpush.bf16.msra.mxu0 %v4391
        %4460 = vmatpush.bf16.msra.mxu0 %v4389
        %4461 = vmatmul.bf16.gmra.mxu0 %v4289
        %v4462 = vpop.f32.mrf.mxu0
        %v4463 = vadd.f32 0.0, %v4462
        %v4464 = vpop.f32.mrf.mxu0
        %v4465 = vadd.f32 0.0, %v4464
        %4466 = vdwg.mxu0
        %4467 = vmatpush.bf16.msra.mxu0 %v4419
        %4468 = vmatpush.bf16.msra.mxu0 %v4417
        %4469 = vmatpush.bf16.msra.mxu0 %v4415
        %4470 = vmatpush.bf16.msra.mxu0 %v4413
        %4471 = vmatpush.bf16.msra.mxu0 %v4411
        %4472 = vmatpush.bf16.msra.mxu0 %v4409
        %4473 = vmatpush.bf16.msra.mxu0 %v4407
        %4474 = vmatpush.bf16.msra.mxu0 %v4405
        %4475 = vmatmul.bf16.gmra.mxu0 %v4290
        %v4476 = vpop.f32.mrf.mxu0
        %v4477 = vadd.f32 %v4463, %v4476
        %v4478 = vpop.f32.mrf.mxu0
        %v4479 = vadd.f32 %v4465, %v4478
        %4480 = vdwg.mxu0
        %4481 = vmatpush.bf16.msra.mxu0 %v4404
        %4482 = vmatpush.bf16.msra.mxu0 %v4402
        %4483 = vmatpush.bf16.msra.mxu0 %v4400
        %4484 = vmatpush.bf16.msra.mxu0 %v4398
        %4485 = vmatpush.bf16.msra.mxu0 %v4396
        %4486 = vmatpush.bf16.msra.mxu0 %v4394
        %4487 = vmatpush.bf16.msra.mxu0 %v4392
        %4488 = vmatpush.bf16.msra.mxu0 %v4390
        %4489 = vmatmul.bf16.gmra.mxu0 %v4289
        %v4490 = vpop.f32.mrf.mxu0
        %v4491 = vadd.f32 0.0, %v4490
        %v4492 = vpop.f32.mrf.mxu0
        %v4493 = vadd.f32 0.0, %v4492
        %4494 = vdwg.mxu0
        %4495 = vmatpush.bf16.msra.mxu0 %v4420
        %4496 = vmatpush.bf16.msra.mxu0 %v4418
        %4497 = vmatpush.bf16.msra.mxu0 %v4416
        %4498 = vmatpush.bf16.msra.mxu0 %v4414
        %4499 = vmatpush.bf16.msra.mxu0 %v4412
        %4500 = vmatpush.bf16.msra.mxu0 %v4410
        %4501 = vmatpush.bf16.msra.mxu0 %v4408
        %4502 = vmatpush.bf16.msra.mxu0 %v4406
        %4503 = vmatmul.bf16.gmra.mxu0 %v4290
        %v4504 = vpop.f32.mrf.mxu0
        %v4505 = vadd.f32 %v4491, %v4504
        %v4506 = vpop.f32.mrf.mxu0
        %v4507 = vadd.f32 %v4493, %v4506
        %4508 = vdwg.mxu0
        %v4511 = vunpack.c.l.b16 %v700
        %v4512 = vunpack.c.h.b16 %v700
        %v4513 = vunpack.c.l.b16 %v701
        %v4514 = vunpack.c.h.b16 %v701
        %v4515 = vpack.c.b16 %v4513, %v4511
        %v4516 = vpack.c.b16 %v4514, %v4512
        %v4551 = vunpack.c.l.b16 %v3799
        %v4552 = vunpack.c.h.b16 %v3799
        %v4553 = vunpack.c.l.b16 %v3800
        %v4554 = vunpack.c.h.b16 %v3800
        %v4555 = vunpack.c.l.b16 %v3801
        %v4556 = vunpack.c.h.b16 %v3801
        %v4557 = vunpack.c.l.b16 %v3802
        %v4558 = vunpack.c.h.b16 %v3802
        %v4559 = vunpack.c.l.b16 %v3803
        %v4560 = vunpack.c.h.b16 %v3803
        %v4561 = vunpack.c.l.b16 %v3804
        %v4562 = vunpack.c.h.b16 %v3804
        %v4563 = vunpack.c.l.b16 %v3805
        %v4564 = vunpack.c.h.b16 %v3805
        %v4565 = vunpack.c.l.b16 %v3806
        %v4566 = vunpack.c.h.b16 %v3806
        %v4567 = vunpack.c.l.b16 %v3807
        %v4568 = vunpack.c.h.b16 %v3807
        %v4569 = vunpack.c.l.b16 %v3808
        %v4570 = vunpack.c.h.b16 %v3808
        %v4571 = vunpack.c.l.b16 %v3809
        %v4572 = vunpack.c.h.b16 %v3809
        %v4573 = vunpack.c.l.b16 %v3810
        %v4574 = vunpack.c.h.b16 %v3810
        %v4575 = vunpack.c.l.b16 %v3811
        %v4576 = vunpack.c.h.b16 %v3811
        %v4577 = vunpack.c.l.b16 %v3812
        %v4578 = vunpack.c.h.b16 %v3812
        %v4579 = vunpack.c.l.b16 %v3813
        %v4580 = vunpack.c.h.b16 %v3813
        %v4581 = vunpack.c.l.b16 %v3814
        %v4582 = vunpack.c.h.b16 %v3814
        %v4583 = vunpack.c.l.b16 %v3815
        %v4584 = vunpack.c.h.b16 %v3815
        %v4585 = vunpack.c.l.b16 %v3816
        %v4586 = vunpack.c.h.b16 %v3816
        %v4587 = vunpack.c.l.b16 %v3817
        %v4588 = vunpack.c.h.b16 %v3817
        %v4589 = vunpack.c.l.b16 %v3818
        %v4590 = vunpack.c.h.b16 %v3818
        %v4591 = vunpack.c.l.b16 %v3819
        %v4592 = vunpack.c.h.b16 %v3819
        %v4593 = vunpack.c.l.b16 %v3820
        %v4594 = vunpack.c.h.b16 %v3820
        %v4595 = vunpack.c.l.b16 %v3821
        %v4596 = vunpack.c.h.b16 %v3821
        %v4597 = vunpack.c.l.b16 %v3822
        %v4598 = vunpack.c.h.b16 %v3822
        %v4599 = vunpack.c.l.b16 %v3823
        %v4600 = vunpack.c.h.b16 %v3823
        %v4601 = vunpack.c.l.b16 %v3824
        %v4602 = vunpack.c.h.b16 %v3824
        %v4603 = vunpack.c.l.b16 %v3825
        %v4604 = vunpack.c.h.b16 %v3825
        %v4605 = vunpack.c.l.b16 %v3826
        %v4606 = vunpack.c.h.b16 %v3826
        %v4607 = vunpack.c.l.b16 %v3827
        %v4608 = vunpack.c.h.b16 %v3827
        %v4609 = vunpack.c.l.b16 %v3828
        %v4610 = vunpack.c.h.b16 %v3828
        %v4611 = vunpack.c.l.b16 %v3829
        %v4612 = vunpack.c.h.b16 %v3829
        %v4613 = vunpack.c.l.b16 %v3830
        %v4614 = vunpack.c.h.b16 %v3830
        %v4615 = vpack.c.b16 %v4553, %v4551
        %v4616 = vpack.c.b16 %v4554, %v4552
        %v4617 = vpack.c.b16 %v4557, %v4555
        %v4618 = vpack.c.b16 %v4558, %v4556
        %v4619 = vpack.c.b16 %v4561, %v4559
        %v4620 = vpack.c.b16 %v4562, %v4560
        %v4621 = vpack.c.b16 %v4565, %v4563
        %v4622 = vpack.c.b16 %v4566, %v4564
        %v4623 = vpack.c.b16 %v4569, %v4567
        %v4624 = vpack.c.b16 %v4570, %v4568
        %v4625 = vpack.c.b16 %v4573, %v4571
        %v4626 = vpack.c.b16 %v4574, %v4572
        %v4627 = vpack.c.b16 %v4577, %v4575
        %v4628 = vpack.c.b16 %v4578, %v4576
        %v4629 = vpack.c.b16 %v4581, %v4579
        %v4630 = vpack.c.b16 %v4582, %v4580
        %v4631 = vpack.c.b16 %v4585, %v4583
        %v4632 = vpack.c.b16 %v4586, %v4584
        %v4633 = vpack.c.b16 %v4589, %v4587
        %v4634 = vpack.c.b16 %v4590, %v4588
        %v4635 = vpack.c.b16 %v4593, %v4591
        %v4636 = vpack.c.b16 %v4594, %v4592
        %v4637 = vpack.c.b16 %v4597, %v4595
        %v4638 = vpack.c.b16 %v4598, %v4596
        %v4639 = vpack.c.b16 %v4601, %v4599
        %v4640 = vpack.c.b16 %v4602, %v4600
        %v4641 = vpack.c.b16 %v4605, %v4603
        %v4642 = vpack.c.b16 %v4606, %v4604
        %v4643 = vpack.c.b16 %v4609, %v4607
        %v4644 = vpack.c.b16 %v4610, %v4608
        %v4645 = vpack.c.b16 %v4613, %v4611
        %v4646 = vpack.c.b16 %v4614, %v4612
        %4679 = vmatpush.bf16.msra.mxu0 %v4629
        %4680 = vmatpush.bf16.msra.mxu0 %v4627
        %4681 = vmatpush.bf16.msra.mxu0 %v4625
        %4682 = vmatpush.bf16.msra.mxu0 %v4623
        %4683 = vmatpush.bf16.msra.mxu0 %v4621
        %4684 = vmatpush.bf16.msra.mxu0 %v4619
        %4685 = vmatpush.bf16.msra.mxu0 %v4617
        %4686 = vmatpush.bf16.msra.mxu0 %v4615
        %4687 = vmatmul.bf16.gmra.mxu0 %v4515
        %v4688 = vpop.f32.mrf.mxu0
        %v4689 = vadd.f32 0.0, %v4688
        %v4690 = vpop.f32.mrf.mxu0
        %v4691 = vadd.f32 0.0, %v4690
        %4692 = vdwg.mxu0
        %4693 = vmatpush.bf16.msra.mxu0 %v4645
        %4694 = vmatpush.bf16.msra.mxu0 %v4643
        %4695 = vmatpush.bf16.msra.mxu0 %v4641
        %4696 = vmatpush.bf16.msra.mxu0 %v4639
        %4697 = vmatpush.bf16.msra.mxu0 %v4637
        %4698 = vmatpush.bf16.msra.mxu0 %v4635
        %4699 = vmatpush.bf16.msra.mxu0 %v4633
        %4700 = vmatpush.bf16.msra.mxu0 %v4631
        %4701 = vmatmul.bf16.gmra.mxu0 %v4516
        %v4702 = vpop.f32.mrf.mxu0
        %v4703 = vadd.f32 %v4689, %v4702
        %v4704 = vpop.f32.mrf.mxu0
        %v4705 = vadd.f32 %v4691, %v4704
        %4706 = vdwg.mxu0
        %4707 = vmatpush.bf16.msra.mxu0 %v4630
        %4708 = vmatpush.bf16.msra.mxu0 %v4628
        %4709 = vmatpush.bf16.msra.mxu0 %v4626
        %4710 = vmatpush.bf16.msra.mxu0 %v4624
        %4711 = vmatpush.bf16.msra.mxu0 %v4622
        %4712 = vmatpush.bf16.msra.mxu0 %v4620
        %4713 = vmatpush.bf16.msra.mxu0 %v4618
        %4714 = vmatpush.bf16.msra.mxu0 %v4616
        %4715 = vmatmul.bf16.gmra.mxu0 %v4515
        %v4716 = vpop.f32.mrf.mxu0
        %v4717 = vadd.f32 0.0, %v4716
        %v4718 = vpop.f32.mrf.mxu0
        %v4719 = vadd.f32 0.0, %v4718
        %4720 = vdwg.mxu0
        %4721 = vmatpush.bf16.msra.mxu0 %v4646
        %4722 = vmatpush.bf16.msra.mxu0 %v4644
        %4723 = vmatpush.bf16.msra.mxu0 %v4642
        %4724 = vmatpush.bf16.msra.mxu0 %v4640
        %4725 = vmatpush.bf16.msra.mxu0 %v4638
        %4726 = vmatpush.bf16.msra.mxu0 %v4636
        %4727 = vmatpush.bf16.msra.mxu0 %v4634
        %4728 = vmatpush.bf16.msra.mxu0 %v4632
        %4729 = vmatmul.bf16.gmra.mxu0 %v4516
        %v4730 = vpop.f32.mrf.mxu0
        %v4731 = vadd.f32 %v4717, %v4730
        %v4732 = vpop.f32.mrf.mxu0
        %v4733 = vadd.f32 %v4719, %v4732
        %4734 = vdwg.mxu0
        %v4735 = vld [vmem:[%s3] sm:$0xf]
        %v4736 = vpack.c.bf16 %v4027, %v4025
        %v4737 = vpack.c.bf16 %v4055, %v4053
        %v4738 = vpack.c.bf16 %v4253, %v4251
        %v4739 = vpack.c.bf16 %v4281, %v4279
        %v4740 = vpack.c.bf16 %v4479, %v4477
        %v4741 = vpack.c.bf16 %v4507, %v4505
        %v4742 = vpack.c.bf16 %v4705, %v4703
        %v4743 = vpack.c.bf16 %v4733, %v4731
        %v4744 = vld [vmem:[%s4] sm:$0xff]
        %4746 = vset.pattern.permute.xlu0 0
        %4747 = vperm.xlu0 %4746, %v4744
        %v4748 = vpop.permute.xlu0 %4747
        %vm4750 = vcmask 523264
        %v4752 = vsel %vm4750, %v4735, 0
        %4754 = vmatpush.bf16.msra.mxu0 0
        %4755 = vmatpush.bf16.msra.mxu0 0
        %4756 = vmatpush.bf16.msra.mxu0 0
        %4757 = vmatpush.bf16.msra.mxu0 0
        %4758 = vmatpush.bf16.msra.mxu0 %v4742
        %4759 = vmatpush.bf16.msra.mxu0 %v4740
        %4760 = vmatpush.bf16.msra.mxu0 %v4738
        %4761 = vmatpush.bf16.msra.mxu0 %v4736
        %4762 = vmatmul.bf16.gmra.mxu0 %v4752
        %v4763 = vpop.f32.mrf.mxu0
        %v4764 = vadd.f32 %v4748, %v4763
        %v4765 = vpop.f32.mrf.mxu0
        %4766 = vdwg.mxu0
        %4767 = vmatpush.bf16.msra.mxu0 0
        %4768 = vmatpush.bf16.msra.mxu0 0
        %4769 = vmatpush.bf16.msra.mxu0 0
        %4770 = vmatpush.bf16.msra.mxu0 0
        %4771 = vmatpush.bf16.msra.mxu0 %v4743
        %4772 = vmatpush.bf16.msra.mxu0 %v4741
        %4773 = vmatpush.bf16.msra.mxu0 %v4739
        %4774 = vmatpush.bf16.msra.mxu0 %v4737
        %4775 = vmatmul.bf16.gmra.mxu0 %v4752
        %v4776 = vpop.f32.mrf.mxu0
        %v4777 = vadd.f32 %v4748, %v4776
        %v4778 = vpop.f32.mrf.mxu0
        %4779 = vdwg.mxu0
        %v4780 = vadd.f32 %v4764, %v224
        %v4781 = vadd.f32 %v4777, %v225
        %v4782 = vmax.f32 %v4780, 0.0
        %v4783 = vmax.f32 %v4781, 0.0
        %4784 = vst [vmem:[%s217] sm:$0xff] %v4782
        %4785 = vst [vmem:[%s217 + $0x8] sm:$0xff] %v4783
        %s4786 = sand.u32 %s137, 1
        %s4787 = scalar_lea.sflag [#allocation4], %s4786
        %s4788 = sand.u32 %s137, 1
        %s4789 = smul.addr %s4788, 16
        %s4790 = scalar_lea.vmem [#allocation3], %s4789
        // Predicated region
        $region41: #{tpu_custom_call.1} parent=39 // pred_check
          %p4791 = pneg %p147
        $region42: #{tpu_custom_call.1} parent=39 // pred_check_branch
          %4793 = sbr.rel (%p4791) target = $region44
        $region43: #{tpu_custom_call.1} parent=39 // pred_region
          %4795 = vsyncadd %s4787, 0
          %s4796 = smul.addr %s19, 2
          %s4797 = smul.addr %s4796, 8
          %s4798 = scalar_lea.hbm %s5, %s4797
          %s4800 = sshll.u32 %s4790, 4
          %s4801 = int_to_ptr.vmem [resolvable:$true] %s4800
          %s4802 = sshll.u32 %s4798, 4
          %s4803 = int_to_ptr.hbm [resolvable:$true] %s4802
          %4805 = dma.vmem_to_hbm [thread:$0]  %s4801, 256, %s4803, %s4787
        $region44: #{tpu_custom_call.1} parent=39 // pred_fallthru
          _
      $region40: #{tpu_custom_call.1} parent=5 // pred_fallthru
        _
      %p4806 = scmp.le.s32.totalorder 2, %s14
      // Predicated region
      $region45: #{tpu_custom_call.1} parent=5 // pred_check
        %p4807 = pneg %p4806
      $region46: #{tpu_custom_call.1} parent=5 // pred_check_branch
        %4809 = sbr.rel (%p4807) target = $region48
      $region47: #{tpu_custom_call.1} parent=5 // pred_region
        %s4810 = ssub.s32 %s14, 2
        // Predicated region
        $region49: #{tpu_custom_call.1} parent=47 // pred_check
          %p4811 = pneg %p153
        $region50: #{tpu_custom_call.1} parent=47 // pred_check_branch
          %4813 = sbr.rel (%p4811) target = $region52
        $region51: #{tpu_custom_call.1} parent=47 // pred_region
          %s4814 = sand.u32 %s138, 1
          %s4815 = scalar_lea.sflag [#allocation4], %s4814
          %s4816 = sand.u32 %s138, 1
          %s4817 = smul.addr %s4816, 16
          %s4818 = scalar_lea.vmem [#allocation3], %s4817
          %4820 = dma.done %s4815, 256
        $region52: #{tpu_custom_call.1} parent=47 // pred_fallthru
          _
      $region48: #{tpu_custom_call.1} parent=5 // pred_fallthru
        _
    $region6: #{tpu_custom_call.1} parent=1 // loop_footer
      %s18 = sadd.s32 1, %s14
    $region7: #{tpu_custom_call.1} parent=1 // loop_footer_branch
      %13 = sbr.rel target = $region3
    $region8: #{tpu_custom_call.1} parent=1 // loop_exit
      _
    %4821 = vsyncpa [#allocation4], 1
    %s4822 = scalar_lea.sflag [#allocation4], 1
    %4823 = vsyncpa %s4822, 1

</llo_original>
